<compile_context>
chip_gen: v7x
topology: tpu7x:2x2x1
jax: 0.10.0
libtpu: 0.0.40
codegen_flags: <defaults>
</compile_context>

<pallas_src>
import functools

import jax
import jax.numpy as jnp
from jax import lax
from jax.experimental import pallas as pl
from jax.experimental.pallas import tpu as pltpu

NUM_ANCHORS = 70                                      # num_anchors in the module
CLS_C = 3                                             # classes per anchor
HEAD_COLS = NUM_ANCHORS * CLS_C + NUM_ANCHORS * 4     # 210 + 280 = 490
HEAD_COLS_PAD = 512                                   # lane-dense output width


def _tpu_vmem_bytes():
    """Physical VMEM per TensorCore (generation-aware tiling / vmem limit)."""
    try:
        return int(pltpu.get_tpu_info().vmem_capacity_bytes)
    except Exception:
        return 64 * 1024 * 1024          # conservative: v7x per-TC VMEM


def _choose_band_height(N, H, W, *, target_rows, min_total_steps=4):
    """Pick the output-row band height TH (a divisor of H).

    Largest TH such that TH*W <= target_rows and the grid has at least
    `min_total_steps` steps (so each v7x TensorCore gets >= 2 pipelined
    steps).  TH*W must be a multiple of 8 (sublane tiling) unless TH == H.
    """
    divisors = [d for d in range(1, H + 1) if H % d == 0]

    def ok_shape(th):
        return (th * W) % 8 == 0 or th == H

    best = None
    for th in divisors:
        if not ok_shape(th):
            continue
        if th * W <= target_rows and N * (H // th) >= min_total_steps:
            best = th if best is None else max(best, th)
    if best is None:                      # tiny inputs: keep rows bounded only
        for th in divisors:
            if ok_shape(th) and th * W <= target_rows:
                best = th if best is None else max(best, th)
    if best is None:
        best = H
    return best


def detection_head_kernel(x_ref, wconv_ref, bconv_ref, whead_ref, bhead_ref,
                          out_ref, *, th, w, c):
    # x_ref:     (H+2, W+2, C) bf16  full zero-padded image; constant block
    #                                 index over the band axis => DMA'd once
    #                                 per image, VMEM-resident across bands.
    # wconv_ref: (9, C, C)     bf16  per-tap (Cin, Cout) 3x3 conv weights
    # bconv_ref: (1, C)        f32
    # whead_ref: (C, 512)      bf16  fused [cls | box | zero-pad] 1x1 heads
    # bhead_ref: (1, 512)      f32
    # out_ref:   (TH*W, 512)   bf16
    j = pl.program_id(1)
    h0 = pl.multiple_of(j * th, th)              # top row of this band (padded coords)

    # 3x3 conv = 9 shifted-window GEMMs accumulated in f32 (single acc chain).
    acc = None
    for ky in range(3):
        for kx in range(3):
            win = x_ref[pl.ds(h0 + ky, th), kx:kx + w, :]        # (th, w, C)
            win = win.reshape(th * w, c)
            part = jnp.dot(win, wconv_ref[3 * ky + kx],
                           preferred_element_type=jnp.float32)
            acc = part if acc is None else acc + part

    feat = jnp.maximum(acc + bconv_ref[...], 0.0)                # F.relu(conv(x))

    out = (jnp.dot(feat.astype(jnp.bfloat16), whead_ref[...],
                   preferred_element_type=jnp.float32)
           + bhead_ref[...])                                     # cls | box heads
    out_ref[...] = out.astype(out_ref.dtype)                     # bf16 store


def preprocess_params(params):
    """One-time weight re-layout (hoisted out of the per-call forward path)."""
    C = params["conv_w"].shape[1]
    # torch conv weight (Cout, Cin, kH, kW) -> (kH, kW, Cin, Cout) -> (9, Cin, Cout)
    wconv = (jnp.transpose(params["conv_w"], (2, 3, 1, 0))
             .reshape(9, C, C).astype(jnp.bfloat16))
    bconv = params["conv_b"].reshape(1, C).astype(jnp.float32)

    wcls = params["cls_w"][:, :, 0, 0].T                     # (C, A*3)
    wbox = params["box_w"][:, :, 0, 0].T                     # (C, A*4)
    whead = jnp.concatenate([wcls, wbox], axis=1)            # (C, 490)
    whead = jnp.pad(whead, ((0, 0), (0, HEAD_COLS_PAD - HEAD_COLS))
                    ).astype(jnp.bfloat16)                   # (C, 512)
    bhead = jnp.concatenate([params["cls_b"], params["box_b"]])
    bhead = jnp.pad(bhead, (0, HEAD_COLS_PAD - HEAD_COLS)
                    ).reshape(1, HEAD_COLS_PAD).astype(jnp.float32)
    return wconv, bconv, whead, bhead


def manip_detection_head(feat_nchw, prepped):
    """Pallas forward of everything after `self.encoder(x)[3]`."""
    wconv, bconv, whead, bhead = prepped
    N, C, H, W = feat_nchw.shape
    A = NUM_ANCHORS

    vmem_bytes = _tpu_vmem_bytes()
    target_rows = 2048 if vmem_bytes >= 96 * 1024 * 1024 else 1024
    th = _choose_band_height(N, H, W, target_rows=target_rows)
    n_bands = H // th

    # ---- glue: NCHW -> NHWC (cast bf16 early to halve glue bytes) + pad=1 ----
    # TODO(synk): if the encoder emitted NHWC this transpose would disappear.
    x = jnp.transpose(feat_nchw, (0, 2, 3, 1)).astype(jnp.bfloat16)
    xp = jnp.pad(x, ((0, 0), (1, 1), (1, 1), (0, 0)))        # (N, H+2, W+2, C)

    kernel = functools.partial(detection_head_kernel, th=th, w=W, c=C)
    out = pl.pallas_call(
        kernel,
        out_shape=jax.ShapeDtypeStruct((N, H * W, HEAD_COLS_PAD), jnp.bfloat16),
        grid=(N, n_bands),
        in_specs=[
            # full padded image; block index constant over the band axis.
            pl.BlockSpec((None, H + 2, W + 2, C), lambda n, j: (n, 0, 0, 0)),
            pl.BlockSpec((9, C, C), lambda n, j: (0, 0, 0)),           # conv W
            pl.BlockSpec((1, C), lambda n, j: (0, 0)),                 # conv b
            pl.BlockSpec((C, HEAD_COLS_PAD), lambda n, j: (0, 0)),     # head W
            pl.BlockSpec((1, HEAD_COLS_PAD), lambda n, j: (0, 0)),     # head b
        ],
        out_specs=pl.BlockSpec((None, th * W, HEAD_COLS_PAD),
                               lambda n, j: (n, j, 0)),
        compiler_params=pltpu.CompilerParams(
            dimension_semantics=("parallel", "parallel"),   # shard across TCs
            vmem_limit_bytes=min(40 * 1024 * 1024, vmem_bytes // 2)),
    )(xp, wconv, bconv, whead, bhead)

    # ---- glue: strip zero-padded columns, permute_and_flatten, final permute ----
    # rows are n*H*W + h*W + w; cls columns a*3 + c  ==  torch's
    # view(N, A, C, H, W).permute(0,3,4,1,2).reshape(N, H*W*A, C)
    cls_flat = out[:, :, :A * CLS_C]                         # (N, HW, 210)
    box_flat = out[:, :, A * CLS_C:HEAD_COLS]                # (N, HW, 280)

    cls_pred = cls_flat.reshape(N, H * W * A, CLS_C).astype(jnp.float32)
    cls_pred = jnp.transpose(cls_pred, (0, 2, 1))            # (N, 3, H*W*A)
    if cls_pred.shape[2] == 1:                               # torch .squeeze(2)
        cls_pred = cls_pred[:, :, 0]
    box_pred = box_flat.reshape(N, H * W * A, 4).astype(jnp.float32)
    return cls_pred, box_pred


def init_params(key, channel=256):
    ks = jax.random.split(key, 6)
    a = NUM_ANCHORS
    return {
        "conv_w": 0.02 * jax.random.normal(ks[0], (channel, channel, 3, 3), jnp.float32),
        "conv_b": 0.02 * jax.random.normal(ks[1], (channel,), jnp.float32),
        "cls_w": 0.02 * jax.random.normal(ks[2], (a * CLS_C, channel, 1, 1), jnp.float32),
        "cls_b": 0.02 * jax.random.normal(ks[3], (a * CLS_C,), jnp.float32),
        "box_w": 0.02 * jax.random.normal(ks[4], (a * 4, channel, 1, 1), jnp.float32),
        "box_b": 0.02 * jax.random.normal(ks[5], (a * 4,), jnp.float32),
    }


def reference_head(feat, params):
    """Plain-JAX reference reproducing the torch forward (after encoder)."""
    dn = ("NCHW", "OIHW", "NCHW")
    hp = lax.Precision.HIGHEST
    conv = lax.conv_general_dilated(feat, params["conv_w"], (1, 1),
                                    ((1, 1), (1, 1)), dimension_numbers=dn,
                                    precision=hp)
    conv = jax.nn.relu(conv + params["conv_b"][None, :, None, None])
    cls = lax.conv_general_dilated(conv, params["cls_w"], (1, 1),
                                   ((0, 0), (0, 0)), dimension_numbers=dn,
                                   precision=hp) + params["cls_b"][None, :, None, None]
    box = lax.conv_general_dilated(conv, params["box_w"], (1, 1),
                                   ((0, 0), (0, 0)), dimension_numbers=dn,
                                   precision=hp) + params["box_b"][None, :, None, None]
    N, _, H, W = feat.shape
    A = NUM_ANCHORS
    cls = cls.reshape(N, A, CLS_C, H, W).transpose(0, 3, 4, 1, 2).reshape(N, H * W * A, CLS_C)
    box = box.reshape(N, A, 4, H, W).transpose(0, 3, 4, 1, 2).reshape(N, H * W * A, 4)
    cls = cls.transpose(0, 2, 1)
    if cls.shape[2] == 1:
        cls = cls[:, :, 0]
    return cls, box


if __name__ == "__main__":
    key = jax.random.PRNGKey(0)
    k_feat, k_params = jax.random.split(key)

    # stage-3 feature map of ResNet-18 (channel = 256), small spatial size.
    # NHW = 512; band height 8 -> grid (2, 2) = 4 steps (2 per v7x TC).
    N, C, H, W = 2, 256, 16, 16
    feat = jax.random.normal(k_feat, (N, C, H, W), jnp.float32)
    params = init_params(k_params, channel=C)
    prepped = preprocess_params(params)

    cls_pred, box_pred = manip_detection_head(feat, prepped)
    jax.block_until_ready((cls_pred, box_pred))

    assert cls_pred.shape == (N, CLS_C, H * W * NUM_ANCHORS), cls_pred.shape
    assert box_pred.shape == (N, H * W * NUM_ANCHORS, 4), box_pred.shape

    cls_ref, box_ref = reference_head(feat, params)
    assert jnp.allclose(cls_pred, cls_ref, rtol=2e-2, atol=2e-2), (
        float(jnp.max(jnp.abs(cls_pred - cls_ref))))
    assert jnp.allclose(box_pred, box_ref, rtol=2e-2, atol=2e-2), (
        float(jnp.max(jnp.abs(box_pred - box_ref))))

    print("KERNEL_OK")
</pallas_src>

<mosaic_0001>
module attributes {stable_mosaic.version = 11 : i64} {
  func.func @detection_head_kernel(%arg0: i32, %arg1: i32, %arg2: memref<1x18x18x256xbf16, #tpu.memory_space<vmem>>, %arg3: memref<9x256x256xbf16, #tpu.memory_space<vmem>>, %arg4: memref<1x256xf32, #tpu.memory_space<vmem>>, %arg5: memref<256x512xbf16, #tpu.memory_space<vmem>>, %arg6: memref<1x512xf32, #tpu.memory_space<vmem>>, %arg7: memref<1x128x512xbf16, #tpu.memory_space<vmem>>) attributes {dimension_semantics = [#tpu.dimension_semantics<parallel>, #tpu.dimension_semantics<parallel>], iteration_bounds = array<i64: 2, 2>, scalar_prefetch = 0 : i64, scratch_operands = 0 : i64, tpu.core_type = #tpu.core_type<tc>, window_params = [{transform_indices = @transform_0, window_bounds = array<i64: 1, 18, 18, 256>}, {pipeline_mode = #tpu.pipeline_mode<synchronous>, transform_indices = @transform_1, window_bounds = array<i64: 9, 256, 256>}, {pipeline_mode = #tpu.pipeline_mode<synchronous>, transform_indices = @transform_2, window_bounds = array<i64: 1, 256>}, {pipeline_mode = #tpu.pipeline_mode<synchronous>, transform_indices = @transform_3, window_bounds = array<i64: 256, 512>}, {pipeline_mode = #tpu.pipeline_mode<synchronous>, transform_indices = @transform_4, window_bounds = array<i64: 1, 512>}, {transform_indices = @transform_5, window_bounds = array<i64: 1, 128, 512>}]} {
    %c8_i32 = arith.constant 8 : i32
    %0 = arith.muli %arg1, %c8_i32 : i32
    %1 = tpu.assume_multiple %0, 8 : i32
    %c0_i32 = arith.constant 0 : i32
    %2 = arith.addi %1, %c0_i32 : i32
    %c0 = arith.constant 0 : index
    %3 = arith.index_cast %2 : i32 to index
    %c0_0 = arith.constant 0 : index
    %c0_1 = arith.constant 0 : index
    %4 = vector.load %arg2[%c0, %3, %c0_0, %c0_1] : memref<1x18x18x256xbf16, #tpu.memory_space<vmem>>, vector<1x8x16x256xbf16>
    %5 = vector.shape_cast %4 : vector<1x8x16x256xbf16> to vector<8x16x256xbf16>
    %6 = vector.shape_cast %5 : vector<8x16x256xbf16> to vector<128x256xbf16>
    %c0_2 = arith.constant 0 : index
    %c0_3 = arith.constant 0 : index
    %c0_4 = arith.constant 0 : index
    %7 = vector.load %arg3[%c0_2, %c0_3, %c0_4] : memref<9x256x256xbf16, #tpu.memory_space<vmem>>, vector<1x256x256xbf16>
    %8 = vector.shape_cast %7 : vector<1x256x256xbf16> to vector<256x256xbf16>
    %cst = arith.constant dense<0.000000e+00> : vector<128x256xf32>
    %9 = tpu.matmul %6, %8, %cst {dimension_numbers = #tpu.dot_dimension_numbers<[1], [0], [0], [1], [0, 0, 1, 1], [], []>} : vector<128x256xbf16>, vector<256x256xbf16>, vector<128x256xf32> -> vector<128x256xf32>
    %c0_i32_5 = arith.constant 0 : i32
    %10 = arith.addi %1, %c0_i32_5 : i32
    %c0_6 = arith.constant 0 : index
    %11 = arith.index_cast %10 : i32 to index
    %c1 = arith.constant 1 : index
    %c0_7 = arith.constant 0 : index
    %12 = vector.load %arg2[%c0_6, %11, %c1, %c0_7] : memref<1x18x18x256xbf16, #tpu.memory_space<vmem>>, vector<1x8x16x256xbf16>
    %13 = vector.shape_cast %12 : vector<1x8x16x256xbf16> to vector<8x16x256xbf16>
    %14 = vector.shape_cast %13 : vector<8x16x256xbf16> to vector<128x256xbf16>
    %c1_8 = arith.constant 1 : index
    %c0_9 = arith.constant 0 : index
    %c0_10 = arith.constant 0 : index
    %15 = vector.load %arg3[%c1_8, %c0_9, %c0_10] : memref<9x256x256xbf16, #tpu.memory_space<vmem>>, vector<1x256x256xbf16>
    %16 = vector.shape_cast %15 : vector<1x256x256xbf16> to vector<256x256xbf16>
    %cst_11 = arith.constant dense<0.000000e+00> : vector<128x256xf32>
    %17 = tpu.matmul %14, %16, %cst_11 {dimension_numbers = #tpu.dot_dimension_numbers<[1], [0], [0], [1], [0, 0, 1, 1], [], []>} : vector<128x256xbf16>, vector<256x256xbf16>, vector<128x256xf32> -> vector<128x256xf32>
    %18 = arith.addf %9, %17 : vector<128x256xf32>
    %c0_i32_12 = arith.constant 0 : i32
    %19 = arith.addi %1, %c0_i32_12 : i32
    %c0_13 = arith.constant 0 : index
    %20 = arith.index_cast %19 : i32 to index
    %c2 = arith.constant 2 : index
    %c0_14 = arith.constant 0 : index
    %21 = vector.load %arg2[%c0_13, %20, %c2, %c0_14] : memref<1x18x18x256xbf16, #tpu.memory_space<vmem>>, vector<1x8x16x256xbf16>
    %22 = vector.shape_cast %21 : vector<1x8x16x256xbf16> to vector<8x16x256xbf16>
    %23 = vector.shape_cast %22 : vector<8x16x256xbf16> to vector<128x256xbf16>
    %c2_15 = arith.constant 2 : index
    %c0_16 = arith.constant 0 : index
    %c0_17 = arith.constant 0 : index
    %24 = vector.load %arg3[%c2_15, %c0_16, %c0_17] : memref<9x256x256xbf16, #tpu.memory_space<vmem>>, vector<1x256x256xbf16>
    %25 = vector.shape_cast %24 : vector<1x256x256xbf16> to vector<256x256xbf16>
    %cst_18 = arith.constant dense<0.000000e+00> : vector<128x256xf32>
    %26 = tpu.matmul %23, %25, %cst_18 {dimension_numbers = #tpu.dot_dimension_numbers<[1], [0], [0], [1], [0, 0, 1, 1], [], []>} : vector<128x256xbf16>, vector<256x256xbf16>, vector<128x256xf32> -> vector<128x256xf32>
    %27 = arith.addf %18, %26 : vector<128x256xf32>
    %c1_i32 = arith.constant 1 : i32
    %28 = arith.addi %1, %c1_i32 : i32
    %c0_19 = arith.constant 0 : index
    %29 = arith.index_cast %28 : i32 to index
    %c0_20 = arith.constant 0 : index
    %c0_21 = arith.constant 0 : index
    %30 = vector.load %arg2[%c0_19, %29, %c0_20, %c0_21] : memref<1x18x18x256xbf16, #tpu.memory_space<vmem>>, vector<1x8x16x256xbf16>
    %31 = vector.shape_cast %30 : vector<1x8x16x256xbf16> to vector<8x16x256xbf16>
    %32 = vector.shape_cast %31 : vector<8x16x256xbf16> to vector<128x256xbf16>
    %c3 = arith.constant 3 : index
    %c0_22 = arith.constant 0 : index
    %c0_23 = arith.constant 0 : index
    %33 = vector.load %arg3[%c3, %c0_22, %c0_23] : memref<9x256x256xbf16, #tpu.memory_space<vmem>>, vector<1x256x256xbf16>
    %34 = vector.shape_cast %33 : vector<1x256x256xbf16> to vector<256x256xbf16>
    %cst_24 = arith.constant dense<0.000000e+00> : vector<128x256xf32>
    %35 = tpu.matmul %32, %34, %cst_24 {dimension_numbers = #tpu.dot_dimension_numbers<[1], [0], [0], [1], [0, 0, 1, 1], [], []>} : vector<128x256xbf16>, vector<256x256xbf16>, vector<128x256xf32> -> vector<128x256xf32>
    %36 = arith.addf %27, %35 : vector<128x256xf32>
    %c1_i32_25 = arith.constant 1 : i32
    %37 = arith.addi %1, %c1_i32_25 : i32
    %c0_26 = arith.constant 0 : index
    %38 = arith.index_cast %37 : i32 to index
    %c1_27 = arith.constant 1 : index
    %c0_28 = arith.constant 0 : index
    %39 = vector.load %arg2[%c0_26, %38, %c1_27, %c0_28] : memref<1x18x18x256xbf16, #tpu.memory_space<vmem>>, vector<1x8x16x256xbf16>
    %40 = vector.shape_cast %39 : vector<1x8x16x256xbf16> to vector<8x16x256xbf16>
    %41 = vector.shape_cast %40 : vector<8x16x256xbf16> to vector<128x256xbf16>
    %c4 = arith.constant 4 : index
    %c0_29 = arith.constant 0 : index
    %c0_30 = arith.constant 0 : index
    %42 = vector.load %arg3[%c4, %c0_29, %c0_30] : memref<9x256x256xbf16, #tpu.memory_space<vmem>>, vector<1x256x256xbf16>
    %43 = vector.shape_cast %42 : vector<1x256x256xbf16> to vector<256x256xbf16>
    %cst_31 = arith.constant dense<0.000000e+00> : vector<128x256xf32>
    %44 = tpu.matmul %41, %43, %cst_31 {dimension_numbers = #tpu.dot_dimension_numbers<[1], [0], [0], [1], [0, 0, 1, 1], [], []>} : vector<128x256xbf16>, vector<256x256xbf16>, vector<128x256xf32> -> vector<128x256xf32>
    %45 = arith.addf %36, %44 : vector<128x256xf32>
    %c1_i32_32 = arith.constant 1 : i32
    %46 = arith.addi %1, %c1_i32_32 : i32
    %c0_33 = arith.constant 0 : index
    %47 = arith.index_cast %46 : i32 to index
    %c2_34 = arith.constant 2 : index
    %c0_35 = arith.constant 0 : index
    %48 = vector.load %arg2[%c0_33, %47, %c2_34, %c0_35] : memref<1x18x18x256xbf16, #tpu.memory_space<vmem>>, vector<1x8x16x256xbf16>
    %49 = vector.shape_cast %48 : vector<1x8x16x256xbf16> to vector<8x16x256xbf16>
    %50 = vector.shape_cast %49 : vector<8x16x256xbf16> to vector<128x256xbf16>
    %c5 = arith.constant 5 : index
    %c0_36 = arith.constant 0 : index
    %c0_37 = arith.constant 0 : index
    %51 = vector.load %arg3[%c5, %c0_36, %c0_37] : memref<9x256x256xbf16, #tpu.memory_space<vmem>>, vector<1x256x256xbf16>
    %52 = vector.shape_cast %51 : vector<1x256x256xbf16> to vector<256x256xbf16>
    %cst_38 = arith.constant dense<0.000000e+00> : vector<128x256xf32>
    %53 = tpu.matmul %50, %52, %cst_38 {dimension_numbers = #tpu.dot_dimension_numbers<[1], [0], [0], [1], [0, 0, 1, 1], [], []>} : vector<128x256xbf16>, vector<256x256xbf16>, vector<128x256xf32> -> vector<128x256xf32>
    %54 = arith.addf %45, %53 : vector<128x256xf32>
    %c2_i32 = arith.constant 2 : i32
    %55 = arith.addi %1, %c2_i32 : i32
    %c0_39 = arith.constant 0 : index
    %56 = arith.index_cast %55 : i32 to index
    %c0_40 = arith.constant 0 : index
    %c0_41 = arith.constant 0 : index
    %57 = vector.load %arg2[%c0_39, %56, %c0_40, %c0_41] : memref<1x18x18x256xbf16, #tpu.memory_space<vmem>>, vector<1x8x16x256xbf16>
    %58 = vector.shape_cast %57 : vector<1x8x16x256xbf16> to vector<8x16x256xbf16>
    %59 = vector.shape_cast %58 : vector<8x16x256xbf16> to vector<128x256xbf16>
    %c6 = arith.constant 6 : index
    %c0_42 = arith.constant 0 : index
    %c0_43 = arith.constant 0 : index
    %60 = vector.load %arg3[%c6, %c0_42, %c0_43] : memref<9x256x256xbf16, #tpu.memory_space<vmem>>, vector<1x256x256xbf16>
    %61 = vector.shape_cast %60 : vector<1x256x256xbf16> to vector<256x256xbf16>
    %cst_44 = arith.constant dense<0.000000e+00> : vector<128x256xf32>
    %62 = tpu.matmul %59, %61, %cst_44 {dimension_numbers = #tpu.dot_dimension_numbers<[1], [0], [0], [1], [0, 0, 1, 1], [], []>} : vector<128x256xbf16>, vector<256x256xbf16>, vector<128x256xf32> -> vector<128x256xf32>
    %63 = arith.addf %54, %62 : vector<128x256xf32>
    %c2_i32_45 = arith.constant 2 : i32
    %64 = arith.addi %1, %c2_i32_45 : i32
    %c0_46 = arith.constant 0 : index
    %65 = arith.index_cast %64 : i32 to index
    %c1_47 = arith.constant 1 : index
    %c0_48 = arith.constant 0 : index
    %66 = vector.load %arg2[%c0_46, %65, %c1_47, %c0_48] : memref<1x18x18x256xbf16, #tpu.memory_space<vmem>>, vector<1x8x16x256xbf16>
    %67 = vector.shape_cast %66 : vector<1x8x16x256xbf16> to vector<8x16x256xbf16>
    %68 = vector.shape_cast %67 : vector<8x16x256xbf16> to vector<128x256xbf16>
    %c7 = arith.constant 7 : index
    %c0_49 = arith.constant 0 : index
    %c0_50 = arith.constant 0 : index
    %69 = vector.load %arg3[%c7, %c0_49, %c0_50] : memref<9x256x256xbf16, #tpu.memory_space<vmem>>, vector<1x256x256xbf16>
    %70 = vector.shape_cast %69 : vector<1x256x256xbf16> to vector<256x256xbf16>
    %cst_51 = arith.constant dense<0.000000e+00> : vector<128x256xf32>
    %71 = tpu.matmul %68, %70, %cst_51 {dimension_numbers = #tpu.dot_dimension_numbers<[1], [0], [0], [1], [0, 0, 1, 1], [], []>} : vector<128x256xbf16>, vector<256x256xbf16>, vector<128x256xf32> -> vector<128x256xf32>
    %72 = arith.addf %63, %71 : vector<128x256xf32>
    %c2_i32_52 = arith.constant 2 : i32
    %73 = arith.addi %1, %c2_i32_52 : i32
    %c0_53 = arith.constant 0 : index
    %74 = arith.index_cast %73 : i32 to index
    %c2_54 = arith.constant 2 : index
    %c0_55 = arith.constant 0 : index
    %75 = vector.load %arg2[%c0_53, %74, %c2_54, %c0_55] : memref<1x18x18x256xbf16, #tpu.memory_space<vmem>>, vector<1x8x16x256xbf16>
    %76 = vector.shape_cast %75 : vector<1x8x16x256xbf16> to vector<8x16x256xbf16>
    %77 = vector.shape_cast %76 : vector<8x16x256xbf16> to vector<128x256xbf16>
    %c8 = arith.constant 8 : index
    %c0_56 = arith.constant 0 : index
    %c0_57 = arith.constant 0 : index
    %78 = vector.load %arg3[%c8, %c0_56, %c0_57] : memref<9x256x256xbf16, #tpu.memory_space<vmem>>, vector<1x256x256xbf16>
    %79 = vector.shape_cast %78 : vector<1x256x256xbf16> to vector<256x256xbf16>
    %cst_58 = arith.constant dense<0.000000e+00> : vector<128x256xf32>
    %80 = tpu.matmul %77, %79, %cst_58 {dimension_numbers = #tpu.dot_dimension_numbers<[1], [0], [0], [1], [0, 0, 1, 1], [], []>} : vector<128x256xbf16>, vector<256x256xbf16>, vector<128x256xf32> -> vector<128x256xf32>
    %81 = arith.addf %72, %80 : vector<128x256xf32>
    %c0_59 = arith.constant 0 : index
    %c0_60 = arith.constant 0 : index
    %82 = vector.load %arg4[%c0_59, %c0_60] : memref<1x256xf32, #tpu.memory_space<vmem>>, vector<1x256xf32>
    %83 = vector.broadcast %82 : vector<1x256xf32> to vector<128x256xf32>
    %84 = arith.addf %81, %83 : vector<128x256xf32>
    %cst_61 = arith.constant 0.000000e+00 : f32
    %85 = vector.broadcast %cst_61 : f32 to vector<128x256xf32>
    %86 = arith.maximumf %84, %85 : vector<128x256xf32>
    %87 = arith.truncf %86 : vector<128x256xf32> to vector<128x256xbf16>
    %c0_62 = arith.constant 0 : index
    %c0_63 = arith.constant 0 : index
    %88 = vector.load %arg5[%c0_62, %c0_63] : memref<256x512xbf16, #tpu.memory_space<vmem>>, vector<256x512xbf16>
    %cst_64 = arith.constant dense<0.000000e+00> : vector<128x512xf32>
    %89 = tpu.matmul %87, %88, %cst_64 {dimension_numbers = #tpu.dot_dimension_numbers<[1], [0], [0], [1], [0, 0, 1, 1], [], []>} : vector<128x256xbf16>, vector<256x512xbf16>, vector<128x512xf32> -> vector<128x512xf32>
    %c0_65 = arith.constant 0 : index
    %c0_66 = arith.constant 0 : index
    %90 = vector.load %arg6[%c0_65, %c0_66] : memref<1x512xf32, #tpu.memory_space<vmem>>, vector<1x512xf32>
    %91 = vector.broadcast %90 : vector<1x512xf32> to vector<128x512xf32>
    %92 = arith.addf %89, %91 : vector<128x512xf32>
    %93 = arith.truncf %92 : vector<128x512xf32> to vector<128x512xbf16>
    %c0_67 = arith.constant 0 : index
    %c0_68 = arith.constant 0 : index
    %c0_69 = arith.constant 0 : index
    %94 = vector.load %arg7[%c0_67, %c0_68, %c0_69] : memref<1x128x512xbf16, #tpu.memory_space<vmem>>, vector<1x128x512xbf16>
    %95 = vector.shape_cast %94 : vector<1x128x512xbf16> to vector<128x512xbf16>
    %96 = vector.shape_cast %93 : vector<128x512xbf16> to vector<1x128x512xbf16>
    tpu.vector_store %arg7[%c0_67, %c0_68, %c0_69], %96 {strides = array<i32>} : memref<1x128x512xbf16, #tpu.memory_space<vmem>>, vector<1x128x512xbf16>,
    return
  }
  func.func @transform_0(%arg0: i32, %arg1: i32) -> (i32, i32, i32, i32) {
    %c0_i32 = arith.constant 0 : i32
    %c0_i32_0 = arith.constant 0 : i32
    %c0_i32_1 = arith.constant 0 : i32
    %c0_i32_2 = arith.constant 0 : i32
    return %arg0, %c0_i32, %c0_i32_0, %c0_i32_1 : i32, i32, i32, i32
  }
  func.func @transform_1(%arg0: i32, %arg1: i32) -> (i32, i32, i32) {
    %c0_i32 = arith.constant 0 : i32
    %c0_i32_0 = arith.constant 0 : i32
    %c0_i32_1 = arith.constant 0 : i32
    %c0_i32_2 = arith.constant 0 : i32
    return %c0_i32, %c0_i32_0, %c0_i32_1 : i32, i32, i32
  }
  func.func @transform_2(%arg0: i32, %arg1: i32) -> (i32, i32) {
    %c0_i32 = arith.constant 0 : i32
    %c0_i32_0 = arith.constant 0 : i32
    %c0_i32_1 = arith.constant 0 : i32
    return %c0_i32, %c0_i32_0 : i32, i32
  }
  func.func @transform_3(%arg0: i32, %arg1: i32) -> (i32, i32) {
    %c0_i32 = arith.constant 0 : i32
    %c0_i32_0 = arith.constant 0 : i32
    %c0_i32_1 = arith.constant 0 : i32
    return %c0_i32, %c0_i32_0 : i32, i32
  }
  func.func @transform_4(%arg0: i32, %arg1: i32) -> (i32, i32) {
    %c0_i32 = arith.constant 0 : i32
    %c0_i32_0 = arith.constant 0 : i32
    %c0_i32_1 = arith.constant 0 : i32
    return %c0_i32, %c0_i32_0 : i32, i32
  }
  func.func @transform_5(%arg0: i32, %arg1: i32) -> (i32, i32, i32) {
    %c0_i32 = arith.constant 0 : i32
    %c0_i32_0 = arith.constant 0 : i32
    return %arg0, %arg1, %c0_i32 : i32, i32, i32
  }
}

</mosaic_0001>

<llo_original>
// kernel: tpu_custom_call.1
$region0: #{tpu_custom_call.1}
  #allocation0 [shape = 'u32[]', space=smem, size = 0x4, offset = 0x4, fixed_abs, tag = 'smem constant byte address 0x4 - core index']
  #allocation1 [shape = 'u32[144,128]{1,0:T(1,128)}', space=vmem, size = 0x12000, scoped, tag = 'internal scratch']
  %s0 = inlined_call_operand.vmem [shape: bf16[2,18,18,256], index: 0, kind: input, shape index: {}]
  %s1 = inlined_call_operand.hbm [shape: bf16[9,256,256], index: 1, kind: input, shape index: {}]
  %s2 = inlined_call_operand.hbm [shape: f32[1,256], index: 2, kind: input, shape index: {}]
  %s3 = inlined_call_operand.hbm [shape: bf16[256,512], index: 3, kind: input, shape index: {}]
  %s4 = inlined_call_operand.hbm [shape: f32[1,512], index: 4, kind: input, shape index: {}]
  %s5 = inlined_call_operand.hbm [shape: bf16[2,256,512], index: 5, kind: output, shape index: {}]
  %s6 = sld [smem:[#allocation0]]
  $region69: #{tpu_custom_call.1} parent=0
    _
  %s8 = ssub.s32 1, %s6
  %s9 = scalar_select 0, %s8, %s6
  $region1: #{tpu_custom_call.1} parent=0
    #allocation2 [shape = 'u8[1179648]{0}', space=vmem, size = 0x120000, scoped, tag = 'input window, operand 1, single buffered']
    #allocation3 [shape = 's32[2]{0}', space=sflag, size = 0x8, scoped, tag = 'scoped memory for tpu_custom_call.1']
    #allocation4 [shape = 's32[2]{0}', space=sflag, size = 0x8, scoped, tag = 'scoped memory for tpu_custom_call.1']
    #allocation5 [shape = 'u8[1024]{0}', space=vmem, size = 0x400, scoped, tag = 'input window, operand 2, single buffered']
    #allocation6 [shape = 's32[1]{0}', space=sflag, size = 0x4, scoped, tag = 'scoped memory for tpu_custom_call.1']
    #allocation7 [shape = 'u8[262144]{0}', space=vmem, size = 0x40000, scoped, tag = 'input window, operand 3, single buffered']
    #allocation8 [shape = 'u8[2048]{0}', space=vmem, size = 0x800, scoped, tag = 'input window, operand 4, single buffered']
    #allocation9 [shape = 's32[1]{0}', space=sflag, size = 0x4, scoped, tag = 'scoped memory for tpu_custom_call.1']
    #allocation10 [shape = 'u8[262144]{0}', space=vmem, size = 0x40000, scoped, tag = 'output window, operand 0']
    %10 = vsyncpa [#allocation3], 0
    %11 = vsyncpa [#allocation6], 0
    %12 = vsyncpa [#allocation9], 0
    %13 = vsyncpa [#allocation4], 0
    %s14 = scalar_lea.sflag [#allocation4], 1
    %15 = vsyncpa %s14, 0
    loop: start=0, step=1, limit=6
    $region2: #{tpu_custom_call.1} parent=1 // loop_pre_header
      _
    $region3: #{tpu_custom_call.1} parent=1 // loop_header
      %s17 = sphi 0, %s21
      %p18 = scmp.ge.s32.totalorder %s17, 6
      %s24 = sphi 0, %s36
      %s25 = sphi 0, %s32
      %s26 = sphi 0, %s24
      %s27 = sphi 0, %s25
      %s28 = sphi 0, %s26
      %s29 = sphi 0, %s27
      %s39 = sphi 0, %s41
      %s42 = sphi 0, %s39
      %s43 = sphi 0, %s42
      %s59 = sphi 0, %s43
      %s63 = sphi 0, %s63
      %s65 = sphi 0, %s63
      %s66 = sphi 0, %s65
      %s80 = sphi 0, %s66
      %s84 = sphi 0, %s84
      %s86 = sphi 0, %s84
      %s87 = sphi 0, %s86
      %s101 = sphi 0, %s87
      %s105 = sphi 0, %s105
      %s107 = sphi 0, %s105
      %s108 = sphi 0, %s107
      %s122 = sphi 0, %s108
      %s126 = sphi 0, %s126
      %s128 = sphi 0, %s126
      %s129 = sphi 0, %s128
      %s143 = sphi 0, %s129
      %s151 = sphi 0, %s153
      %s154 = sphi 0, %s151
      %s155 = sphi 0, %s154
      %s171 = sphi 0, %s155
    $region4: #{tpu_custom_call.1} parent=1 // loop_header_branch
      %20 = sbr.rel (%p18) target = $region8
    $region5: #{tpu_custom_call.1} parent=1 // loop_body
      %s22 = ssub.s32 %s17, 1
      %s23 = ssub.s32 %s17, 2
      %s30 = sadd.s32 1, %s25
      %p31 = scmp.ge.s32.totalorder %s30, 2
      %s32 = scalar_select %p31, 0, %s30
      %s33 = sadd.s32 1, %s24
      %s34 = scalar_select %p31, %s33, %s24
      %p35 = scmp.ge.s32.totalorder %s34, 2
      %s36 = scalar_select %p35, 0, %s34
      %s37 = ssub.s32 %s24, %s36
      %p38 = scmp.eq.s32.totalorder %s37, 0
      %s40 = sadd.s32 %s39, 1
      %s41 = scalar_select %p38, %s39, %s40
      %p44 = pneg %p38
      %p45 = scmp.eq.s32.totalorder %s17, 3
      %p46 = por %p44, %p45
      %p47 = scmp.ne.s32.totalorder %s39, %s42
      %p48 = scmp.eq.s32.totalorder %s17, 0
      %p49 = por %p47, %p48
      %p50 = scmp.ne.s32.totalorder %s39, %s42
      %p51 = scmp.eq.s32.totalorder %s22, 3
      %p52 = por %p50, %p51
      %p53 = scmp.ne.s32.totalorder %s42, %s43
      %p54 = scmp.eq.s32.totalorder %s22, 0
      %p55 = por %p53, %p54
      %p56 = scmp.ne.s32.totalorder %s42, %s43
      %p57 = scmp.eq.s32.totalorder %s23, 3
      %p58 = por %p56, %p57
      %p60 = scmp.ne.s32.totalorder %s43, %s59
      %p61 = scmp.eq.s32.totalorder %s23, 0
      %p62 = por %p60, %p61
      %s64 = sadd.s32 %s63, 1
      %p67 = scmp.eq.s32.totalorder %s17, 3
      %p68 = scmp.ne.s32.totalorder %s63, %s65
      %p69 = scmp.eq.s32.totalorder %s17, 0
      %p70 = por %p68, %p69
      %p71 = scmp.ne.s32.totalorder %s63, %s65
      %p72 = scmp.eq.s32.totalorder %s22, 3
      %p73 = por %p71, %p72
      %p74 = scmp.ne.s32.totalorder %s65, %s66
      %p75 = scmp.eq.s32.totalorder %s22, 0
      %p76 = por %p74, %p75
      %p77 = scmp.ne.s32.totalorder %s65, %s66
      %p78 = scmp.eq.s32.totalorder %s23, 3
      %p79 = por %p77, %p78
      %p81 = scmp.ne.s32.totalorder %s66, %s80
      %p82 = scmp.eq.s32.totalorder %s23, 0
      %p83 = por %p81, %p82
      %s85 = sadd.s32 %s84, 1
      %p88 = scmp.eq.s32.totalorder %s17, 3
      %p89 = scmp.ne.s32.totalorder %s84, %s86
      %p90 = scmp.eq.s32.totalorder %s17, 0
      %p91 = por %p89, %p90
      %p92 = scmp.ne.s32.totalorder %s84, %s86
      %p93 = scmp.eq.s32.totalorder %s22, 3
      %p94 = por %p92, %p93
      %p95 = scmp.ne.s32.totalorder %s86, %s87
      %p96 = scmp.eq.s32.totalorder %s22, 0
      %p97 = por %p95, %p96
      %p98 = scmp.ne.s32.totalorder %s86, %s87
      %p99 = scmp.eq.s32.totalorder %s23, 3
      %p100 = por %p98, %p99
      %p102 = scmp.ne.s32.totalorder %s87, %s101
      %p103 = scmp.eq.s32.totalorder %s23, 0
      %p104 = por %p102, %p103
      %s106 = sadd.s32 %s105, 1
      %p109 = scmp.eq.s32.totalorder %s17, 3
      %p110 = scmp.ne.s32.totalorder %s105, %s107
      %p111 = scmp.eq.s32.totalorder %s17, 0
      %p112 = por %p110, %p111
      %p113 = scmp.ne.s32.totalorder %s105, %s107
      %p114 = scmp.eq.s32.totalorder %s22, 3
      %p115 = por %p113, %p114
      %p116 = scmp.ne.s32.totalorder %s107, %s108
      %p117 = scmp.eq.s32.totalorder %s22, 0
      %p118 = por %p116, %p117
      %p119 = scmp.ne.s32.totalorder %s107, %s108
      %p120 = scmp.eq.s32.totalorder %s23, 3
      %p121 = por %p119, %p120
      %p123 = scmp.ne.s32.totalorder %s108, %s122
      %p124 = scmp.eq.s32.totalorder %s23, 0
      %p125 = por %p123, %p124
      %s127 = sadd.s32 %s126, 1
      %p130 = scmp.eq.s32.totalorder %s17, 3
      %p131 = scmp.ne.s32.totalorder %s126, %s128
      %p132 = scmp.eq.s32.totalorder %s17, 0
      %p133 = por %p131, %p132
      %p134 = scmp.ne.s32.totalorder %s126, %s128
      %p135 = scmp.eq.s32.totalorder %s22, 3
      %p136 = por %p134, %p135
      %p137 = scmp.ne.s32.totalorder %s128, %s129
      %p138 = scmp.eq.s32.totalorder %s22, 0
      %p139 = por %p137, %p138
      %p140 = scmp.ne.s32.totalorder %s128, %s129
      %p141 = scmp.eq.s32.totalorder %s23, 3
      %p142 = por %p140, %p141
      %p144 = scmp.ne.s32.totalorder %s129, %s143
      %p145 = scmp.eq.s32.totalorder %s23, 0
      %p146 = por %p144, %p145
      %s147 = ssub.s32 %s24, %s36
      %s148 = ssub.s32 %s25, %s32
      %s149 = sor.u32 %s147, %s148
      %p150 = scmp.eq.s32.totalorder %s149, 0
      %s152 = sadd.s32 %s151, 1
      %s153 = scalar_select %p150, %s151, %s152
      %p156 = pneg %p150
      %p157 = scmp.eq.s32.totalorder %s17, 3
      %p158 = por %p156, %p157
      %p159 = scmp.ne.s32.totalorder %s151, %s154
      %p160 = scmp.eq.s32.totalorder %s17, 0
      %p161 = por %p159, %p160
      %p162 = scmp.ne.s32.totalorder %s151, %s154
      %p163 = scmp.eq.s32.totalorder %s22, 3
      %p164 = por %p162, %p163
      %p165 = scmp.ne.s32.totalorder %s154, %s155
      %p166 = scmp.eq.s32.totalorder %s22, 0
      %p167 = por %p165, %p166
      %p168 = scmp.ne.s32.totalorder %s154, %s155
      %p169 = scmp.eq.s32.totalorder %s23, 3
      %p170 = por %p168, %p169
      %p172 = scmp.ne.s32.totalorder %s155, %s171
      %p173 = scmp.eq.s32.totalorder %s23, 0
      %p174 = por %p172, %p173
      %p175 = scmp.le.s32.totalorder 1, %s17
      %p176 = scmp.lt.s32.totalorder %s17, 5
      %p177 = pnand %p175, %p176
      %p178 = pneg %p177
      // Predicated region
      $region9: #{tpu_custom_call.1} parent=5 // pred_check
        _
      $region10: #{tpu_custom_call.1} parent=5 // pred_check_branch
        %180 = sbr.rel (%p177) target = $region12
      $region11: #{tpu_custom_call.1} parent=5 // pred_region
        %s181 = ssub.s32 %s17, 1
        // Predicated region
        $region13: #{tpu_custom_call.1} parent=11 // pred_check
          %p182 = pneg %p76
        $region14: #{tpu_custom_call.1} parent=11 // pred_check_branch
          %184 = sbr.rel (%p182) target = $region16
        $region15: #{tpu_custom_call.1} parent=11 // pred_region
          %s186 = ssub.s32 36864, 36864
          %187 = vsyncadd [#allocation3], %s186
          %s188 = sshll.u32 [#allocation2], 4
          %s189 = int_to_ptr.vmem [resolvable:$true] %s188
          %194 = dma.hbm_to_vmem [thread:$0]  %s1, 36864, %s189, [#allocation3], 128, 128, 8
        $region16: #{tpu_custom_call.1} parent=11 // pred_fallthru
          _
        // Predicated region
        $region17: #{tpu_custom_call.1} parent=11 // pred_check
          %p195 = pneg %p97
        $region18: #{tpu_custom_call.1} parent=11 // pred_check_branch
          %197 = sbr.rel (%p195) target = $region20
        $region19: #{tpu_custom_call.1} parent=11 // pred_region
          %s199 = ssub.s32 32, 32
          %200 = vsyncadd [#allocation6], %s199
          %s202 = sshll.u32 [#allocation5], 4
          %s203 = int_to_ptr.vmem [resolvable:$true] %s202
          %205 = dma.hbm_to_vmem [thread:$0]  %s2, 32, %s203, [#allocation6]
        $region20: #{tpu_custom_call.1} parent=11 // pred_fallthru
          _
        // Predicated region
        $region21: #{tpu_custom_call.1} parent=11 // pred_check
          %p206 = pneg %p118
        $region22: #{tpu_custom_call.1} parent=11 // pred_check_branch
          %208 = sbr.rel (%p206) target = $region24
        $region23: #{tpu_custom_call.1} parent=11 // pred_region
          %s210 = ssub.s32 8192, 8192
          %211 = vsyncadd [#allocation6], %s210
          %s212 = sshll.u32 [#allocation7], 4
          %s213 = int_to_ptr.vmem [resolvable:$true] %s212
          %218 = dma.hbm_to_vmem [thread:$0]  %s3, 8192, %s213, [#allocation6], 256, 256, 16
        $region24: #{tpu_custom_call.1} parent=11 // pred_fallthru
          _
        // Predicated region
        $region25: #{tpu_custom_call.1} parent=11 // pred_check
          %p219 = pneg %p139
        $region26: #{tpu_custom_call.1} parent=11 // pred_check_branch
          %221 = sbr.rel (%p219) target = $region28
        $region27: #{tpu_custom_call.1} parent=11 // pred_region
          %s223 = ssub.s32 64, 64
          %224 = vsyncadd [#allocation9], %s223
          %s226 = sshll.u32 [#allocation8], 4
          %s227 = int_to_ptr.vmem [resolvable:$true] %s226
          %229 = dma.hbm_to_vmem [thread:$0]  %s4, 64, %s227, [#allocation9]
        $region28: #{tpu_custom_call.1} parent=11 // pred_fallthru
          _
      $region12: #{tpu_custom_call.1} parent=5 // pred_fallthru
        _
      %p230 = scmp.lt.s32.totalorder %s17, 4
      // Predicated region
      $region29: #{tpu_custom_call.1} parent=5 // pred_check
        %p231 = pneg %p230
      $region30: #{tpu_custom_call.1} parent=5 // pred_check_branch
        %233 = sbr.rel (%p231) target = $region32
      $region31: #{tpu_custom_call.1} parent=5 // pred_region
        // Predicated region
        $region33: #{tpu_custom_call.1} parent=31 // pred_check
          %p234 = pneg %p49
        $region34: #{tpu_custom_call.1} parent=31 // pred_check_branch
          %236 = sbr.rel (%p234) target = $region36
        $region35: #{tpu_custom_call.1} parent=31 // pred_region
          %p237 = scmp.lt.s32.totalorder %s24, 1
          %s238 = scalar_select %p237, %s24, 1
          %s239 = smul.addr %s238, 108
          %s240 = smul.addr %s239, 4
          %s241 = scalar_lea.vmem %s0, %s240
        $region36: #{tpu_custom_call.1} parent=31 // pred_fallthru
          _
      $region32: #{tpu_custom_call.1} parent=5 // pred_fallthru
        _
      %p242 = scmp.le.s32.totalorder 1, %s17
      %p243 = scmp.lt.s32.totalorder %s17, 5
      %p244 = pnand %p242, %p243
      %p245 = pneg %p244
      // Predicated region
      $region37: #{tpu_custom_call.1} parent=5 // pred_check
        _
      $region38: #{tpu_custom_call.1} parent=5 // pred_check_branch
        %247 = sbr.rel (%p244) target = $region40
      $region39: #{tpu_custom_call.1} parent=5 // pred_region
        %s248 = ssub.s32 %s17, 1
        // Predicated region
        $region41: #{tpu_custom_call.1} parent=39 // pred_check
          %p249 = pneg %p76
        $region42: #{tpu_custom_call.1} parent=39 // pred_check_branch
          %251 = sbr.rel (%p249) target = $region44
        $region43: #{tpu_custom_call.1} parent=39 // pred_region
          %252 = dma.done [#allocation3], 36864
        $region44: #{tpu_custom_call.1} parent=39 // pred_fallthru
          _
        // Predicated region
        $region45: #{tpu_custom_call.1} parent=39 // pred_check
          %p253 = pneg %p97
        $region46: #{tpu_custom_call.1} parent=39 // pred_check_branch
          %255 = sbr.rel (%p253) target = $region48
        $region47: #{tpu_custom_call.1} parent=39 // pred_region
          %256 = dma.done [#allocation6], 32
        $region48: #{tpu_custom_call.1} parent=39 // pred_fallthru
          _
        // Predicated region
        $region49: #{tpu_custom_call.1} parent=39 // pred_check
          %p257 = pneg %p118
        $region50: #{tpu_custom_call.1} parent=39 // pred_check_branch
          %259 = sbr.rel (%p257) target = $region52
        $region51: #{tpu_custom_call.1} parent=39 // pred_region
          %260 = dma.done [#allocation6], 8192
        $region52: #{tpu_custom_call.1} parent=39 // pred_fallthru
          _
        // Predicated region
        $region53: #{tpu_custom_call.1} parent=39 // pred_check
          %p261 = pneg %p139
        $region54: #{tpu_custom_call.1} parent=39 // pred_check_branch
          %263 = sbr.rel (%p261) target = $region56
        $region55: #{tpu_custom_call.1} parent=39 // pred_region
          %264 = dma.done [#allocation9], 64
        $region56: #{tpu_custom_call.1} parent=39 // pred_fallthru
          _
        %p265 = scmp.lt.s32.totalorder %s26, 1
        %s266 = scalar_select %p265, %s26, 1
        %s267 = smul.addr %s266, 108
        %s268 = smul.addr %s267, 4
        %s269 = scalar_lea.vmem %s0, %s268
        %p270 = pneg %p55
        %p271 = pneg %p52
        %p272 = pneg %p76
        %p273 = pneg %p73
        %p274 = pneg %p97
        %p275 = pneg %p94
        %p276 = pneg %p118
        %p277 = pneg %p115
        %p278 = pneg %p139
        %p279 = pneg %p136
        %p280 = pneg %p167
        %p281 = pneg %p164
        %s282 = sand.u32 %s154, 1
        %s283 = scalar_lea.sflag [#allocation4], %s282
        %s284 = sand.u32 %s154, 1
        %s285 = smul.addr %s284, 256
        %s286 = scalar_lea.vmem [#allocation10], %s285
        %p287 = scmp.lt.s32.totalorder %s26, 1
        %s288 = scalar_select %p287, %s26, 1
        %s289 = smul.addr %s288, 108
        %s290 = smul.addr %s289, 4
        %s291 = scalar_lea.vmem %s0, %s290
        %s292 = smul.u32 16, %s27
        %s293 = smul.u32 %s27, 8
        %s294 = smul.u32 %s293, 6
        %s295 = smul.addr %s294, 4
        %s296 = scalar_lea.vmem %s291, %s295
        %v297 = vld [vmem:[%s296] sm:$0xff]
        %v298 = vld [vmem:[%s296 + $0x8] sm:$0xff]
        %v299 = vld [vmem:[%s296 + $0x18] sm:$0xff]
        %v300 = vld [vmem:[%s296 + $0x20] sm:$0xff]
        %v301 = vld [vmem:[%s296 + $0x30] sm:$0xff]
        %v302 = vld [vmem:[%s296 + $0x38] sm:$0xff]
        %v303 = vld [vmem:[%s296 + $0x48] sm:$0xff]
        %v304 = vld [vmem:[%s296 + $0x50] sm:$0xff]
        %v305 = vld [vmem:[%s296 + $0x60] sm:$0xff]
        %v306 = vld [vmem:[%s296 + $0x68] sm:$0xff]
        %v307 = vld [vmem:[%s296 + $0x78] sm:$0xff]
        %v308 = vld [vmem:[%s296 + $0x80] sm:$0xff]
        %v309 = vld [vmem:[%s296 + $0x90] sm:$0xff]
        %v310 = vld [vmem:[%s296 + $0x98] sm:$0xff]
        %v311 = vld [vmem:[%s296 + $0xa8] sm:$0xff]
        %v312 = vld [vmem:[%s296 + $0xb0] sm:$0xff]
        %v313 = vld [vmem:[#allocation2] sm:$0xff]
        %v314 = vld [vmem:[#allocation2 + $0x8] sm:$0xff]
        %v315 = vld [vmem:[#allocation2 + $0x10] sm:$0xff]
        %v316 = vld [vmem:[#allocation2 + $0x18] sm:$0xff]
        %v317 = vld [vmem:[#allocation2 + $0x20] sm:$0xff]
        %v318 = vld [vmem:[#allocation2 + $0x28] sm:$0xff]
        %v319 = vld [vmem:[#allocation2 + $0x30] sm:$0xff]
        %v320 = vld [vmem:[#allocation2 + $0x38] sm:$0xff]
        %v321 = vld [vmem:[#allocation2 + $0x40] sm:$0xff]
        %v322 = vld [vmem:[#allocation2 + $0x48] sm:$0xff]
        %v323 = vld [vmem:[#allocation2 + $0x50] sm:$0xff]
        %v324 = vld [vmem:[#allocation2 + $0x58] sm:$0xff]
        %v325 = vld [vmem:[#allocation2 + $0x60] sm:$0xff]
        %v326 = vld [vmem:[#allocation2 + $0x68] sm:$0xff]
        %v327 = vld [vmem:[#allocation2 + $0x70] sm:$0xff]
        %v328 = vld [vmem:[#allocation2 + $0x78] sm:$0xff]
        %v329 = vld [vmem:[#allocation2 + $0x80] sm:$0xff]
        %v330 = vld [vmem:[#allocation2 + $0x88] sm:$0xff]
        %v331 = vld [vmem:[#allocation2 + $0x90] sm:$0xff]
        %v332 = vld [vmem:[#allocation2 + $0x98] sm:$0xff]
        %v333 = vld [vmem:[#allocation2 + $0xa0] sm:$0xff]
        %v334 = vld [vmem:[#allocation2 + $0xa8] sm:$0xff]
        %v335 = vld [vmem:[#allocation2 + $0xb0] sm:$0xff]
        %v336 = vld [vmem:[#allocation2 + $0xb8] sm:$0xff]
        %v337 = vld [vmem:[#allocation2 + $0xc0] sm:$0xff]
        %v338 = vld [vmem:[#allocation2 + $0xc8] sm:$0xff]
        %v339 = vld [vmem:[#allocation2 + $0xd0] sm:$0xff]
        %v340 = vld [vmem:[#allocation2 + $0xd8] sm:$0xff]
        %v341 = vld [vmem:[#allocation2 + $0xe0] sm:$0xff]
        %v342 = vld [vmem:[#allocation2 + $0xe8] sm:$0xff]
        %v343 = vld [vmem:[#allocation2 + $0xf0] sm:$0xff]
        %v344 = vld [vmem:[#allocation2 + $0xf8] sm:$0xff]
        %v345 = vld [vmem:[%s296 + $0x10] sm:$0x11]
        %v346 = vld [vmem:[%s296 + $0x28] sm:$0x11]
        %v347 = vld [vmem:[%s296 + $0x40] sm:$0x11]
        %v348 = vld [vmem:[%s296 + $0x58] sm:$0x11]
        %v349 = vld [vmem:[%s296 + $0x70] sm:$0x11]
        %v350 = vld [vmem:[%s296 + $0x88] sm:$0x11]
        %v351 = vld [vmem:[%s296 + $0xa0] sm:$0x11]
        %v352 = vld [vmem:[%s296 + $0xb8] sm:$0x11]
        %vm353 = vsmask.f32 3328
        %vm354 = vsmask.f32 7440
        %vm355 = vmor %vm353, %vm354
        %v357 = vshrl.u32 %v297, 16
        %v359 = vrot.slane %v357, 4
        %v360 = vshll.u32 %v297, 16
        %v362 = vrot.slane %v360, 5
        %v363 = vor.u32 %v359, %v362
        %v364 = vrot.slane %v363, 4
        %v366 = vshll.u32 %v298, 16
        %v368 = vrot.slane %v366, 5
        %v369 = vsel %vm355, %v364, %v368
        %v370 = vshrl.u32 %v298, 16
        %v372 = vrot.slane %v370, 4
        %v373 = vor.u32 %v372, %v368
        %v374 = vrot.slane %v373, 4
        %v376 = vshll.u32 %v345, 16
        %v378 = vrot.slane %v376, 5
        %v379 = vsel %vm355, %v374, %v378
        %v381 = vshrl.u32 %v299, 16
        %v383 = vrot.slane %v381, 4
        %v384 = vshll.u32 %v299, 16
        %v386 = vrot.slane %v384, 5
        %v387 = vor.u32 %v383, %v386
        %v388 = vrot.slane %v387, 4
        %v390 = vshll.u32 %v300, 16
        %v392 = vrot.slane %v390, 5
        %v393 = vsel %vm355, %v388, %v392
        %v394 = vshrl.u32 %v300, 16
        %v396 = vrot.slane %v394, 4
        %v397 = vor.u32 %v396, %v392
        %v398 = vrot.slane %v397, 4
        %v400 = vshll.u32 %v346, 16
        %v402 = vrot.slane %v400, 5
        %v403 = vsel %vm355, %v398, %v402
        %v405 = vshrl.u32 %v301, 16
        %v407 = vrot.slane %v405, 4
        %v408 = vshll.u32 %v301, 16
        %v410 = vrot.slane %v408, 5
        %v411 = vor.u32 %v407, %v410
        %v412 = vrot.slane %v411, 4
        %v414 = vshll.u32 %v302, 16
        %v416 = vrot.slane %v414, 5
        %v417 = vsel %vm355, %v412, %v416
        %v418 = vshrl.u32 %v302, 16
        %v420 = vrot.slane %v418, 4
        %v421 = vor.u32 %v420, %v416
        %v422 = vrot.slane %v421, 4
        %v424 = vshll.u32 %v347, 16
        %v426 = vrot.slane %v424, 5
        %v427 = vsel %vm355, %v422, %v426
        %v429 = vshrl.u32 %v303, 16
        %v431 = vrot.slane %v429, 4
        %v432 = vshll.u32 %v303, 16
        %v434 = vrot.slane %v432, 5
        %v435 = vor.u32 %v431, %v434
        %v436 = vrot.slane %v435, 4
        %v438 = vshll.u32 %v304, 16
        %v440 = vrot.slane %v438, 5
        %v441 = vsel %vm355, %v436, %v440
        %v442 = vshrl.u32 %v304, 16
        %v444 = vrot.slane %v442, 4
        %v445 = vor.u32 %v444, %v440
        %v446 = vrot.slane %v445, 4
        %v448 = vshll.u32 %v348, 16
        %v450 = vrot.slane %v448, 5
        %v451 = vsel %vm355, %v446, %v450
        %v453 = vshrl.u32 %v305, 16
        %v455 = vrot.slane %v453, 4
        %v456 = vshll.u32 %v305, 16
        %v458 = vrot.slane %v456, 5
        %v459 = vor.u32 %v455, %v458
        %v460 = vrot.slane %v459, 4
        %v462 = vshll.u32 %v306, 16
        %v464 = vrot.slane %v462, 5
        %v465 = vsel %vm355, %v460, %v464
        %v466 = vshrl.u32 %v306, 16
        %v468 = vrot.slane %v466, 4
        %v469 = vor.u32 %v468, %v464
        %v470 = vrot.slane %v469, 4
        %v472 = vshll.u32 %v349, 16
        %v474 = vrot.slane %v472, 5
        %v475 = vsel %vm355, %v470, %v474
        %v477 = vshrl.u32 %v307, 16
        %v479 = vrot.slane %v477, 4
        %v480 = vshll.u32 %v307, 16
        %v482 = vrot.slane %v480, 5
        %v483 = vor.u32 %v479, %v482
        %v484 = vrot.slane %v483, 4
        %v486 = vshll.u32 %v308, 16
        %v488 = vrot.slane %v486, 5
        %v489 = vsel %vm355, %v484, %v488
        %v490 = vshrl.u32 %v308, 16
        %v492 = vrot.slane %v490, 4
        %v493 = vor.u32 %v492, %v488
        %v494 = vrot.slane %v493, 4
        %v496 = vshll.u32 %v350, 16
        %v498 = vrot.slane %v496, 5
        %v499 = vsel %vm355, %v494, %v498
        %v501 = vshrl.u32 %v309, 16
        %v503 = vrot.slane %v501, 4
        %v504 = vshll.u32 %v309, 16
        %v506 = vrot.slane %v504, 5
        %v507 = vor.u32 %v503, %v506
        %v508 = vrot.slane %v507, 4
        %v510 = vshll.u32 %v310, 16
        %v512 = vrot.slane %v510, 5
        %v513 = vsel %vm355, %v508, %v512
        %v514 = vshrl.u32 %v310, 16
        %v516 = vrot.slane %v514, 4
        %v517 = vor.u32 %v516, %v512
        %v518 = vrot.slane %v517, 4
        %v520 = vshll.u32 %v351, 16
        %v522 = vrot.slane %v520, 5
        %v523 = vsel %vm355, %v518, %v522
        %v525 = vshrl.u32 %v311, 16
        %v527 = vrot.slane %v525, 4
        %v528 = vshll.u32 %v311, 16
        %v530 = vrot.slane %v528, 5
        %v531 = vor.u32 %v527, %v530
        %v532 = vrot.slane %v531, 4
        %v534 = vshll.u32 %v312, 16
        %v536 = vrot.slane %v534, 5
        %v537 = vsel %vm355, %v532, %v536
        %v538 = vshrl.u32 %v312, 16
        %v540 = vrot.slane %v538, 4
        %v541 = vor.u32 %v540, %v536
        %v542 = vrot.slane %v541, 4
        %v544 = vshll.u32 %v352, 16
        %v546 = vrot.slane %v544, 5
        %v547 = vsel %vm355, %v542, %v546
        %s548 = scalar_lea.vmem [#allocation2], 256
        %v549 = vld [vmem:[%s548] sm:$0xff]
        %v550 = vld [vmem:[%s548 + $0x8] sm:$0xff]
        %v551 = vld [vmem:[%s548 + $0x10] sm:$0xff]
        %v552 = vld [vmem:[%s548 + $0x18] sm:$0xff]
        %v553 = vld [vmem:[%s548 + $0x20] sm:$0xff]
        %v554 = vld [vmem:[%s548 + $0x28] sm:$0xff]
        %v555 = vld [vmem:[%s548 + $0x30] sm:$0xff]
        %v556 = vld [vmem:[%s548 + $0x38] sm:$0xff]
        %v557 = vld [vmem:[%s548 + $0x40] sm:$0xff]
        %v558 = vld [vmem:[%s548 + $0x48] sm:$0xff]
        %v559 = vld [vmem:[%s548 + $0x50] sm:$0xff]
        %v560 = vld [vmem:[%s548 + $0x58] sm:$0xff]
        %v561 = vld [vmem:[%s548 + $0x60] sm:$0xff]
        %v562 = vld [vmem:[%s548 + $0x68] sm:$0xff]
        %v563 = vld [vmem:[%s548 + $0x70] sm:$0xff]
        %v564 = vld [vmem:[%s548 + $0x78] sm:$0xff]
        %v565 = vld [vmem:[%s548 + $0x80] sm:$0xff]
        %v566 = vld [vmem:[%s548 + $0x88] sm:$0xff]
        %v567 = vld [vmem:[%s548 + $0x90] sm:$0xff]
        %v568 = vld [vmem:[%s548 + $0x98] sm:$0xff]
        %v569 = vld [vmem:[%s548 + $0xa0] sm:$0xff]
        %v570 = vld [vmem:[%s548 + $0xa8] sm:$0xff]
        %v571 = vld [vmem:[%s548 + $0xb0] sm:$0xff]
        %v572 = vld [vmem:[%s548 + $0xb8] sm:$0xff]
        %v573 = vld [vmem:[%s548 + $0xc0] sm:$0xff]
        %v574 = vld [vmem:[%s548 + $0xc8] sm:$0xff]
        %v575 = vld [vmem:[%s548 + $0xd0] sm:$0xff]
        %v576 = vld [vmem:[%s548 + $0xd8] sm:$0xff]
        %v577 = vld [vmem:[%s548 + $0xe0] sm:$0xff]
        %v578 = vld [vmem:[%s548 + $0xe8] sm:$0xff]
        %v579 = vld [vmem:[%s548 + $0xf0] sm:$0xff]
        %v580 = vld [vmem:[%s548 + $0xf8] sm:$0xff]
        %v581 = vunpack.c.l.b16 %v369
        %v582 = vunpack.c.h.b16 %v369
        %v583 = vunpack.c.l.b16 %v379
        %v584 = vunpack.c.h.b16 %v379
        %v585 = vunpack.c.l.b16 %v393
        %v586 = vunpack.c.h.b16 %v393
        %v587 = vunpack.c.l.b16 %v403
        %v588 = vunpack.c.h.b16 %v403
        %v589 = vunpack.c.l.b16 %v417
        %v590 = vunpack.c.h.b16 %v417
        %v591 = vunpack.c.l.b16 %v427
        %v592 = vunpack.c.h.b16 %v427
        %v593 = vunpack.c.l.b16 %v441
        %v594 = vunpack.c.h.b16 %v441
        %v595 = vunpack.c.l.b16 %v451
        %v596 = vunpack.c.h.b16 %v451
        %v597 = vunpack.c.l.b16 %v465
        %v598 = vunpack.c.h.b16 %v465
        %v599 = vunpack.c.l.b16 %v475
        %v600 = vunpack.c.h.b16 %v475
        %v601 = vunpack.c.l.b16 %v489
        %v602 = vunpack.c.h.b16 %v489
        %v603 = vunpack.c.l.b16 %v499
        %v604 = vunpack.c.h.b16 %v499
        %v605 = vunpack.c.l.b16 %v513
        %v606 = vunpack.c.h.b16 %v513
        %v607 = vunpack.c.l.b16 %v523
        %v608 = vunpack.c.h.b16 %v523
        %v609 = vunpack.c.l.b16 %v537
        %v610 = vunpack.c.h.b16 %v537
        %v611 = vunpack.c.l.b16 %v547
        %v612 = vunpack.c.h.b16 %v547
        %v613 = vpack.c.b16 %v583, %v581
        %v614 = vpack.c.b16 %v584, %v582
        %v615 = vpack.c.b16 %v587, %v585
        %v616 = vpack.c.b16 %v588, %v586
        %v617 = vpack.c.b16 %v591, %v589
        %v618 = vpack.c.b16 %v592, %v590
        %v619 = vpack.c.b16 %v595, %v593
        %v620 = vpack.c.b16 %v596, %v594
        %v621 = vpack.c.b16 %v599, %v597
        %v622 = vpack.c.b16 %v600, %v598
        %v623 = vpack.c.b16 %v603, %v601
        %v624 = vpack.c.b16 %v604, %v602
        %v625 = vpack.c.b16 %v607, %v605
        %v626 = vpack.c.b16 %v608, %v606
        %v627 = vpack.c.b16 %v611, %v609
        %v628 = vpack.c.b16 %v612, %v610
        %v677 = vunpack.c.l.b16 %v549
        %v678 = vunpack.c.h.b16 %v549
        %v679 = vunpack.c.l.b16 %v550
        %v680 = vunpack.c.h.b16 %v550
        %v681 = vunpack.c.l.b16 %v551
        %v682 = vunpack.c.h.b16 %v551
        %v683 = vunpack.c.l.b16 %v552
        %v684 = vunpack.c.h.b16 %v552
        %v685 = vunpack.c.l.b16 %v553
        %v686 = vunpack.c.h.b16 %v553
        %v687 = vunpack.c.l.b16 %v554
        %v688 = vunpack.c.h.b16 %v554
        %v689 = vunpack.c.l.b16 %v555
        %v690 = vunpack.c.h.b16 %v555
        %v691 = vunpack.c.l.b16 %v556
        %v692 = vunpack.c.h.b16 %v556
        %v693 = vunpack.c.l.b16 %v557
        %v694 = vunpack.c.h.b16 %v557
        %v695 = vunpack.c.l.b16 %v558
        %v696 = vunpack.c.h.b16 %v558
        %v697 = vunpack.c.l.b16 %v559
        %v698 = vunpack.c.h.b16 %v559
        %v699 = vunpack.c.l.b16 %v560
        %v700 = vunpack.c.h.b16 %v560
        %v701 = vunpack.c.l.b16 %v561
        %v702 = vunpack.c.h.b16 %v561
        %v703 = vunpack.c.l.b16 %v562
        %v704 = vunpack.c.h.b16 %v562
        %v705 = vunpack.c.l.b16 %v563
        %v706 = vunpack.c.h.b16 %v563
        %v707 = vunpack.c.l.b16 %v564
        %v708 = vunpack.c.h.b16 %v564
        %v709 = vunpack.c.l.b16 %v565
        %v710 = vunpack.c.h.b16 %v565
        %v711 = vunpack.c.l.b16 %v566
        %v712 = vunpack.c.h.b16 %v566
        %v713 = vunpack.c.l.b16 %v567
        %v714 = vunpack.c.h.b16 %v567
        %v715 = vunpack.c.l.b16 %v568
        %v716 = vunpack.c.h.b16 %v568
        %v717 = vunpack.c.l.b16 %v569
        %v718 = vunpack.c.h.b16 %v569
        %v719 = vunpack.c.l.b16 %v570
        %v720 = vunpack.c.h.b16 %v570
        %v721 = vunpack.c.l.b16 %v571
        %v722 = vunpack.c.h.b16 %v571
        %v723 = vunpack.c.l.b16 %v572
        %v724 = vunpack.c.h.b16 %v572
        %v725 = vunpack.c.l.b16 %v573
        %v726 = vunpack.c.h.b16 %v573
        %v727 = vunpack.c.l.b16 %v574
        %v728 = vunpack.c.h.b16 %v574
        %v729 = vunpack.c.l.b16 %v575
        %v730 = vunpack.c.h.b16 %v575
        %v731 = vunpack.c.l.b16 %v576
        %v732 = vunpack.c.h.b16 %v576
        %v733 = vunpack.c.l.b16 %v577
        %v734 = vunpack.c.h.b16 %v577
        %v735 = vunpack.c.l.b16 %v578
        %v736 = vunpack.c.h.b16 %v578
        %v737 = vunpack.c.l.b16 %v579
        %v738 = vunpack.c.h.b16 %v579
        %v739 = vunpack.c.l.b16 %v580
        %v740 = vunpack.c.h.b16 %v580
        %v741 = vpack.c.b16 %v679, %v677
        %v742 = vpack.c.b16 %v680, %v678
        %v743 = vpack.c.b16 %v683, %v681
        %v744 = vpack.c.b16 %v684, %v682
        %v745 = vpack.c.b16 %v687, %v685
        %v746 = vpack.c.b16 %v688, %v686
        %v747 = vpack.c.b16 %v691, %v689
        %v748 = vpack.c.b16 %v692, %v690
        %v749 = vpack.c.b16 %v695, %v693
        %v750 = vpack.c.b16 %v696, %v694
        %v751 = vpack.c.b16 %v699, %v697
        %v752 = vpack.c.b16 %v700, %v698
        %v753 = vpack.c.b16 %v703, %v701
        %v754 = vpack.c.b16 %v704, %v702
        %v755 = vpack.c.b16 %v707, %v705
        %v756 = vpack.c.b16 %v708, %v706
        %v757 = vpack.c.b16 %v711, %v709
        %v758 = vpack.c.b16 %v712, %v710
        %v759 = vpack.c.b16 %v715, %v713
        %v760 = vpack.c.b16 %v716, %v714
        %v761 = vpack.c.b16 %v719, %v717
        %v762 = vpack.c.b16 %v720, %v718
        %v763 = vpack.c.b16 %v723, %v721
        %v764 = vpack.c.b16 %v724, %v722
        %v765 = vpack.c.b16 %v727, %v725
        %v766 = vpack.c.b16 %v728, %v726
        %v767 = vpack.c.b16 %v731, %v729
        %v768 = vpack.c.b16 %v732, %v730
        %v769 = vpack.c.b16 %v735, %v733
        %v770 = vpack.c.b16 %v736, %v734
        %v771 = vpack.c.b16 %v739, %v737
        %v772 = vpack.c.b16 %v740, %v738
        %805 = vmatprep.subr.bf16.mxu0 %v742
        %806 = vmatpush1.bf16.msra.mxu0 %v741
        %807 = vmatprep.subr.bf16.mxu0 %v744
        %808 = vmatpush1.bf16.msra.mxu0 %v743
        %809 = vmatprep.subr.bf16.mxu0 %v746
        %810 = vmatpush1.bf16.msra.mxu0 %v745
        %811 = vmatprep.subr.bf16.mxu0 %v748
        %812 = vmatpush1.bf16.msra.mxu0 %v747
        %813 = vmatprep.subr.bf16.mxu0 %v750
        %814 = vmatpush1.bf16.msra.mxu0 %v749
        %815 = vmatprep.subr.bf16.mxu0 %v752
        %816 = vmatpush1.bf16.msra.mxu0 %v751
        %817 = vmatprep.subr.bf16.mxu0 %v754
        %818 = vmatpush1.bf16.msra.mxu0 %v753
        %819 = vmatprep.subr.bf16.mxu0 %v756
        %820 = vmatpush1.bf16.msra.mxu0 %v755
        %821 = vmatprep.subr.bf16.mxu0 %v758
        %822 = vmatpush1.bf16.msra.mxu0 %v757
        %823 = vmatprep.subr.bf16.mxu0 %v760
        %824 = vmatpush1.bf16.msra.mxu0 %v759
        %825 = vmatprep.subr.bf16.mxu0 %v762
        %826 = vmatpush1.bf16.msra.mxu0 %v761
        %827 = vmatprep.subr.bf16.mxu0 %v764
        %828 = vmatpush1.bf16.msra.mxu0 %v763
        %829 = vmatprep.subr.bf16.mxu0 %v766
        %830 = vmatpush1.bf16.msra.mxu0 %v765
        %831 = vmatprep.subr.bf16.mxu0 %v768
        %832 = vmatpush1.bf16.msra.mxu0 %v767
        %833 = vmatprep.subr.bf16.mxu0 %v770
        %834 = vmatpush1.bf16.msra.mxu0 %v769
        %835 = vmatprep.subr.bf16.mxu0 %v772
        %836 = vmatpush1.bf16.msra.mxu0 %v771
        %837 = vmatprep.mubr.bf16.mxu0 %v614
        %838 = vmatmul.mubr.bf16.gmra.mrb[0].mxu0 %v613
        %v839 = vpop.f32.mrb[0].mxu0
        %v840 = vadd.f32 0.0, %v839
        %v841 = vpop.f32.mrb[0].mxu0
        %v842 = vadd.f32 0.0, %v841
        %v843 = vpop.f32.mrb[0].mxu0
        %v844 = vadd.f32 0.0, %v843
        %v845 = vpop.f32.mrb[0].mxu0
        %v846 = vadd.f32 0.0, %v845
        %847 = vmatprep.mubr.bf16.mxu0 %v616
        %848 = vmatmul.mubr.bf16.gmra.mrb[0].mxu0 %v615
        %v849 = vpop.f32.mrb[0].mxu0
        %v850 = vadd.f32 0.0, %v849
        %v851 = vpop.f32.mrb[0].mxu0
        %v852 = vadd.f32 0.0, %v851
        %v853 = vpop.f32.mrb[0].mxu0
        %v854 = vadd.f32 0.0, %v853
        %v855 = vpop.f32.mrb[0].mxu0
        %v856 = vadd.f32 0.0, %v855
        %857 = vmatprep.mubr.bf16.mxu0 %v618
        %858 = vmatmul.mubr.bf16.gmra.mrb[0].mxu0 %v617
        %v859 = vpop.f32.mrb[0].mxu0
        %v860 = vadd.f32 0.0, %v859
        %v861 = vpop.f32.mrb[0].mxu0
        %v862 = vadd.f32 0.0, %v861
        %v863 = vpop.f32.mrb[0].mxu0
        %v864 = vadd.f32 0.0, %v863
        %v865 = vpop.f32.mrb[0].mxu0
        %v866 = vadd.f32 0.0, %v865
        %867 = vmatprep.mubr.bf16.mxu0 %v620
        %868 = vmatmul.mubr.bf16.gmra.mrb[0].mxu0 %v619
        %v869 = vpop.f32.mrb[0].mxu0
        %v870 = vadd.f32 0.0, %v869
        %v871 = vpop.f32.mrb[0].mxu0
        %v872 = vadd.f32 0.0, %v871
        %v873 = vpop.f32.mrb[0].mxu0
        %v874 = vadd.f32 0.0, %v873
        %v875 = vpop.f32.mrb[0].mxu0
        %v876 = vadd.f32 0.0, %v875
        %877 = vmatprep.mubr.bf16.mxu0 %v622
        %878 = vmatmul.mubr.bf16.gmra.mrb[0].mxu0 %v621
        %v879 = vpop.f32.mrb[0].mxu0
        %v880 = vadd.f32 0.0, %v879
        %v881 = vpop.f32.mrb[0].mxu0
        %v882 = vadd.f32 0.0, %v881
        %v883 = vpop.f32.mrb[0].mxu0
        %v884 = vadd.f32 0.0, %v883
        %v885 = vpop.f32.mrb[0].mxu0
        %v886 = vadd.f32 0.0, %v885
        %887 = vmatprep.mubr.bf16.mxu0 %v624
        %888 = vmatmul.mubr.bf16.gmra.mrb[0].mxu0 %v623
        %v889 = vpop.f32.mrb[0].mxu0
        %v890 = vadd.f32 0.0, %v889
        %v891 = vpop.f32.mrb[0].mxu0
        %v892 = vadd.f32 0.0, %v891
        %v893 = vpop.f32.mrb[0].mxu0
        %v894 = vadd.f32 0.0, %v893
        %v895 = vpop.f32.mrb[0].mxu0
        %v896 = vadd.f32 0.0, %v895
        %897 = vmatprep.mubr.bf16.mxu0 %v626
        %898 = vmatmul.mubr.bf16.gmra.mrb[0].mxu0 %v625
        %v899 = vpop.f32.mrb[0].mxu0
        %v900 = vadd.f32 0.0, %v899
        %v901 = vpop.f32.mrb[0].mxu0
        %v902 = vadd.f32 0.0, %v901
        %v903 = vpop.f32.mrb[0].mxu0
        %v904 = vadd.f32 0.0, %v903
        %v905 = vpop.f32.mrb[0].mxu0
        %v906 = vadd.f32 0.0, %v905
        %907 = vmatprep.mubr.bf16.mxu0 %v628
        %908 = vmatmul.mubr.bf16.gmra.mrb[0].mxu0 %v627
        %v909 = vpop.f32.mrb[0].mxu0
        %v910 = vadd.f32 0.0, %v909
        %v911 = vpop.f32.mrb[0].mxu0
        %v912 = vadd.f32 0.0, %v911
        %v913 = vpop.f32.mrb[0].mxu0
        %v914 = vadd.f32 0.0, %v913
        %v915 = vpop.f32.mrb[0].mxu0
        %v916 = vadd.f32 0.0, %v915
        %917 = vdwg.mxu0
        %v934 = vunpack.c.l.b16 %v297
        %v935 = vunpack.c.h.b16 %v297
        %v936 = vunpack.c.l.b16 %v298
        %v937 = vunpack.c.h.b16 %v298
        %v938 = vunpack.c.l.b16 %v299
        %v939 = vunpack.c.h.b16 %v299
        %v940 = vunpack.c.l.b16 %v300
        %v941 = vunpack.c.h.b16 %v300
        %v942 = vunpack.c.l.b16 %v301
        %v943 = vunpack.c.h.b16 %v301
        %v944 = vunpack.c.l.b16 %v302
        %v945 = vunpack.c.h.b16 %v302
        %v946 = vunpack.c.l.b16 %v303
        %v947 = vunpack.c.h.b16 %v303
        %v948 = vunpack.c.l.b16 %v304
        %v949 = vunpack.c.h.b16 %v304
        %v950 = vunpack.c.l.b16 %v305
        %v951 = vunpack.c.h.b16 %v305
        %v952 = vunpack.c.l.b16 %v306
        %v953 = vunpack.c.h.b16 %v306
        %v954 = vunpack.c.l.b16 %v307
        %v955 = vunpack.c.h.b16 %v307
        %v956 = vunpack.c.l.b16 %v308
        %v957 = vunpack.c.h.b16 %v308
        %v958 = vunpack.c.l.b16 %v309
        %v959 = vunpack.c.h.b16 %v309
        %v960 = vunpack.c.l.b16 %v310
        %v961 = vunpack.c.h.b16 %v310
        %v962 = vunpack.c.l.b16 %v311
        %v963 = vunpack.c.h.b16 %v311
        %v964 = vunpack.c.l.b16 %v312
        %v965 = vunpack.c.h.b16 %v312
        %v966 = vpack.c.b16 %v936, %v934
        %v967 = vpack.c.b16 %v937, %v935
        %v968 = vpack.c.b16 %v940, %v938
        %v969 = vpack.c.b16 %v941, %v939
        %v970 = vpack.c.b16 %v944, %v942
        %v971 = vpack.c.b16 %v945, %v943
        %v972 = vpack.c.b16 %v948, %v946
        %v973 = vpack.c.b16 %v949, %v947
        %v974 = vpack.c.b16 %v952, %v950
        %v975 = vpack.c.b16 %v953, %v951
        %v976 = vpack.c.b16 %v956, %v954
        %v977 = vpack.c.b16 %v957, %v955
        %v978 = vpack.c.b16 %v960, %v958
        %v979 = vpack.c.b16 %v961, %v959
        %v980 = vpack.c.b16 %v964, %v962
        %v981 = vpack.c.b16 %v965, %v963
        %v1030 = vunpack.c.l.b16 %v313
        %v1031 = vunpack.c.h.b16 %v313
        %v1032 = vunpack.c.l.b16 %v314
        %v1033 = vunpack.c.h.b16 %v314
        %v1034 = vunpack.c.l.b16 %v315
        %v1035 = vunpack.c.h.b16 %v315
        %v1036 = vunpack.c.l.b16 %v316
        %v1037 = vunpack.c.h.b16 %v316
        %v1038 = vunpack.c.l.b16 %v317
        %v1039 = vunpack.c.h.b16 %v317
        %v1040 = vunpack.c.l.b16 %v318
        %v1041 = vunpack.c.h.b16 %v318
        %v1042 = vunpack.c.l.b16 %v319
        %v1043 = vunpack.c.h.b16 %v319
        %v1044 = vunpack.c.l.b16 %v320
        %v1045 = vunpack.c.h.b16 %v320
        %v1046 = vunpack.c.l.b16 %v321
        %v1047 = vunpack.c.h.b16 %v321
        %v1048 = vunpack.c.l.b16 %v322
        %v1049 = vunpack.c.h.b16 %v322
        %v1050 = vunpack.c.l.b16 %v323
        %v1051 = vunpack.c.h.b16 %v323
        %v1052 = vunpack.c.l.b16 %v324
        %v1053 = vunpack.c.h.b16 %v324
        %v1054 = vunpack.c.l.b16 %v325
        %v1055 = vunpack.c.h.b16 %v325
        %v1056 = vunpack.c.l.b16 %v326
        %v1057 = vunpack.c.h.b16 %v326
        %v1058 = vunpack.c.l.b16 %v327
        %v1059 = vunpack.c.h.b16 %v327
        %v1060 = vunpack.c.l.b16 %v328
        %v1061 = vunpack.c.h.b16 %v328
        %v1062 = vunpack.c.l.b16 %v329
        %v1063 = vunpack.c.h.b16 %v329
        %v1064 = vunpack.c.l.b16 %v330
        %v1065 = vunpack.c.h.b16 %v330
        %v1066 = vunpack.c.l.b16 %v331
        %v1067 = vunpack.c.h.b16 %v331
        %v1068 = vunpack.c.l.b16 %v332
        %v1069 = vunpack.c.h.b16 %v332
        %v1070 = vunpack.c.l.b16 %v333
        %v1071 = vunpack.c.h.b16 %v333
        %v1072 = vunpack.c.l.b16 %v334
        %v1073 = vunpack.c.h.b16 %v334
        %v1074 = vunpack.c.l.b16 %v335
        %v1075 = vunpack.c.h.b16 %v335
        %v1076 = vunpack.c.l.b16 %v336
        %v1077 = vunpack.c.h.b16 %v336
        %v1078 = vunpack.c.l.b16 %v337
        %v1079 = vunpack.c.h.b16 %v337
        %v1080 = vunpack.c.l.b16 %v338
        %v1081 = vunpack.c.h.b16 %v338
        %v1082 = vunpack.c.l.b16 %v339
        %v1083 = vunpack.c.h.b16 %v339
        %v1084 = vunpack.c.l.b16 %v340
        %v1085 = vunpack.c.h.b16 %v340
        %v1086 = vunpack.c.l.b16 %v341
        %v1087 = vunpack.c.h.b16 %v341
        %v1088 = vunpack.c.l.b16 %v342
        %v1089 = vunpack.c.h.b16 %v342
        %v1090 = vunpack.c.l.b16 %v343
        %v1091 = vunpack.c.h.b16 %v343
        %v1092 = vunpack.c.l.b16 %v344
        %v1093 = vunpack.c.h.b16 %v344
        %v1094 = vpack.c.b16 %v1032, %v1030
        %v1095 = vpack.c.b16 %v1033, %v1031
        %v1096 = vpack.c.b16 %v1036, %v1034
        %v1097 = vpack.c.b16 %v1037, %v1035
        %v1098 = vpack.c.b16 %v1040, %v1038
        %v1099 = vpack.c.b16 %v1041, %v1039
        %v1100 = vpack.c.b16 %v1044, %v1042
        %v1101 = vpack.c.b16 %v1045, %v1043
        %v1102 = vpack.c.b16 %v1048, %v1046
        %v1103 = vpack.c.b16 %v1049, %v1047
        %v1104 = vpack.c.b16 %v1052, %v1050
        %v1105 = vpack.c.b16 %v1053, %v1051
        %v1106 = vpack.c.b16 %v1056, %v1054
        %v1107 = vpack.c.b16 %v1057, %v1055
        %v1108 = vpack.c.b16 %v1060, %v1058
        %v1109 = vpack.c.b16 %v1061, %v1059
        %v1110 = vpack.c.b16 %v1064, %v1062
        %v1111 = vpack.c.b16 %v1065, %v1063
        %v1112 = vpack.c.b16 %v1068, %v1066
        %v1113 = vpack.c.b16 %v1069, %v1067
        %v1114 = vpack.c.b16 %v1072, %v1070
        %v1115 = vpack.c.b16 %v1073, %v1071
        %v1116 = vpack.c.b16 %v1076, %v1074
        %v1117 = vpack.c.b16 %v1077, %v1075
        %v1118 = vpack.c.b16 %v1080, %v1078
        %v1119 = vpack.c.b16 %v1081, %v1079
        %v1120 = vpack.c.b16 %v1084, %v1082
        %v1121 = vpack.c.b16 %v1085, %v1083
        %v1122 = vpack.c.b16 %v1088, %v1086
        %v1123 = vpack.c.b16 %v1089, %v1087
        %v1124 = vpack.c.b16 %v1092, %v1090
        %v1125 = vpack.c.b16 %v1093, %v1091
        %1158 = vmatprep.subr.bf16.mxu0 %v1095
        %1159 = vmatpush1.bf16.msra.mxu0 %v1094
        %1160 = vmatprep.subr.bf16.mxu0 %v1097
        %1161 = vmatpush1.bf16.msra.mxu0 %v1096
        %1162 = vmatprep.subr.bf16.mxu0 %v1099
        %1163 = vmatpush1.bf16.msra.mxu0 %v1098
        %1164 = vmatprep.subr.bf16.mxu0 %v1101
        %1165 = vmatpush1.bf16.msra.mxu0 %v1100
        %1166 = vmatprep.subr.bf16.mxu0 %v1103
        %1167 = vmatpush1.bf16.msra.mxu0 %v1102
        %1168 = vmatprep.subr.bf16.mxu0 %v1105
        %1169 = vmatpush1.bf16.msra.mxu0 %v1104
        %1170 = vmatprep.subr.bf16.mxu0 %v1107
        %1171 = vmatpush1.bf16.msra.mxu0 %v1106
        %1172 = vmatprep.subr.bf16.mxu0 %v1109
        %1173 = vmatpush1.bf16.msra.mxu0 %v1108
        %1174 = vmatprep.subr.bf16.mxu0 %v1111
        %1175 = vmatpush1.bf16.msra.mxu0 %v1110
        %1176 = vmatprep.subr.bf16.mxu0 %v1113
        %1177 = vmatpush1.bf16.msra.mxu0 %v1112
        %1178 = vmatprep.subr.bf16.mxu0 %v1115
        %1179 = vmatpush1.bf16.msra.mxu0 %v1114
        %1180 = vmatprep.subr.bf16.mxu0 %v1117
        %1181 = vmatpush1.bf16.msra.mxu0 %v1116
        %1182 = vmatprep.subr.bf16.mxu0 %v1119
        %1183 = vmatpush1.bf16.msra.mxu0 %v1118
        %1184 = vmatprep.subr.bf16.mxu0 %v1121
        %1185 = vmatpush1.bf16.msra.mxu0 %v1120
        %1186 = vmatprep.subr.bf16.mxu0 %v1123
        %1187 = vmatpush1.bf16.msra.mxu0 %v1122
        %1188 = vmatprep.subr.bf16.mxu0 %v1125
        %1189 = vmatpush1.bf16.msra.mxu0 %v1124
        %1190 = vmatprep.mubr.bf16.mxu0 %v967
        %1191 = vmatmul.mubr.bf16.gmra.mrb[0].mxu0 %v966
        %v1192 = vpop.f32.mrb[0].mxu0
        %v1193 = vadd.f32 %v840, %v1192
        %v1194 = vpop.f32.mrb[0].mxu0
        %v1195 = vadd.f32 %v842, %v1194
        %v1196 = vpop.f32.mrb[0].mxu0
        %v1197 = vadd.f32 %v844, %v1196
        %v1198 = vpop.f32.mrb[0].mxu0
        %v1199 = vadd.f32 %v846, %v1198
        %1200 = vmatprep.mubr.bf16.mxu0 %v969
        %1201 = vmatmul.mubr.bf16.gmra.mrb[0].mxu0 %v968
        %v1202 = vpop.f32.mrb[0].mxu0
        %v1203 = vadd.f32 %v850, %v1202
        %v1204 = vpop.f32.mrb[0].mxu0
        %v1205 = vadd.f32 %v852, %v1204
        %v1206 = vpop.f32.mrb[0].mxu0
        %v1207 = vadd.f32 %v854, %v1206
        %v1208 = vpop.f32.mrb[0].mxu0
        %v1209 = vadd.f32 %v856, %v1208
        %1210 = vmatprep.mubr.bf16.mxu0 %v971
        %1211 = vmatmul.mubr.bf16.gmra.mrb[0].mxu0 %v970
        %v1212 = vpop.f32.mrb[0].mxu0
        %v1213 = vadd.f32 %v860, %v1212
        %v1214 = vpop.f32.mrb[0].mxu0
        %v1215 = vadd.f32 %v862, %v1214
        %v1216 = vpop.f32.mrb[0].mxu0
        %v1217 = vadd.f32 %v864, %v1216
        %v1218 = vpop.f32.mrb[0].mxu0
        %v1219 = vadd.f32 %v866, %v1218
        %1220 = vmatprep.mubr.bf16.mxu0 %v973
        %1221 = vmatmul.mubr.bf16.gmra.mrb[0].mxu0 %v972
        %v1222 = vpop.f32.mrb[0].mxu0
        %v1223 = vadd.f32 %v870, %v1222
        %v1224 = vpop.f32.mrb[0].mxu0
        %v1225 = vadd.f32 %v872, %v1224
        %v1226 = vpop.f32.mrb[0].mxu0
        %v1227 = vadd.f32 %v874, %v1226
        %v1228 = vpop.f32.mrb[0].mxu0
        %v1229 = vadd.f32 %v876, %v1228
        %1230 = vmatprep.mubr.bf16.mxu0 %v975
        %1231 = vmatmul.mubr.bf16.gmra.mrb[0].mxu0 %v974
        %v1232 = vpop.f32.mrb[0].mxu0
        %v1233 = vadd.f32 %v880, %v1232
        %v1234 = vpop.f32.mrb[0].mxu0
        %v1235 = vadd.f32 %v882, %v1234
        %v1236 = vpop.f32.mrb[0].mxu0
        %v1237 = vadd.f32 %v884, %v1236
        %v1238 = vpop.f32.mrb[0].mxu0
        %v1239 = vadd.f32 %v886, %v1238
        %1240 = vmatprep.mubr.bf16.mxu0 %v977
        %1241 = vmatmul.mubr.bf16.gmra.mrb[0].mxu0 %v976
        %v1242 = vpop.f32.mrb[0].mxu0
        %v1243 = vadd.f32 %v890, %v1242
        %v1244 = vpop.f32.mrb[0].mxu0
        %v1245 = vadd.f32 %v892, %v1244
        %v1246 = vpop.f32.mrb[0].mxu0
        %v1247 = vadd.f32 %v894, %v1246
        %v1248 = vpop.f32.mrb[0].mxu0
        %v1249 = vadd.f32 %v896, %v1248
        %1250 = vmatprep.mubr.bf16.mxu0 %v979
        %1251 = vmatmul.mubr.bf16.gmra.mrb[0].mxu0 %v978
        %v1252 = vpop.f32.mrb[0].mxu0
        %v1253 = vadd.f32 %v900, %v1252
        %v1254 = vpop.f32.mrb[0].mxu0
        %v1255 = vadd.f32 %v902, %v1254
        %v1256 = vpop.f32.mrb[0].mxu0
        %v1257 = vadd.f32 %v904, %v1256
        %v1258 = vpop.f32.mrb[0].mxu0
        %v1259 = vadd.f32 %v906, %v1258
        %1260 = vmatprep.mubr.bf16.mxu0 %v981
        %1261 = vmatmul.mubr.bf16.gmra.mrb[0].mxu0 %v980
        %v1262 = vpop.f32.mrb[0].mxu0
        %v1263 = vadd.f32 %v910, %v1262
        %v1264 = vpop.f32.mrb[0].mxu0
        %v1265 = vadd.f32 %v912, %v1264
        %v1266 = vpop.f32.mrb[0].mxu0
        %v1267 = vadd.f32 %v914, %v1266
        %v1268 = vpop.f32.mrb[0].mxu0
        %v1269 = vadd.f32 %v916, %v1268
        %1270 = vdwg.mxu0
        %v1271 = vld [vmem:[%s296] sm:$0xee]
        %v1272 = vld [vmem:[%s296 + $0x18] sm:$0xee]
        %v1273 = vld [vmem:[%s296 + $0x30] sm:$0xee]
        %v1274 = vld [vmem:[%s296 + $0x48] sm:$0xee]
        %v1275 = vld [vmem:[%s296 + $0x60] sm:$0xee]
        %v1276 = vld [vmem:[%s296 + $0x78] sm:$0xee]
        %v1277 = vld [vmem:[%s296 + $0x90] sm:$0xee]
        %v1278 = vld [vmem:[%s296 + $0xa8] sm:$0xee]
        %vm1295 = vcmask 1042432
        %vm1296 = vcmask 1046532
        %vm1297 = vmor %vm1295, %vm1296
        %v1298 = vrot.slane %v1271, 5
        %v1299 = vrot.slane %v1298, 4
        %v1300 = vrot.slane %v298, 5
        %v1301 = vsel %vm1297, %v1299, %v1300
        %v1302 = vrot.slane %v1300, 4
        %v1303 = vrot.slane %v345, 5
        %v1304 = vsel %vm1297, %v1302, %v1303
        %v1305 = vrot.slane %v1272, 5
        %v1306 = vrot.slane %v1305, 4
        %v1307 = vrot.slane %v300, 5
        %v1308 = vsel %vm1297, %v1306, %v1307
        %v1309 = vrot.slane %v1307, 4
        %v1310 = vrot.slane %v346, 5
        %v1311 = vsel %vm1297, %v1309, %v1310
        %v1312 = vrot.slane %v1273, 5
        %v1313 = vrot.slane %v1312, 4
        %v1314 = vrot.slane %v302, 5
        %v1315 = vsel %vm1297, %v1313, %v1314
        %v1316 = vrot.slane %v1314, 4
        %v1317 = vrot.slane %v347, 5
        %v1318 = vsel %vm1297, %v1316, %v1317
        %v1319 = vrot.slane %v1274, 5
        %v1320 = vrot.slane %v1319, 4
        %v1321 = vrot.slane %v304, 5
        %v1322 = vsel %vm1297, %v1320, %v1321
        %v1323 = vrot.slane %v1321, 4
        %v1324 = vrot.slane %v348, 5
        %v1325 = vsel %vm1297, %v1323, %v1324
        %v1326 = vrot.slane %v1275, 5
        %v1327 = vrot.slane %v1326, 4
        %v1328 = vrot.slane %v306, 5
        %v1329 = vsel %vm1297, %v1327, %v1328
        %v1330 = vrot.slane %v1328, 4
        %v1331 = vrot.slane %v349, 5
        %v1332 = vsel %vm1297, %v1330, %v1331
        %v1333 = vrot.slane %v1276, 5
        %v1334 = vrot.slane %v1333, 4
        %v1335 = vrot.slane %v308, 5
        %v1336 = vsel %vm1297, %v1334, %v1335
        %v1337 = vrot.slane %v1335, 4
        %v1338 = vrot.slane %v350, 5
        %v1339 = vsel %vm1297, %v1337, %v1338
        %v1340 = vrot.slane %v1277, 5
        %v1341 = vrot.slane %v1340, 4
        %v1342 = vrot.slane %v310, 5
        %v1343 = vsel %vm1297, %v1341, %v1342
        %v1344 = vrot.slane %v1342, 4
        %v1345 = vrot.slane %v351, 5
        %v1346 = vsel %vm1297, %v1344, %v1345
        %v1347 = vrot.slane %v1278, 5
        %v1348 = vrot.slane %v1347, 4
        %v1349 = vrot.slane %v312, 5
        %v1350 = vsel %vm1297, %v1348, %v1349
        %v1351 = vrot.slane %v1349, 4
        %v1352 = vrot.slane %v352, 5
        %v1353 = vsel %vm1297, %v1351, %v1352
        %s1354 = scalar_lea.vmem [#allocation2], 512
        %v1355 = vld [vmem:[%s1354] sm:$0xff]
        %v1356 = vld [vmem:[%s1354 + $0x8] sm:$0xff]
        %v1357 = vld [vmem:[%s1354 + $0x10] sm:$0xff]
        %v1358 = vld [vmem:[%s1354 + $0x18] sm:$0xff]
        %v1359 = vld [vmem:[%s1354 + $0x20] sm:$0xff]
        %v1360 = vld [vmem:[%s1354 + $0x28] sm:$0xff]
        %v1361 = vld [vmem:[%s1354 + $0x30] sm:$0xff]
        %v1362 = vld [vmem:[%s1354 + $0x38] sm:$0xff]
        %v1363 = vld [vmem:[%s1354 + $0x40] sm:$0xff]
        %v1364 = vld [vmem:[%s1354 + $0x48] sm:$0xff]
        %v1365 = vld [vmem:[%s1354 + $0x50] sm:$0xff]
        %v1366 = vld [vmem:[%s1354 + $0x58] sm:$0xff]
        %v1367 = vld [vmem:[%s1354 + $0x60] sm:$0xff]
        %v1368 = vld [vmem:[%s1354 + $0x68] sm:$0xff]
        %v1369 = vld [vmem:[%s1354 + $0x70] sm:$0xff]
        %v1370 = vld [vmem:[%s1354 + $0x78] sm:$0xff]
        %v1371 = vld [vmem:[%s1354 + $0x80] sm:$0xff]
        %v1372 = vld [vmem:[%s1354 + $0x88] sm:$0xff]
        %v1373 = vld [vmem:[%s1354 + $0x90] sm:$0xff]
        %v1374 = vld [vmem:[%s1354 + $0x98] sm:$0xff]
        %v1375 = vld [vmem:[%s1354 + $0xa0] sm:$0xff]
        %v1376 = vld [vmem:[%s1354 + $0xa8] sm:$0xff]
        %v1377 = vld [vmem:[%s1354 + $0xb0] sm:$0xff]
        %v1378 = vld [vmem:[%s1354 + $0xb8] sm:$0xff]
        %v1379 = vld [vmem:[%s1354 + $0xc0] sm:$0xff]
        %v1380 = vld [vmem:[%s1354 + $0xc8] sm:$0xff]
        %v1381 = vld [vmem:[%s1354 + $0xd0] sm:$0xff]
        %v1382 = vld [vmem:[%s1354 + $0xd8] sm:$0xff]
        %v1383 = vld [vmem:[%s1354 + $0xe0] sm:$0xff]
        %v1384 = vld [vmem:[%s1354 + $0xe8] sm:$0xff]
        %v1385 = vld [vmem:[%s1354 + $0xf0] sm:$0xff]
        %v1386 = vld [vmem:[%s1354 + $0xf8] sm:$0xff]
        %v1387 = vunpack.c.l.b16 %v1301
        %v1388 = vunpack.c.h.b16 %v1301
        %v1389 = vunpack.c.l.b16 %v1304
        %v1390 = vunpack.c.h.b16 %v1304
        %v1391 = vunpack.c.l.b16 %v1308
        %v1392 = vunpack.c.h.b16 %v1308
        %v1393 = vunpack.c.l.b16 %v1311
        %v1394 = vunpack.c.h.b16 %v1311
        %v1395 = vunpack.c.l.b16 %v1315
        %v1396 = vunpack.c.h.b16 %v1315
        %v1397 = vunpack.c.l.b16 %v1318
        %v1398 = vunpack.c.h.b16 %v1318
        %v1399 = vunpack.c.l.b16 %v1322
        %v1400 = vunpack.c.h.b16 %v1322
        %v1401 = vunpack.c.l.b16 %v1325
        %v1402 = vunpack.c.h.b16 %v1325
        %v1403 = vunpack.c.l.b16 %v1329
        %v1404 = vunpack.c.h.b16 %v1329
        %v1405 = vunpack.c.l.b16 %v1332
        %v1406 = vunpack.c.h.b16 %v1332
        %v1407 = vunpack.c.l.b16 %v1336
        %v1408 = vunpack.c.h.b16 %v1336
        %v1409 = vunpack.c.l.b16 %v1339
        %v1410 = vunpack.c.h.b16 %v1339
        %v1411 = vunpack.c.l.b16 %v1343
        %v1412 = vunpack.c.h.b16 %v1343
        %v1413 = vunpack.c.l.b16 %v1346
        %v1414 = vunpack.c.h.b16 %v1346
        %v1415 = vunpack.c.l.b16 %v1350
        %v1416 = vunpack.c.h.b16 %v1350
        %v1417 = vunpack.c.l.b16 %v1353
        %v1418 = vunpack.c.h.b16 %v1353
        %v1419 = vpack.c.b16 %v1389, %v1387
        %v1420 = vpack.c.b16 %v1390, %v1388
        %v1421 = vpack.c.b16 %v1393, %v1391
        %v1422 = vpack.c.b16 %v1394, %v1392
        %v1423 = vpack.c.b16 %v1397, %v1395
        %v1424 = vpack.c.b16 %v1398, %v1396
        %v1425 = vpack.c.b16 %v1401, %v1399
        %v1426 = vpack.c.b16 %v1402, %v1400
        %v1427 = vpack.c.b16 %v1405, %v1403
        %v1428 = vpack.c.b16 %v1406, %v1404
        %v1429 = vpack.c.b16 %v1409, %v1407
        %v1430 = vpack.c.b16 %v1410, %v1408
        %v1431 = vpack.c.b16 %v1413, %v1411
        %v1432 = vpack.c.b16 %v1414, %v1412
        %v1433 = vpack.c.b16 %v1417, %v1415
        %v1434 = vpack.c.b16 %v1418, %v1416
        %v1483 = vunpack.c.l.b16 %v1355
        %v1484 = vunpack.c.h.b16 %v1355
        %v1485 = vunpack.c.l.b16 %v1356
        %v1486 = vunpack.c.h.b16 %v1356
        %v1487 = vunpack.c.l.b16 %v1357
        %v1488 = vunpack.c.h.b16 %v1357
        %v1489 = vunpack.c.l.b16 %v1358
        %v1490 = vunpack.c.h.b16 %v1358
        %v1491 = vunpack.c.l.b16 %v1359
        %v1492 = vunpack.c.h.b16 %v1359
        %v1493 = vunpack.c.l.b16 %v1360
        %v1494 = vunpack.c.h.b16 %v1360
        %v1495 = vunpack.c.l.b16 %v1361
        %v1496 = vunpack.c.h.b16 %v1361
        %v1497 = vunpack.c.l.b16 %v1362
        %v1498 = vunpack.c.h.b16 %v1362
        %v1499 = vunpack.c.l.b16 %v1363
        %v1500 = vunpack.c.h.b16 %v1363
        %v1501 = vunpack.c.l.b16 %v1364
        %v1502 = vunpack.c.h.b16 %v1364
        %v1503 = vunpack.c.l.b16 %v1365
        %v1504 = vunpack.c.h.b16 %v1365
        %v1505 = vunpack.c.l.b16 %v1366
        %v1506 = vunpack.c.h.b16 %v1366
        %v1507 = vunpack.c.l.b16 %v1367
        %v1508 = vunpack.c.h.b16 %v1367
        %v1509 = vunpack.c.l.b16 %v1368
        %v1510 = vunpack.c.h.b16 %v1368
        %v1511 = vunpack.c.l.b16 %v1369
        %v1512 = vunpack.c.h.b16 %v1369
        %v1513 = vunpack.c.l.b16 %v1370
        %v1514 = vunpack.c.h.b16 %v1370
        %v1515 = vunpack.c.l.b16 %v1371
        %v1516 = vunpack.c.h.b16 %v1371
        %v1517 = vunpack.c.l.b16 %v1372
        %v1518 = vunpack.c.h.b16 %v1372
        %v1519 = vunpack.c.l.b16 %v1373
        %v1520 = vunpack.c.h.b16 %v1373
        %v1521 = vunpack.c.l.b16 %v1374
        %v1522 = vunpack.c.h.b16 %v1374
        %v1523 = vunpack.c.l.b16 %v1375
        %v1524 = vunpack.c.h.b16 %v1375
        %v1525 = vunpack.c.l.b16 %v1376
        %v1526 = vunpack.c.h.b16 %v1376
        %v1527 = vunpack.c.l.b16 %v1377
        %v1528 = vunpack.c.h.b16 %v1377
        %v1529 = vunpack.c.l.b16 %v1378
        %v1530 = vunpack.c.h.b16 %v1378
        %v1531 = vunpack.c.l.b16 %v1379
        %v1532 = vunpack.c.h.b16 %v1379
        %v1533 = vunpack.c.l.b16 %v1380
        %v1534 = vunpack.c.h.b16 %v1380
        %v1535 = vunpack.c.l.b16 %v1381
        %v1536 = vunpack.c.h.b16 %v1381
        %v1537 = vunpack.c.l.b16 %v1382
        %v1538 = vunpack.c.h.b16 %v1382
        %v1539 = vunpack.c.l.b16 %v1383
        %v1540 = vunpack.c.h.b16 %v1383
        %v1541 = vunpack.c.l.b16 %v1384
        %v1542 = vunpack.c.h.b16 %v1384
        %v1543 = vunpack.c.l.b16 %v1385
        %v1544 = vunpack.c.h.b16 %v1385
        %v1545 = vunpack.c.l.b16 %v1386
        %v1546 = vunpack.c.h.b16 %v1386
        %v1547 = vpack.c.b16 %v1485, %v1483
        %v1548 = vpack.c.b16 %v1486, %v1484
        %v1549 = vpack.c.b16 %v1489, %v1487
        %v1550 = vpack.c.b16 %v1490, %v1488
        %v1551 = vpack.c.b16 %v1493, %v1491
        %v1552 = vpack.c.b16 %v1494, %v1492
        %v1553 = vpack.c.b16 %v1497, %v1495
        %v1554 = vpack.c.b16 %v1498, %v1496
        %v1555 = vpack.c.b16 %v1501, %v1499
        %v1556 = vpack.c.b16 %v1502, %v1500
        %v1557 = vpack.c.b16 %v1505, %v1503
        %v1558 = vpack.c.b16 %v1506, %v1504
        %v1559 = vpack.c.b16 %v1509, %v1507
        %v1560 = vpack.c.b16 %v1510, %v1508
        %v1561 = vpack.c.b16 %v1513, %v1511
        %v1562 = vpack.c.b16 %v1514, %v1512
        %v1563 = vpack.c.b16 %v1517, %v1515
        %v1564 = vpack.c.b16 %v1518, %v1516
        %v1565 = vpack.c.b16 %v1521, %v1519
        %v1566 = vpack.c.b16 %v1522, %v1520
        %v1567 = vpack.c.b16 %v1525, %v1523
        %v1568 = vpack.c.b16 %v1526, %v1524
        %v1569 = vpack.c.b16 %v1529, %v1527
        %v1570 = vpack.c.b16 %v1530, %v1528
        %v1571 = vpack.c.b16 %v1533, %v1531
        %v1572 = vpack.c.b16 %v1534, %v1532
        %v1573 = vpack.c.b16 %v1537, %v1535
        %v1574 = vpack.c.b16 %v1538, %v1536
        %v1575 = vpack.c.b16 %v1541, %v1539
        %v1576 = vpack.c.b16 %v1542, %v1540
        %v1577 = vpack.c.b16 %v1545, %v1543
        %v1578 = vpack.c.b16 %v1546, %v1544
        %1611 = vmatprep.subr.bf16.mxu0 %v1548
        %1612 = vmatpush1.bf16.msra.mxu0 %v1547
        %1613 = vmatprep.subr.bf16.mxu0 %v1550
        %1614 = vmatpush1.bf16.msra.mxu0 %v1549
        %1615 = vmatprep.subr.bf16.mxu0 %v1552
        %1616 = vmatpush1.bf16.msra.mxu0 %v1551
        %1617 = vmatprep.subr.bf16.mxu0 %v1554
        %1618 = vmatpush1.bf16.msra.mxu0 %v1553
        %1619 = vmatprep.subr.bf16.mxu0 %v1556
        %1620 = vmatpush1.bf16.msra.mxu0 %v1555
        %1621 = vmatprep.subr.bf16.mxu0 %v1558
        %1622 = vmatpush1.bf16.msra.mxu0 %v1557
        %1623 = vmatprep.subr.bf16.mxu0 %v1560
        %1624 = vmatpush1.bf16.msra.mxu0 %v1559
        %1625 = vmatprep.subr.bf16.mxu0 %v1562
        %1626 = vmatpush1.bf16.msra.mxu0 %v1561
        %1627 = vmatprep.subr.bf16.mxu0 %v1564
        %1628 = vmatpush1.bf16.msra.mxu0 %v1563
        %1629 = vmatprep.subr.bf16.mxu0 %v1566
        %1630 = vmatpush1.bf16.msra.mxu0 %v1565
        %1631 = vmatprep.subr.bf16.mxu0 %v1568
        %1632 = vmatpush1.bf16.msra.mxu0 %v1567
        %1633 = vmatprep.subr.bf16.mxu0 %v1570
        %1634 = vmatpush1.bf16.msra.mxu0 %v1569
        %1635 = vmatprep.subr.bf16.mxu0 %v1572
        %1636 = vmatpush1.bf16.msra.mxu0 %v1571
        %1637 = vmatprep.subr.bf16.mxu0 %v1574
        %1638 = vmatpush1.bf16.msra.mxu0 %v1573
        %1639 = vmatprep.subr.bf16.mxu0 %v1576
        %1640 = vmatpush1.bf16.msra.mxu0 %v1575
        %1641 = vmatprep.subr.bf16.mxu0 %v1578
        %1642 = vmatpush1.bf16.msra.mxu0 %v1577
        %1643 = vmatprep.mubr.bf16.mxu0 %v1420
        %1644 = vmatmul.mubr.bf16.gmra.mrb[0].mxu0 %v1419
        %v1645 = vpop.f32.mrb[0].mxu0
        %v1646 = vadd.f32 0.0, %v1645
        %v1647 = vpop.f32.mrb[0].mxu0
        %v1648 = vadd.f32 0.0, %v1647
        %v1649 = vpop.f32.mrb[0].mxu0
        %v1650 = vadd.f32 0.0, %v1649
        %v1651 = vpop.f32.mrb[0].mxu0
        %v1652 = vadd.f32 0.0, %v1651
        %1653 = vmatprep.mubr.bf16.mxu0 %v1422
        %1654 = vmatmul.mubr.bf16.gmra.mrb[0].mxu0 %v1421
        %v1655 = vpop.f32.mrb[0].mxu0
        %v1656 = vadd.f32 0.0, %v1655
        %v1657 = vpop.f32.mrb[0].mxu0
        %v1658 = vadd.f32 0.0, %v1657
        %v1659 = vpop.f32.mrb[0].mxu0
        %v1660 = vadd.f32 0.0, %v1659
        %v1661 = vpop.f32.mrb[0].mxu0
        %v1662 = vadd.f32 0.0, %v1661
        %1663 = vmatprep.mubr.bf16.mxu0 %v1424
        %1664 = vmatmul.mubr.bf16.gmra.mrb[0].mxu0 %v1423
        %v1665 = vpop.f32.mrb[0].mxu0
        %v1666 = vadd.f32 0.0, %v1665
        %v1667 = vpop.f32.mrb[0].mxu0
        %v1668 = vadd.f32 0.0, %v1667
        %v1669 = vpop.f32.mrb[0].mxu0
        %v1670 = vadd.f32 0.0, %v1669
        %v1671 = vpop.f32.mrb[0].mxu0
        %v1672 = vadd.f32 0.0, %v1671
        %1673 = vmatprep.mubr.bf16.mxu0 %v1426
        %1674 = vmatmul.mubr.bf16.gmra.mrb[0].mxu0 %v1425
        %v1675 = vpop.f32.mrb[0].mxu0
        %v1676 = vadd.f32 0.0, %v1675
        %v1677 = vpop.f32.mrb[0].mxu0
        %v1678 = vadd.f32 0.0, %v1677
        %v1679 = vpop.f32.mrb[0].mxu0
        %v1680 = vadd.f32 0.0, %v1679
        %v1681 = vpop.f32.mrb[0].mxu0
        %v1682 = vadd.f32 0.0, %v1681
        %1683 = vmatprep.mubr.bf16.mxu0 %v1428
        %1684 = vmatmul.mubr.bf16.gmra.mrb[0].mxu0 %v1427
        %v1685 = vpop.f32.mrb[0].mxu0
        %v1686 = vadd.f32 0.0, %v1685
        %v1687 = vpop.f32.mrb[0].mxu0
        %v1688 = vadd.f32 0.0, %v1687
        %v1689 = vpop.f32.mrb[0].mxu0
        %v1690 = vadd.f32 0.0, %v1689
        %v1691 = vpop.f32.mrb[0].mxu0
        %v1692 = vadd.f32 0.0, %v1691
        %1693 = vmatprep.mubr.bf16.mxu0 %v1430
        %1694 = vmatmul.mubr.bf16.gmra.mrb[0].mxu0 %v1429
        %v1695 = vpop.f32.mrb[0].mxu0
        %v1696 = vadd.f32 0.0, %v1695
        %v1697 = vpop.f32.mrb[0].mxu0
        %v1698 = vadd.f32 0.0, %v1697
        %v1699 = vpop.f32.mrb[0].mxu0
        %v1700 = vadd.f32 0.0, %v1699
        %v1701 = vpop.f32.mrb[0].mxu0
        %v1702 = vadd.f32 0.0, %v1701
        %1703 = vmatprep.mubr.bf16.mxu0 %v1432
        %1704 = vmatmul.mubr.bf16.gmra.mrb[0].mxu0 %v1431
        %v1705 = vpop.f32.mrb[0].mxu0
        %v1706 = vadd.f32 0.0, %v1705
        %v1707 = vpop.f32.mrb[0].mxu0
        %v1708 = vadd.f32 0.0, %v1707
        %v1709 = vpop.f32.mrb[0].mxu0
        %v1710 = vadd.f32 0.0, %v1709
        %v1711 = vpop.f32.mrb[0].mxu0
        %v1712 = vadd.f32 0.0, %v1711
        %1713 = vmatprep.mubr.bf16.mxu0 %v1434
        %1714 = vmatmul.mubr.bf16.gmra.mrb[0].mxu0 %v1433
        %v1715 = vpop.f32.mrb[0].mxu0
        %v1716 = vadd.f32 0.0, %v1715
        %v1717 = vpop.f32.mrb[0].mxu0
        %v1718 = vadd.f32 0.0, %v1717
        %v1719 = vpop.f32.mrb[0].mxu0
        %v1720 = vadd.f32 0.0, %v1719
        %v1721 = vpop.f32.mrb[0].mxu0
        %v1722 = vadd.f32 0.0, %v1721
        %1723 = vdwg.mxu0
        %v1724 = vadd.f32 %v1193, %v1646
        %v1725 = vadd.f32 %v1195, %v1648
        %v1726 = vadd.f32 %v1197, %v1650
        %v1727 = vadd.f32 %v1199, %v1652
        %v1728 = vadd.f32 %v1203, %v1656
        %v1729 = vadd.f32 %v1205, %v1658
        %v1730 = vadd.f32 %v1207, %v1660
        %v1731 = vadd.f32 %v1209, %v1662
        %v1732 = vadd.f32 %v1213, %v1666
        %v1733 = vadd.f32 %v1215, %v1668
        %v1734 = vadd.f32 %v1217, %v1670
        %v1735 = vadd.f32 %v1219, %v1672
        %v1736 = vadd.f32 %v1223, %v1676
        %v1737 = vadd.f32 %v1225, %v1678
        %v1738 = vadd.f32 %v1227, %v1680
        %v1739 = vadd.f32 %v1229, %v1682
        %v1740 = vadd.f32 %v1233, %v1686
        %v1741 = vadd.f32 %v1235, %v1688
        %v1742 = vadd.f32 %v1237, %v1690
        %v1743 = vadd.f32 %v1239, %v1692
        %v1744 = vadd.f32 %v1243, %v1696
        %v1745 = vadd.f32 %v1245, %v1698
        %v1746 = vadd.f32 %v1247, %v1700
        %v1747 = vadd.f32 %v1249, %v1702
        %v1748 = vadd.f32 %v1253, %v1706
        %v1749 = vadd.f32 %v1255, %v1708
        %v1750 = vadd.f32 %v1257, %v1710
        %v1751 = vadd.f32 %v1259, %v1712
        %v1752 = vadd.f32 %v1263, %v1716
        %v1753 = vadd.f32 %v1265, %v1718
        %v1754 = vadd.f32 %v1267, %v1720
        %v1755 = vadd.f32 %v1269, %v1722
        %s1756 = sadd.s32 %s293, 1
        %s1757 = smul.u32 %s1756, 6
        %s1758 = smul.addr %s1757, 4
        %s1759 = scalar_lea.vmem %s291, %s1758
        %v1760 = vld [vmem:[%s1759] sm:$0xff]
        %v1761 = vld [vmem:[%s1759 + $0x8] sm:$0xff]
        %v1762 = vld [vmem:[%s1759 + $0x18] sm:$0xff]
        %v1763 = vld [vmem:[%s1759 + $0x20] sm:$0xff]
        %v1764 = vld [vmem:[%s1759 + $0x30] sm:$0xff]
        %v1765 = vld [vmem:[%s1759 + $0x38] sm:$0xff]
        %v1766 = vld [vmem:[%s1759 + $0x48] sm:$0xff]
        %v1767 = vld [vmem:[%s1759 + $0x50] sm:$0xff]
        %v1768 = vld [vmem:[%s1759 + $0x60] sm:$0xff]
        %v1769 = vld [vmem:[%s1759 + $0x68] sm:$0xff]
        %v1770 = vld [vmem:[%s1759 + $0x78] sm:$0xff]
        %v1771 = vld [vmem:[%s1759 + $0x80] sm:$0xff]
        %v1772 = vld [vmem:[%s1759 + $0x90] sm:$0xff]
        %v1773 = vld [vmem:[%s1759 + $0x98] sm:$0xff]
        %v1774 = vld [vmem:[%s1759 + $0xa8] sm:$0xff]
        %v1775 = vld [vmem:[%s1759 + $0xb0] sm:$0xff]
        %s1776 = scalar_lea.vmem [#allocation2], 768
        %v1777 = vld [vmem:[%s1776] sm:$0xff]
        %v1778 = vld [vmem:[%s1776 + $0x8] sm:$0xff]
        %v1779 = vld [vmem:[%s1776 + $0x10] sm:$0xff]
        %v1780 = vld [vmem:[%s1776 + $0x18] sm:$0xff]
        %v1781 = vld [vmem:[%s1776 + $0x20] sm:$0xff]
        %v1782 = vld [vmem:[%s1776 + $0x28] sm:$0xff]
        %v1783 = vld [vmem:[%s1776 + $0x30] sm:$0xff]
        %v1784 = vld [vmem:[%s1776 + $0x38] sm:$0xff]
        %v1785 = vld [vmem:[%s1776 + $0x40] sm:$0xff]
        %v1786 = vld [vmem:[%s1776 + $0x48] sm:$0xff]
        %v1787 = vld [vmem:[%s1776 + $0x50] sm:$0xff]
        %v1788 = vld [vmem:[%s1776 + $0x58] sm:$0xff]
        %v1789 = vld [vmem:[%s1776 + $0x60] sm:$0xff]
        %v1790 = vld [vmem:[%s1776 + $0x68] sm:$0xff]
        %v1791 = vld [vmem:[%s1776 + $0x70] sm:$0xff]
        %v1792 = vld [vmem:[%s1776 + $0x78] sm:$0xff]
        %v1793 = vld [vmem:[%s1776 + $0x80] sm:$0xff]
        %v1794 = vld [vmem:[%s1776 + $0x88] sm:$0xff]
        %v1795 = vld [vmem:[%s1776 + $0x90] sm:$0xff]
        %v1796 = vld [vmem:[%s1776 + $0x98] sm:$0xff]
        %v1797 = vld [vmem:[%s1776 + $0xa0] sm:$0xff]
        %v1798 = vld [vmem:[%s1776 + $0xa8] sm:$0xff]
        %v1799 = vld [vmem:[%s1776 + $0xb0] sm:$0xff]
        %v1800 = vld [vmem:[%s1776 + $0xb8] sm:$0xff]
        %v1801 = vld [vmem:[%s1776 + $0xc0] sm:$0xff]
        %v1802 = vld [vmem:[%s1776 + $0xc8] sm:$0xff]
        %v1803 = vld [vmem:[%s1776 + $0xd0] sm:$0xff]
        %v1804 = vld [vmem:[%s1776 + $0xd8] sm:$0xff]
        %v1805 = vld [vmem:[%s1776 + $0xe0] sm:$0xff]
        %v1806 = vld [vmem:[%s1776 + $0xe8] sm:$0xff]
        %v1807 = vld [vmem:[%s1776 + $0xf0] sm:$0xff]
        %v1808 = vld [vmem:[%s1776 + $0xf8] sm:$0xff]
        %v1825 = vunpack.c.l.b16 %v1760
        %v1826 = vunpack.c.h.b16 %v1760
        %v1827 = vunpack.c.l.b16 %v1761
        %v1828 = vunpack.c.h.b16 %v1761
        %v1829 = vunpack.c.l.b16 %v1762
        %v1830 = vunpack.c.h.b16 %v1762
        %v1831 = vunpack.c.l.b16 %v1763
        %v1832 = vunpack.c.h.b16 %v1763
        %v1833 = vunpack.c.l.b16 %v1764
        %v1834 = vunpack.c.h.b16 %v1764
        %v1835 = vunpack.c.l.b16 %v1765
        %v1836 = vunpack.c.h.b16 %v1765
        %v1837 = vunpack.c.l.b16 %v1766
        %v1838 = vunpack.c.h.b16 %v1766
        %v1839 = vunpack.c.l.b16 %v1767
        %v1840 = vunpack.c.h.b16 %v1767
        %v1841 = vunpack.c.l.b16 %v1768
        %v1842 = vunpack.c.h.b16 %v1768
        %v1843 = vunpack.c.l.b16 %v1769
        %v1844 = vunpack.c.h.b16 %v1769
        %v1845 = vunpack.c.l.b16 %v1770
        %v1846 = vunpack.c.h.b16 %v1770
        %v1847 = vunpack.c.l.b16 %v1771
        %v1848 = vunpack.c.h.b16 %v1771
        %v1849 = vunpack.c.l.b16 %v1772
        %v1850 = vunpack.c.h.b16 %v1772
        %v1851 = vunpack.c.l.b16 %v1773
        %v1852 = vunpack.c.h.b16 %v1773
        %v1853 = vunpack.c.l.b16 %v1774
        %v1854 = vunpack.c.h.b16 %v1774
        %v1855 = vunpack.c.l.b16 %v1775
        %v1856 = vunpack.c.h.b16 %v1775
        %v1857 = vpack.c.b16 %v1827, %v1825
        %v1858 = vpack.c.b16 %v1828, %v1826
        %v1859 = vpack.c.b16 %v1831, %v1829
        %v1860 = vpack.c.b16 %v1832, %v1830
        %v1861 = vpack.c.b16 %v1835, %v1833
        %v1862 = vpack.c.b16 %v1836, %v1834
        %v1863 = vpack.c.b16 %v1839, %v1837
        %v1864 = vpack.c.b16 %v1840, %v1838
        %v1865 = vpack.c.b16 %v1843, %v1841
        %v1866 = vpack.c.b16 %v1844, %v1842
        %v1867 = vpack.c.b16 %v1847, %v1845
        %v1868 = vpack.c.b16 %v1848, %v1846
        %v1869 = vpack.c.b16 %v1851, %v1849
        %v1870 = vpack.c.b16 %v1852, %v1850
        %v1871 = vpack.c.b16 %v1855, %v1853
        %v1872 = vpack.c.b16 %v1856, %v1854
        %v1921 = vunpack.c.l.b16 %v1777
        %v1922 = vunpack.c.h.b16 %v1777
        %v1923 = vunpack.c.l.b16 %v1778
        %v1924 = vunpack.c.h.b16 %v1778
        %v1925 = vunpack.c.l.b16 %v1779
        %v1926 = vunpack.c.h.b16 %v1779
        %v1927 = vunpack.c.l.b16 %v1780
        %v1928 = vunpack.c.h.b16 %v1780
        %v1929 = vunpack.c.l.b16 %v1781
        %v1930 = vunpack.c.h.b16 %v1781
        %v1931 = vunpack.c.l.b16 %v1782
        %v1932 = vunpack.c.h.b16 %v1782
        %v1933 = vunpack.c.l.b16 %v1783
        %v1934 = vunpack.c.h.b16 %v1783
        %v1935 = vunpack.c.l.b16 %v1784
        %v1936 = vunpack.c.h.b16 %v1784
        %v1937 = vunpack.c.l.b16 %v1785
        %v1938 = vunpack.c.h.b16 %v1785
        %v1939 = vunpack.c.l.b16 %v1786
        %v1940 = vunpack.c.h.b16 %v1786
        %v1941 = vunpack.c.l.b16 %v1787
        %v1942 = vunpack.c.h.b16 %v1787
        %v1943 = vunpack.c.l.b16 %v1788
        %v1944 = vunpack.c.h.b16 %v1788
        %v1945 = vunpack.c.l.b16 %v1789
        %v1946 = vunpack.c.h.b16 %v1789
        %v1947 = vunpack.c.l.b16 %v1790
        %v1948 = vunpack.c.h.b16 %v1790
        %v1949 = vunpack.c.l.b16 %v1791
        %v1950 = vunpack.c.h.b16 %v1791
        %v1951 = vunpack.c.l.b16 %v1792
        %v1952 = vunpack.c.h.b16 %v1792
        %v1953 = vunpack.c.l.b16 %v1793
        %v1954 = vunpack.c.h.b16 %v1793
        %v1955 = vunpack.c.l.b16 %v1794
        %v1956 = vunpack.c.h.b16 %v1794
        %v1957 = vunpack.c.l.b16 %v1795
        %v1958 = vunpack.c.h.b16 %v1795
        %v1959 = vunpack.c.l.b16 %v1796
        %v1960 = vunpack.c.h.b16 %v1796
        %v1961 = vunpack.c.l.b16 %v1797
        %v1962 = vunpack.c.h.b16 %v1797
        %v1963 = vunpack.c.l.b16 %v1798
        %v1964 = vunpack.c.h.b16 %v1798
        %v1965 = vunpack.c.l.b16 %v1799
        %v1966 = vunpack.c.h.b16 %v1799
        %v1967 = vunpack.c.l.b16 %v1800
        %v1968 = vunpack.c.h.b16 %v1800
        %v1969 = vunpack.c.l.b16 %v1801
        %v1970 = vunpack.c.h.b16 %v1801
        %v1971 = vunpack.c.l.b16 %v1802
        %v1972 = vunpack.c.h.b16 %v1802
        %v1973 = vunpack.c.l.b16 %v1803
        %v1974 = vunpack.c.h.b16 %v1803
        %v1975 = vunpack.c.l.b16 %v1804
        %v1976 = vunpack.c.h.b16 %v1804
        %v1977 = vunpack.c.l.b16 %v1805
        %v1978 = vunpack.c.h.b16 %v1805
        %v1979 = vunpack.c.l.b16 %v1806
        %v1980 = vunpack.c.h.b16 %v1806
        %v1981 = vunpack.c.l.b16 %v1807
        %v1982 = vunpack.c.h.b16 %v1807
        %v1983 = vunpack.c.l.b16 %v1808
        %v1984 = vunpack.c.h.b16 %v1808
        %v1985 = vpack.c.b16 %v1923, %v1921
        %v1986 = vpack.c.b16 %v1924, %v1922
        %v1987 = vpack.c.b16 %v1927, %v1925
        %v1988 = vpack.c.b16 %v1928, %v1926
        %v1989 = vpack.c.b16 %v1931, %v1929
        %v1990 = vpack.c.b16 %v1932, %v1930
        %v1991 = vpack.c.b16 %v1935, %v1933
        %v1992 = vpack.c.b16 %v1936, %v1934
        %v1993 = vpack.c.b16 %v1939, %v1937
        %v1994 = vpack.c.b16 %v1940, %v1938
        %v1995 = vpack.c.b16 %v1943, %v1941
        %v1996 = vpack.c.b16 %v1944, %v1942
        %v1997 = vpack.c.b16 %v1947, %v1945
        %v1998 = vpack.c.b16 %v1948, %v1946
        %v1999 = vpack.c.b16 %v1951, %v1949
        %v2000 = vpack.c.b16 %v1952, %v1950
        %v2001 = vpack.c.b16 %v1955, %v1953
        %v2002 = vpack.c.b16 %v1956, %v1954
        %v2003 = vpack.c.b16 %v1959, %v1957
        %v2004 = vpack.c.b16 %v1960, %v1958
        %v2005 = vpack.c.b16 %v1963, %v1961
        %v2006 = vpack.c.b16 %v1964, %v1962
        %v2007 = vpack.c.b16 %v1967, %v1965
        %v2008 = vpack.c.b16 %v1968, %v1966
        %v2009 = vpack.c.b16 %v1971, %v1969
        %v2010 = vpack.c.b16 %v1972, %v1970
        %v2011 = vpack.c.b16 %v1975, %v1973
        %v2012 = vpack.c.b16 %v1976, %v1974
        %v2013 = vpack.c.b16 %v1979, %v1977
        %v2014 = vpack.c.b16 %v1980, %v1978
        %v2015 = vpack.c.b16 %v1983, %v1981
        %v2016 = vpack.c.b16 %v1984, %v1982
        %2049 = vmatprep.subr.bf16.mxu0 %v1986
        %2050 = vmatpush1.bf16.msra.mxu0 %v1985
        %2051 = vmatprep.subr.bf16.mxu0 %v1988
        %2052 = vmatpush1.bf16.msra.mxu0 %v1987
        %2053 = vmatprep.subr.bf16.mxu0 %v1990
        %2054 = vmatpush1.bf16.msra.mxu0 %v1989
        %2055 = vmatprep.subr.bf16.mxu0 %v1992
        %2056 = vmatpush1.bf16.msra.mxu0 %v1991
        %2057 = vmatprep.subr.bf16.mxu0 %v1994
        %2058 = vmatpush1.bf16.msra.mxu0 %v1993
        %2059 = vmatprep.subr.bf16.mxu0 %v1996
        %2060 = vmatpush1.bf16.msra.mxu0 %v1995
        %2061 = vmatprep.subr.bf16.mxu0 %v1998
        %2062 = vmatpush1.bf16.msra.mxu0 %v1997
        %2063 = vmatprep.subr.bf16.mxu0 %v2000
        %2064 = vmatpush1.bf16.msra.mxu0 %v1999
        %2065 = vmatprep.subr.bf16.mxu0 %v2002
        %2066 = vmatpush1.bf16.msra.mxu0 %v2001
        %2067 = vmatprep.subr.bf16.mxu0 %v2004
        %2068 = vmatpush1.bf16.msra.mxu0 %v2003
        %2069 = vmatprep.subr.bf16.mxu0 %v2006
        %2070 = vmatpush1.bf16.msra.mxu0 %v2005
        %2071 = vmatprep.subr.bf16.mxu0 %v2008
        %2072 = vmatpush1.bf16.msra.mxu0 %v2007
        %2073 = vmatprep.subr.bf16.mxu0 %v2010
        %2074 = vmatpush1.bf16.msra.mxu0 %v2009
        %2075 = vmatprep.subr.bf16.mxu0 %v2012
        %2076 = vmatpush1.bf16.msra.mxu0 %v2011
        %2077 = vmatprep.subr.bf16.mxu0 %v2014
        %2078 = vmatpush1.bf16.msra.mxu0 %v2013
        %2079 = vmatprep.subr.bf16.mxu0 %v2016
        %2080 = vmatpush1.bf16.msra.mxu0 %v2015
        %2081 = vmatprep.mubr.bf16.mxu0 %v1858
        %2082 = vmatmul.mubr.bf16.gmra.mrb[0].mxu0 %v1857
        %v2083 = vpop.f32.mrb[0].mxu0
        %v2084 = vadd.f32 0.0, %v2083
        %v2085 = vpop.f32.mrb[0].mxu0
        %v2086 = vadd.f32 0.0, %v2085
        %v2087 = vpop.f32.mrb[0].mxu0
        %v2088 = vadd.f32 0.0, %v2087
        %v2089 = vpop.f32.mrb[0].mxu0
        %v2090 = vadd.f32 0.0, %v2089
        %2091 = vmatprep.mubr.bf16.mxu0 %v1860
        %2092 = vmatmul.mubr.bf16.gmra.mrb[0].mxu0 %v1859
        %v2093 = vpop.f32.mrb[0].mxu0
        %v2094 = vadd.f32 0.0, %v2093
        %v2095 = vpop.f32.mrb[0].mxu0
        %v2096 = vadd.f32 0.0, %v2095
        %v2097 = vpop.f32.mrb[0].mxu0
        %v2098 = vadd.f32 0.0, %v2097
        %v2099 = vpop.f32.mrb[0].mxu0
        %v2100 = vadd.f32 0.0, %v2099
        %2101 = vmatprep.mubr.bf16.mxu0 %v1862
        %2102 = vmatmul.mubr.bf16.gmra.mrb[0].mxu0 %v1861
        %v2103 = vpop.f32.mrb[0].mxu0
        %v2104 = vadd.f32 0.0, %v2103
        %v2105 = vpop.f32.mrb[0].mxu0
        %v2106 = vadd.f32 0.0, %v2105
        %v2107 = vpop.f32.mrb[0].mxu0
        %v2108 = vadd.f32 0.0, %v2107
        %v2109 = vpop.f32.mrb[0].mxu0
        %v2110 = vadd.f32 0.0, %v2109
        %2111 = vmatprep.mubr.bf16.mxu0 %v1864
        %2112 = vmatmul.mubr.bf16.gmra.mrb[0].mxu0 %v1863
        %v2113 = vpop.f32.mrb[0].mxu0
        %v2114 = vadd.f32 0.0, %v2113
        %v2115 = vpop.f32.mrb[0].mxu0
        %v2116 = vadd.f32 0.0, %v2115
        %v2117 = vpop.f32.mrb[0].mxu0
        %v2118 = vadd.f32 0.0, %v2117
        %v2119 = vpop.f32.mrb[0].mxu0
        %v2120 = vadd.f32 0.0, %v2119
        %2121 = vmatprep.mubr.bf16.mxu0 %v1866
        %2122 = vmatmul.mubr.bf16.gmra.mrb[0].mxu0 %v1865
        %v2123 = vpop.f32.mrb[0].mxu0
        %v2124 = vadd.f32 0.0, %v2123
        %v2125 = vpop.f32.mrb[0].mxu0
        %v2126 = vadd.f32 0.0, %v2125
        %v2127 = vpop.f32.mrb[0].mxu0
        %v2128 = vadd.f32 0.0, %v2127
        %v2129 = vpop.f32.mrb[0].mxu0
        %v2130 = vadd.f32 0.0, %v2129
        %2131 = vmatprep.mubr.bf16.mxu0 %v1868
        %2132 = vmatmul.mubr.bf16.gmra.mrb[0].mxu0 %v1867
        %v2133 = vpop.f32.mrb[0].mxu0
        %v2134 = vadd.f32 0.0, %v2133
        %v2135 = vpop.f32.mrb[0].mxu0
        %v2136 = vadd.f32 0.0, %v2135
        %v2137 = vpop.f32.mrb[0].mxu0
        %v2138 = vadd.f32 0.0, %v2137
        %v2139 = vpop.f32.mrb[0].mxu0
        %v2140 = vadd.f32 0.0, %v2139
        %2141 = vmatprep.mubr.bf16.mxu0 %v1870
        %2142 = vmatmul.mubr.bf16.gmra.mrb[0].mxu0 %v1869
        %v2143 = vpop.f32.mrb[0].mxu0
        %v2144 = vadd.f32 0.0, %v2143
        %v2145 = vpop.f32.mrb[0].mxu0
        %v2146 = vadd.f32 0.0, %v2145
        %v2147 = vpop.f32.mrb[0].mxu0
        %v2148 = vadd.f32 0.0, %v2147
        %v2149 = vpop.f32.mrb[0].mxu0
        %v2150 = vadd.f32 0.0, %v2149
        %2151 = vmatprep.mubr.bf16.mxu0 %v1872
        %2152 = vmatmul.mubr.bf16.gmra.mrb[0].mxu0 %v1871
        %v2153 = vpop.f32.mrb[0].mxu0
        %v2154 = vadd.f32 0.0, %v2153
        %v2155 = vpop.f32.mrb[0].mxu0
        %v2156 = vadd.f32 0.0, %v2155
        %v2157 = vpop.f32.mrb[0].mxu0
        %v2158 = vadd.f32 0.0, %v2157
        %v2159 = vpop.f32.mrb[0].mxu0
        %v2160 = vadd.f32 0.0, %v2159
        %2161 = vdwg.mxu0
        %v2162 = vadd.f32 %v1724, %v2084
        %v2163 = vadd.f32 %v1725, %v2086
        %v2164 = vadd.f32 %v1726, %v2088
        %v2165 = vadd.f32 %v1727, %v2090
        %v2166 = vadd.f32 %v1728, %v2094
        %v2167 = vadd.f32 %v1729, %v2096
        %v2168 = vadd.f32 %v1730, %v2098
        %v2169 = vadd.f32 %v1731, %v2100
        %v2170 = vadd.f32 %v1732, %v2104
        %v2171 = vadd.f32 %v1733, %v2106
        %v2172 = vadd.f32 %v1734, %v2108
        %v2173 = vadd.f32 %v1735, %v2110
        %v2174 = vadd.f32 %v1736, %v2114
        %v2175 = vadd.f32 %v1737, %v2116
        %v2176 = vadd.f32 %v1738, %v2118
        %v2177 = vadd.f32 %v1739, %v2120
        %v2178 = vadd.f32 %v1740, %v2124
        %v2179 = vadd.f32 %v1741, %v2126
        %v2180 = vadd.f32 %v1742, %v2128
        %v2181 = vadd.f32 %v1743, %v2130
        %v2182 = vadd.f32 %v1744, %v2134
        %v2183 = vadd.f32 %v1745, %v2136
        %v2184 = vadd.f32 %v1746, %v2138
        %v2185 = vadd.f32 %v1747, %v2140
        %v2186 = vadd.f32 %v1748, %v2144
        %v2187 = vadd.f32 %v1749, %v2146
        %v2188 = vadd.f32 %v1750, %v2148
        %v2189 = vadd.f32 %v1751, %v2150
        %v2190 = vadd.f32 %v1752, %v2154
        %v2191 = vadd.f32 %v1753, %v2156
        %v2192 = vadd.f32 %v1754, %v2158
        %v2193 = vadd.f32 %v1755, %v2160
        %v2194 = vld [vmem:[%s1759] sm:$0xff]
        %v2195 = vld [vmem:[%s1759 + $0x8] sm:$0xff]
        %v2196 = vld [vmem:[%s1759 + $0x10] sm:$0x11]
        %v2197 = vld [vmem:[%s1759 + $0x18] sm:$0xff]
        %v2198 = vld [vmem:[%s1759 + $0x20] sm:$0xff]
        %v2199 = vld [vmem:[%s1759 + $0x28] sm:$0x11]
        %v2200 = vld [vmem:[%s1759 + $0x30] sm:$0xff]
        %v2201 = vld [vmem:[%s1759 + $0x38] sm:$0xff]
        %v2202 = vld [vmem:[%s1759 + $0x40] sm:$0x11]
        %v2203 = vld [vmem:[%s1759 + $0x48] sm:$0xff]
        %v2204 = vld [vmem:[%s1759 + $0x50] sm:$0xff]
        %v2205 = vld [vmem:[%s1759 + $0x58] sm:$0x11]
        %v2206 = vld [vmem:[%s1759 + $0x60] sm:$0xff]
        %v2207 = vld [vmem:[%s1759 + $0x68] sm:$0xff]
        %v2208 = vld [vmem:[%s1759 + $0x70] sm:$0x11]
        %v2209 = vld [vmem:[%s1759 + $0x78] sm:$0xff]
        %v2210 = vld [vmem:[%s1759 + $0x80] sm:$0xff]
        %v2211 = vld [vmem:[%s1759 + $0x88] sm:$0x11]
        %v2212 = vld [vmem:[%s1759 + $0x90] sm:$0xff]
        %v2213 = vld [vmem:[%s1759 + $0x98] sm:$0xff]
        %v2214 = vld [vmem:[%s1759 + $0xa0] sm:$0x11]
        %v2215 = vld [vmem:[%s1759 + $0xa8] sm:$0xff]
        %v2216 = vld [vmem:[%s1759 + $0xb0] sm:$0xff]
        %v2217 = vld [vmem:[%s1759 + $0xb8] sm:$0x11]
        %v2219 = vshrl.u32 %v2194, 16
        %v2221 = vrot.slane %v2219, 4
        %v2222 = vshll.u32 %v2194, 16
        %v2224 = vrot.slane %v2222, 5
        %v2225 = vor.u32 %v2221, %v2224
        %v2226 = vrot.slane %v2225, 4
        %v2228 = vshll.u32 %v2195, 16
        %v2230 = vrot.slane %v2228, 5
        %v2231 = vsel %vm355, %v2226, %v2230
        %v2232 = vshrl.u32 %v2195, 16
        %v2234 = vrot.slane %v2232, 4
        %v2235 = vor.u32 %v2234, %v2230
        %v2236 = vrot.slane %v2235, 4
        %v2238 = vshll.u32 %v2196, 16
        %v2240 = vrot.slane %v2238, 5
        %v2241 = vsel %vm355, %v2236, %v2240
        %v2243 = vshrl.u32 %v2197, 16
        %v2245 = vrot.slane %v2243, 4
        %v2246 = vshll.u32 %v2197, 16
        %v2248 = vrot.slane %v2246, 5
        %v2249 = vor.u32 %v2245, %v2248
        %v2250 = vrot.slane %v2249, 4
        %v2252 = vshll.u32 %v2198, 16
        %v2254 = vrot.slane %v2252, 5
        %v2255 = vsel %vm355, %v2250, %v2254
        %v2256 = vshrl.u32 %v2198, 16
        %v2258 = vrot.slane %v2256, 4
        %v2259 = vor.u32 %v2258, %v2254
        %v2260 = vrot.slane %v2259, 4
        %v2262 = vshll.u32 %v2199, 16
        %v2264 = vrot.slane %v2262, 5
        %v2265 = vsel %vm355, %v2260, %v2264
        %v2267 = vshrl.u32 %v2200, 16
        %v2269 = vrot.slane %v2267, 4
        %v2270 = vshll.u32 %v2200, 16
        %v2272 = vrot.slane %v2270, 5
        %v2273 = vor.u32 %v2269, %v2272
        %v2274 = vrot.slane %v2273, 4
        %v2276 = vshll.u32 %v2201, 16
        %v2278 = vrot.slane %v2276, 5
        %v2279 = vsel %vm355, %v2274, %v2278
        %v2280 = vshrl.u32 %v2201, 16
        %v2282 = vrot.slane %v2280, 4
        %v2283 = vor.u32 %v2282, %v2278
        %v2284 = vrot.slane %v2283, 4
        %v2286 = vshll.u32 %v2202, 16
        %v2288 = vrot.slane %v2286, 5
        %v2289 = vsel %vm355, %v2284, %v2288
        %v2291 = vshrl.u32 %v2203, 16
        %v2293 = vrot.slane %v2291, 4
        %v2294 = vshll.u32 %v2203, 16
        %v2296 = vrot.slane %v2294, 5
        %v2297 = vor.u32 %v2293, %v2296
        %v2298 = vrot.slane %v2297, 4
        %v2300 = vshll.u32 %v2204, 16
        %v2302 = vrot.slane %v2300, 5
        %v2303 = vsel %vm355, %v2298, %v2302
        %v2304 = vshrl.u32 %v2204, 16
        %v2306 = vrot.slane %v2304, 4
        %v2307 = vor.u32 %v2306, %v2302
        %v2308 = vrot.slane %v2307, 4
        %v2310 = vshll.u32 %v2205, 16
        %v2312 = vrot.slane %v2310, 5
        %v2313 = vsel %vm355, %v2308, %v2312
        %v2315 = vshrl.u32 %v2206, 16
        %v2317 = vrot.slane %v2315, 4
        %v2318 = vshll.u32 %v2206, 16
        %v2320 = vrot.slane %v2318, 5
        %v2321 = vor.u32 %v2317, %v2320
        %v2322 = vrot.slane %v2321, 4
        %v2324 = vshll.u32 %v2207, 16
        %v2326 = vrot.slane %v2324, 5
        %v2327 = vsel %vm355, %v2322, %v2326
        %v2328 = vshrl.u32 %v2207, 16
        %v2330 = vrot.slane %v2328, 4
        %v2331 = vor.u32 %v2330, %v2326
        %v2332 = vrot.slane %v2331, 4
        %v2334 = vshll.u32 %v2208, 16
        %v2336 = vrot.slane %v2334, 5
        %v2337 = vsel %vm355, %v2332, %v2336
        %v2339 = vshrl.u32 %v2209, 16
        %v2341 = vrot.slane %v2339, 4
        %v2342 = vshll.u32 %v2209, 16
        %v2344 = vrot.slane %v2342, 5
        %v2345 = vor.u32 %v2341, %v2344
        %v2346 = vrot.slane %v2345, 4
        %v2348 = vshll.u32 %v2210, 16
        %v2350 = vrot.slane %v2348, 5
        %v2351 = vsel %vm355, %v2346, %v2350
        %v2352 = vshrl.u32 %v2210, 16
        %v2354 = vrot.slane %v2352, 4
        %v2355 = vor.u32 %v2354, %v2350
        %v2356 = vrot.slane %v2355, 4
        %v2358 = vshll.u32 %v2211, 16
        %v2360 = vrot.slane %v2358, 5
        %v2361 = vsel %vm355, %v2356, %v2360
        %v2363 = vshrl.u32 %v2212, 16
        %v2365 = vrot.slane %v2363, 4
        %v2366 = vshll.u32 %v2212, 16
        %v2368 = vrot.slane %v2366, 5
        %v2369 = vor.u32 %v2365, %v2368
        %v2370 = vrot.slane %v2369, 4
        %v2372 = vshll.u32 %v2213, 16
        %v2374 = vrot.slane %v2372, 5
        %v2375 = vsel %vm355, %v2370, %v2374
        %v2376 = vshrl.u32 %v2213, 16
        %v2378 = vrot.slane %v2376, 4
        %v2379 = vor.u32 %v2378, %v2374
        %v2380 = vrot.slane %v2379, 4
        %v2382 = vshll.u32 %v2214, 16
        %v2384 = vrot.slane %v2382, 5
        %v2385 = vsel %vm355, %v2380, %v2384
        %v2387 = vshrl.u32 %v2215, 16
        %v2389 = vrot.slane %v2387, 4
        %v2390 = vshll.u32 %v2215, 16
        %v2392 = vrot.slane %v2390, 5
        %v2393 = vor.u32 %v2389, %v2392
        %v2394 = vrot.slane %v2393, 4
        %v2396 = vshll.u32 %v2216, 16
        %v2398 = vrot.slane %v2396, 5
        %v2399 = vsel %vm355, %v2394, %v2398
        %v2400 = vshrl.u32 %v2216, 16
        %v2402 = vrot.slane %v2400, 4
        %v2403 = vor.u32 %v2402, %v2398
        %v2404 = vrot.slane %v2403, 4
        %v2406 = vshll.u32 %v2217, 16
        %v2408 = vrot.slane %v2406, 5
        %v2409 = vsel %vm355, %v2404, %v2408
        %s2410 = scalar_lea.vmem [#allocation2], 1024
        %v2411 = vld [vmem:[%s2410] sm:$0xff]
        %v2412 = vld [vmem:[%s2410 + $0x8] sm:$0xff]
        %v2413 = vld [vmem:[%s2410 + $0x10] sm:$0xff]
        %v2414 = vld [vmem:[%s2410 + $0x18] sm:$0xff]
        %v2415 = vld [vmem:[%s2410 + $0x20] sm:$0xff]
        %v2416 = vld [vmem:[%s2410 + $0x28] sm:$0xff]
        %v2417 = vld [vmem:[%s2410 + $0x30] sm:$0xff]
        %v2418 = vld [vmem:[%s2410 + $0x38] sm:$0xff]
        %v2419 = vld [vmem:[%s2410 + $0x40] sm:$0xff]
        %v2420 = vld [vmem:[%s2410 + $0x48] sm:$0xff]
        %v2421 = vld [vmem:[%s2410 + $0x50] sm:$0xff]
        %v2422 = vld [vmem:[%s2410 + $0x58] sm:$0xff]
        %v2423 = vld [vmem:[%s2410 + $0x60] sm:$0xff]
        %v2424 = vld [vmem:[%s2410 + $0x68] sm:$0xff]
        %v2425 = vld [vmem:[%s2410 + $0x70] sm:$0xff]
        %v2426 = vld [vmem:[%s2410 + $0x78] sm:$0xff]
        %v2427 = vld [vmem:[%s2410 + $0x80] sm:$0xff]
        %v2428 = vld [vmem:[%s2410 + $0x88] sm:$0xff]
        %v2429 = vld [vmem:[%s2410 + $0x90] sm:$0xff]
        %v2430 = vld [vmem:[%s2410 + $0x98] sm:$0xff]
        %v2431 = vld [vmem:[%s2410 + $0xa0] sm:$0xff]
        %v2432 = vld [vmem:[%s2410 + $0xa8] sm:$0xff]
        %v2433 = vld [vmem:[%s2410 + $0xb0] sm:$0xff]
        %v2434 = vld [vmem:[%s2410 + $0xb8] sm:$0xff]
        %v2435 = vld [vmem:[%s2410 + $0xc0] sm:$0xff]
        %v2436 = vld [vmem:[%s2410 + $0xc8] sm:$0xff]
        %v2437 = vld [vmem:[%s2410 + $0xd0] sm:$0xff]
        %v2438 = vld [vmem:[%s2410 + $0xd8] sm:$0xff]
        %v2439 = vld [vmem:[%s2410 + $0xe0] sm:$0xff]
        %v2440 = vld [vmem:[%s2410 + $0xe8] sm:$0xff]
        %v2441 = vld [vmem:[%s2410 + $0xf0] sm:$0xff]
        %v2442 = vld [vmem:[%s2410 + $0xf8] sm:$0xff]
        %v2443 = vunpack.c.l.b16 %v2231
        %v2444 = vunpack.c.h.b16 %v2231
        %v2445 = vunpack.c.l.b16 %v2241
        %v2446 = vunpack.c.h.b16 %v2241
        %v2447 = vunpack.c.l.b16 %v2255
        %v2448 = vunpack.c.h.b16 %v2255
        %v2449 = vunpack.c.l.b16 %v2265
        %v2450 = vunpack.c.h.b16 %v2265
        %v2451 = vunpack.c.l.b16 %v2279
        %v2452 = vunpack.c.h.b16 %v2279
        %v2453 = vunpack.c.l.b16 %v2289
        %v2454 = vunpack.c.h.b16 %v2289
        %v2455 = vunpack.c.l.b16 %v2303
        %v2456 = vunpack.c.h.b16 %v2303
        %v2457 = vunpack.c.l.b16 %v2313
        %v2458 = vunpack.c.h.b16 %v2313
        %v2459 = vunpack.c.l.b16 %v2327
        %v2460 = vunpack.c.h.b16 %v2327
        %v2461 = vunpack.c.l.b16 %v2337
        %v2462 = vunpack.c.h.b16 %v2337
        %v2463 = vunpack.c.l.b16 %v2351
        %v2464 = vunpack.c.h.b16 %v2351
        %v2465 = vunpack.c.l.b16 %v2361
        %v2466 = vunpack.c.h.b16 %v2361
        %v2467 = vunpack.c.l.b16 %v2375
        %v2468 = vunpack.c.h.b16 %v2375
        %v2469 = vunpack.c.l.b16 %v2385
        %v2470 = vunpack.c.h.b16 %v2385
        %v2471 = vunpack.c.l.b16 %v2399
        %v2472 = vunpack.c.h.b16 %v2399
        %v2473 = vunpack.c.l.b16 %v2409
        %v2474 = vunpack.c.h.b16 %v2409
        %v2475 = vpack.c.b16 %v2445, %v2443
        %v2476 = vpack.c.b16 %v2446, %v2444
        %v2477 = vpack.c.b16 %v2449, %v2447
        %v2478 = vpack.c.b16 %v2450, %v2448
        %v2479 = vpack.c.b16 %v2453, %v2451
        %v2480 = vpack.c.b16 %v2454, %v2452
        %v2481 = vpack.c.b16 %v2457, %v2455
        %v2482 = vpack.c.b16 %v2458, %v2456
        %v2483 = vpack.c.b16 %v2461, %v2459
        %v2484 = vpack.c.b16 %v2462, %v2460
        %v2485 = vpack.c.b16 %v2465, %v2463
        %v2486 = vpack.c.b16 %v2466, %v2464
        %v2487 = vpack.c.b16 %v2469, %v2467
        %v2488 = vpack.c.b16 %v2470, %v2468
        %v2489 = vpack.c.b16 %v2473, %v2471
        %v2490 = vpack.c.b16 %v2474, %v2472
        %v2539 = vunpack.c.l.b16 %v2411
        %v2540 = vunpack.c.h.b16 %v2411
        %v2541 = vunpack.c.l.b16 %v2412
        %v2542 = vunpack.c.h.b16 %v2412
        %v2543 = vunpack.c.l.b16 %v2413
        %v2544 = vunpack.c.h.b16 %v2413
        %v2545 = vunpack.c.l.b16 %v2414
        %v2546 = vunpack.c.h.b16 %v2414
        %v2547 = vunpack.c.l.b16 %v2415
        %v2548 = vunpack.c.h.b16 %v2415
        %v2549 = vunpack.c.l.b16 %v2416
        %v2550 = vunpack.c.h.b16 %v2416
        %v2551 = vunpack.c.l.b16 %v2417
        %v2552 = vunpack.c.h.b16 %v2417
        %v2553 = vunpack.c.l.b16 %v2418
        %v2554 = vunpack.c.h.b16 %v2418
        %v2555 = vunpack.c.l.b16 %v2419
        %v2556 = vunpack.c.h.b16 %v2419
        %v2557 = vunpack.c.l.b16 %v2420
        %v2558 = vunpack.c.h.b16 %v2420
        %v2559 = vunpack.c.l.b16 %v2421
        %v2560 = vunpack.c.h.b16 %v2421
        %v2561 = vunpack.c.l.b16 %v2422
        %v2562 = vunpack.c.h.b16 %v2422
        %v2563 = vunpack.c.l.b16 %v2423
        %v2564 = vunpack.c.h.b16 %v2423
        %v2565 = vunpack.c.l.b16 %v2424
        %v2566 = vunpack.c.h.b16 %v2424
        %v2567 = vunpack.c.l.b16 %v2425
        %v2568 = vunpack.c.h.b16 %v2425
        %v2569 = vunpack.c.l.b16 %v2426
        %v2570 = vunpack.c.h.b16 %v2426
        %v2571 = vunpack.c.l.b16 %v2427
        %v2572 = vunpack.c.h.b16 %v2427
        %v2573 = vunpack.c.l.b16 %v2428
        %v2574 = vunpack.c.h.b16 %v2428
        %v2575 = vunpack.c.l.b16 %v2429
        %v2576 = vunpack.c.h.b16 %v2429
        %v2577 = vunpack.c.l.b16 %v2430
        %v2578 = vunpack.c.h.b16 %v2430
        %v2579 = vunpack.c.l.b16 %v2431
        %v2580 = vunpack.c.h.b16 %v2431
        %v2581 = vunpack.c.l.b16 %v2432
        %v2582 = vunpack.c.h.b16 %v2432
        %v2583 = vunpack.c.l.b16 %v2433
        %v2584 = vunpack.c.h.b16 %v2433
        %v2585 = vunpack.c.l.b16 %v2434
        %v2586 = vunpack.c.h.b16 %v2434
        %v2587 = vunpack.c.l.b16 %v2435
        %v2588 = vunpack.c.h.b16 %v2435
        %v2589 = vunpack.c.l.b16 %v2436
        %v2590 = vunpack.c.h.b16 %v2436
        %v2591 = vunpack.c.l.b16 %v2437
        %v2592 = vunpack.c.h.b16 %v2437
        %v2593 = vunpack.c.l.b16 %v2438
        %v2594 = vunpack.c.h.b16 %v2438
        %v2595 = vunpack.c.l.b16 %v2439
        %v2596 = vunpack.c.h.b16 %v2439
        %v2597 = vunpack.c.l.b16 %v2440
        %v2598 = vunpack.c.h.b16 %v2440
        %v2599 = vunpack.c.l.b16 %v2441
        %v2600 = vunpack.c.h.b16 %v2441
        %v2601 = vunpack.c.l.b16 %v2442
        %v2602 = vunpack.c.h.b16 %v2442
        %v2603 = vpack.c.b16 %v2541, %v2539
        %v2604 = vpack.c.b16 %v2542, %v2540
        %v2605 = vpack.c.b16 %v2545, %v2543
        %v2606 = vpack.c.b16 %v2546, %v2544
        %v2607 = vpack.c.b16 %v2549, %v2547
        %v2608 = vpack.c.b16 %v2550, %v2548
        %v2609 = vpack.c.b16 %v2553, %v2551
        %v2610 = vpack.c.b16 %v2554, %v2552
        %v2611 = vpack.c.b16 %v2557, %v2555
        %v2612 = vpack.c.b16 %v2558, %v2556
        %v2613 = vpack.c.b16 %v2561, %v2559
        %v2614 = vpack.c.b16 %v2562, %v2560
        %v2615 = vpack.c.b16 %v2565, %v2563
        %v2616 = vpack.c.b16 %v2566, %v2564
        %v2617 = vpack.c.b16 %v2569, %v2567
        %v2618 = vpack.c.b16 %v2570, %v2568
        %v2619 = vpack.c.b16 %v2573, %v2571
        %v2620 = vpack.c.b16 %v2574, %v2572
        %v2621 = vpack.c.b16 %v2577, %v2575
        %v2622 = vpack.c.b16 %v2578, %v2576
        %v2623 = vpack.c.b16 %v2581, %v2579
        %v2624 = vpack.c.b16 %v2582, %v2580
        %v2625 = vpack.c.b16 %v2585, %v2583
        %v2626 = vpack.c.b16 %v2586, %v2584
        %v2627 = vpack.c.b16 %v2589, %v2587
        %v2628 = vpack.c.b16 %v2590, %v2588
        %v2629 = vpack.c.b16 %v2593, %v2591
        %v2630 = vpack.c.b16 %v2594, %v2592
        %v2631 = vpack.c.b16 %v2597, %v2595
        %v2632 = vpack.c.b16 %v2598, %v2596
        %v2633 = vpack.c.b16 %v2601, %v2599
        %v2634 = vpack.c.b16 %v2602, %v2600
        %2667 = vmatprep.subr.bf16.mxu0 %v2604
        %2668 = vmatpush1.bf16.msra.mxu0 %v2603
        %2669 = vmatprep.subr.bf16.mxu0 %v2606
        %2670 = vmatpush1.bf16.msra.mxu0 %v2605
        %2671 = vmatprep.subr.bf16.mxu0 %v2608
        %2672 = vmatpush1.bf16.msra.mxu0 %v2607
        %2673 = vmatprep.subr.bf16.mxu0 %v2610
        %2674 = vmatpush1.bf16.msra.mxu0 %v2609
        %2675 = vmatprep.subr.bf16.mxu0 %v2612
        %2676 = vmatpush1.bf16.msra.mxu0 %v2611
        %2677 = vmatprep.subr.bf16.mxu0 %v2614
        %2678 = vmatpush1.bf16.msra.mxu0 %v2613
        %2679 = vmatprep.subr.bf16.mxu0 %v2616
        %2680 = vmatpush1.bf16.msra.mxu0 %v2615
        %2681 = vmatprep.subr.bf16.mxu0 %v2618
        %2682 = vmatpush1.bf16.msra.mxu0 %v2617
        %2683 = vmatprep.subr.bf16.mxu0 %v2620
        %2684 = vmatpush1.bf16.msra.mxu0 %v2619
        %2685 = vmatprep.subr.bf16.mxu0 %v2622
        %2686 = vmatpush1.bf16.msra.mxu0 %v2621
        %2687 = vmatprep.subr.bf16.mxu0 %v2624
        %2688 = vmatpush1.bf16.msra.mxu0 %v2623
        %2689 = vmatprep.subr.bf16.mxu0 %v2626
        %2690 = vmatpush1.bf16.msra.mxu0 %v2625
        %2691 = vmatprep.subr.bf16.mxu0 %v2628
        %2692 = vmatpush1.bf16.msra.mxu0 %v2627
        %2693 = vmatprep.subr.bf16.mxu0 %v2630
        %2694 = vmatpush1.bf16.msra.mxu0 %v2629
        %2695 = vmatprep.subr.bf16.mxu0 %v2632
        %2696 = vmatpush1.bf16.msra.mxu0 %v2631
        %2697 = vmatprep.subr.bf16.mxu0 %v2634
        %2698 = vmatpush1.bf16.msra.mxu0 %v2633
        %2699 = vmatprep.mubr.bf16.mxu0 %v2476
        %2700 = vmatmul.mubr.bf16.gmra.mrb[0].mxu0 %v2475
        %v2701 = vpop.f32.mrb[0].mxu0
        %v2702 = vadd.f32 0.0, %v2701
        %v2703 = vpop.f32.mrb[0].mxu0
        %v2704 = vadd.f32 0.0, %v2703
        %v2705 = vpop.f32.mrb[0].mxu0
        %v2706 = vadd.f32 0.0, %v2705
        %v2707 = vpop.f32.mrb[0].mxu0
        %v2708 = vadd.f32 0.0, %v2707
        %2709 = vmatprep.mubr.bf16.mxu0 %v2478
        %2710 = vmatmul.mubr.bf16.gmra.mrb[0].mxu0 %v2477
        %v2711 = vpop.f32.mrb[0].mxu0
        %v2712 = vadd.f32 0.0, %v2711
        %v2713 = vpop.f32.mrb[0].mxu0
        %v2714 = vadd.f32 0.0, %v2713
        %v2715 = vpop.f32.mrb[0].mxu0
        %v2716 = vadd.f32 0.0, %v2715
        %v2717 = vpop.f32.mrb[0].mxu0
        %v2718 = vadd.f32 0.0, %v2717
        %2719 = vmatprep.mubr.bf16.mxu0 %v2480
        %2720 = vmatmul.mubr.bf16.gmra.mrb[0].mxu0 %v2479
        %v2721 = vpop.f32.mrb[0].mxu0
        %v2722 = vadd.f32 0.0, %v2721
        %v2723 = vpop.f32.mrb[0].mxu0
        %v2724 = vadd.f32 0.0, %v2723
        %v2725 = vpop.f32.mrb[0].mxu0
        %v2726 = vadd.f32 0.0, %v2725
        %v2727 = vpop.f32.mrb[0].mxu0
        %v2728 = vadd.f32 0.0, %v2727
        %2729 = vmatprep.mubr.bf16.mxu0 %v2482
        %2730 = vmatmul.mubr.bf16.gmra.mrb[0].mxu0 %v2481
        %v2731 = vpop.f32.mrb[0].mxu0
        %v2732 = vadd.f32 0.0, %v2731
        %v2733 = vpop.f32.mrb[0].mxu0
        %v2734 = vadd.f32 0.0, %v2733
        %v2735 = vpop.f32.mrb[0].mxu0
        %v2736 = vadd.f32 0.0, %v2735
        %v2737 = vpop.f32.mrb[0].mxu0
        %v2738 = vadd.f32 0.0, %v2737
        %2739 = vmatprep.mubr.bf16.mxu0 %v2484
        %2740 = vmatmul.mubr.bf16.gmra.mrb[0].mxu0 %v2483
        %v2741 = vpop.f32.mrb[0].mxu0
        %v2742 = vadd.f32 0.0, %v2741
        %v2743 = vpop.f32.mrb[0].mxu0
        %v2744 = vadd.f32 0.0, %v2743
        %v2745 = vpop.f32.mrb[0].mxu0
        %v2746 = vadd.f32 0.0, %v2745
        %v2747 = vpop.f32.mrb[0].mxu0
        %v2748 = vadd.f32 0.0, %v2747
        %2749 = vmatprep.mubr.bf16.mxu0 %v2486
        %2750 = vmatmul.mubr.bf16.gmra.mrb[0].mxu0 %v2485
        %v2751 = vpop.f32.mrb[0].mxu0
        %v2752 = vadd.f32 0.0, %v2751
        %v2753 = vpop.f32.mrb[0].mxu0
        %v2754 = vadd.f32 0.0, %v2753
        %v2755 = vpop.f32.mrb[0].mxu0
        %v2756 = vadd.f32 0.0, %v2755
        %v2757 = vpop.f32.mrb[0].mxu0
        %v2758 = vadd.f32 0.0, %v2757
        %2759 = vmatprep.mubr.bf16.mxu0 %v2488
        %2760 = vmatmul.mubr.bf16.gmra.mrb[0].mxu0 %v2487
        %v2761 = vpop.f32.mrb[0].mxu0
        %v2762 = vadd.f32 0.0, %v2761
        %v2763 = vpop.f32.mrb[0].mxu0
        %v2764 = vadd.f32 0.0, %v2763
        %v2765 = vpop.f32.mrb[0].mxu0
        %v2766 = vadd.f32 0.0, %v2765
        %v2767 = vpop.f32.mrb[0].mxu0
        %v2768 = vadd.f32 0.0, %v2767
        %2769 = vmatprep.mubr.bf16.mxu0 %v2490
        %2770 = vmatmul.mubr.bf16.gmra.mrb[0].mxu0 %v2489
        %v2771 = vpop.f32.mrb[0].mxu0
        %v2772 = vadd.f32 0.0, %v2771
        %v2773 = vpop.f32.mrb[0].mxu0
        %v2774 = vadd.f32 0.0, %v2773
        %v2775 = vpop.f32.mrb[0].mxu0
        %v2776 = vadd.f32 0.0, %v2775
        %v2777 = vpop.f32.mrb[0].mxu0
        %v2778 = vadd.f32 0.0, %v2777
        %2779 = vdwg.mxu0
        %v2780 = vadd.f32 %v2162, %v2702
        %v2781 = vadd.f32 %v2163, %v2704
        %v2782 = vadd.f32 %v2164, %v2706
        %v2783 = vadd.f32 %v2165, %v2708
        %v2784 = vadd.f32 %v2166, %v2712
        %v2785 = vadd.f32 %v2167, %v2714
        %v2786 = vadd.f32 %v2168, %v2716
        %v2787 = vadd.f32 %v2169, %v2718
        %v2788 = vadd.f32 %v2170, %v2722
        %v2789 = vadd.f32 %v2171, %v2724
        %v2790 = vadd.f32 %v2172, %v2726
        %v2791 = vadd.f32 %v2173, %v2728
        %v2792 = vadd.f32 %v2174, %v2732
        %v2793 = vadd.f32 %v2175, %v2734
        %v2794 = vadd.f32 %v2176, %v2736
        %v2795 = vadd.f32 %v2177, %v2738
        %v2796 = vadd.f32 %v2178, %v2742
        %v2797 = vadd.f32 %v2179, %v2744
        %v2798 = vadd.f32 %v2180, %v2746
        %v2799 = vadd.f32 %v2181, %v2748
        %v2800 = vadd.f32 %v2182, %v2752
        %v2801 = vadd.f32 %v2183, %v2754
        %v2802 = vadd.f32 %v2184, %v2756
        %v2803 = vadd.f32 %v2185, %v2758
        %v2804 = vadd.f32 %v2186, %v2762
        %v2805 = vadd.f32 %v2187, %v2764
        %v2806 = vadd.f32 %v2188, %v2766
        %v2807 = vadd.f32 %v2189, %v2768
        %v2808 = vadd.f32 %v2190, %v2772
        %v2809 = vadd.f32 %v2191, %v2774
        %v2810 = vadd.f32 %v2192, %v2776
        %v2811 = vadd.f32 %v2193, %v2778
        %v2812 = vld [vmem:[%s1759] sm:$0xee]
        %v2813 = vld [vmem:[%s1759 + $0x18] sm:$0xee]
        %v2814 = vld [vmem:[%s1759 + $0x30] sm:$0xee]
        %v2815 = vld [vmem:[%s1759 + $0x48] sm:$0xee]
        %v2816 = vld [vmem:[%s1759 + $0x60] sm:$0xee]
        %v2817 = vld [vmem:[%s1759 + $0x78] sm:$0xee]
        %v2818 = vld [vmem:[%s1759 + $0x90] sm:$0xee]
        %v2819 = vld [vmem:[%s1759 + $0xa8] sm:$0xee]
        %v2844 = vrot.slane %v2812, 5
        %v2845 = vrot.slane %v2844, 4
        %v2846 = vrot.slane %v2195, 5
        %v2847 = vsel %vm1297, %v2845, %v2846
        %v2848 = vrot.slane %v2846, 4
        %v2849 = vrot.slane %v2196, 5
        %v2850 = vsel %vm1297, %v2848, %v2849
        %v2851 = vrot.slane %v2813, 5
        %v2852 = vrot.slane %v2851, 4
        %v2853 = vrot.slane %v2198, 5
        %v2854 = vsel %vm1297, %v2852, %v2853
        %v2855 = vrot.slane %v2853, 4
        %v2856 = vrot.slane %v2199, 5
        %v2857 = vsel %vm1297, %v2855, %v2856
        %v2858 = vrot.slane %v2814, 5
        %v2859 = vrot.slane %v2858, 4
        %v2860 = vrot.slane %v2201, 5
        %v2861 = vsel %vm1297, %v2859, %v2860
        %v2862 = vrot.slane %v2860, 4
        %v2863 = vrot.slane %v2202, 5
        %v2864 = vsel %vm1297, %v2862, %v2863
        %v2865 = vrot.slane %v2815, 5
        %v2866 = vrot.slane %v2865, 4
        %v2867 = vrot.slane %v2204, 5
        %v2868 = vsel %vm1297, %v2866, %v2867
        %v2869 = vrot.slane %v2867, 4
        %v2870 = vrot.slane %v2205, 5
        %v2871 = vsel %vm1297, %v2869, %v2870
        %v2872 = vrot.slane %v2816, 5
        %v2873 = vrot.slane %v2872, 4
        %v2874 = vrot.slane %v2207, 5
        %v2875 = vsel %vm1297, %v2873, %v2874
        %v2876 = vrot.slane %v2874, 4
        %v2877 = vrot.slane %v2208, 5
        %v2878 = vsel %vm1297, %v2876, %v2877
        %v2879 = vrot.slane %v2817, 5
        %v2880 = vrot.slane %v2879, 4
        %v2881 = vrot.slane %v2210, 5
        %v2882 = vsel %vm1297, %v2880, %v2881
        %v2883 = vrot.slane %v2881, 4
        %v2884 = vrot.slane %v2211, 5
        %v2885 = vsel %vm1297, %v2883, %v2884
        %v2886 = vrot.slane %v2818, 5
        %v2887 = vrot.slane %v2886, 4
        %v2888 = vrot.slane %v2213, 5
        %v2889 = vsel %vm1297, %v2887, %v2888
        %v2890 = vrot.slane %v2888, 4
        %v2891 = vrot.slane %v2214, 5
        %v2892 = vsel %vm1297, %v2890, %v2891
        %v2893 = vrot.slane %v2819, 5
        %v2894 = vrot.slane %v2893, 4
        %v2895 = vrot.slane %v2216, 5
        %v2896 = vsel %vm1297, %v2894, %v2895
        %v2897 = vrot.slane %v2895, 4
        %v2898 = vrot.slane %v2217, 5
        %v2899 = vsel %vm1297, %v2897, %v2898
        %s2900 = scalar_lea.vmem [#allocation2], 1280
        %v2901 = vld [vmem:[%s2900] sm:$0xff]
        %v2902 = vld [vmem:[%s2900 + $0x8] sm:$0xff]
        %v2903 = vld [vmem:[%s2900 + $0x10] sm:$0xff]
        %v2904 = vld [vmem:[%s2900 + $0x18] sm:$0xff]
        %v2905 = vld [vmem:[%s2900 + $0x20] sm:$0xff]
        %v2906 = vld [vmem:[%s2900 + $0x28] sm:$0xff]
        %v2907 = vld [vmem:[%s2900 + $0x30] sm:$0xff]
        %v2908 = vld [vmem:[%s2900 + $0x38] sm:$0xff]
        %v2909 = vld [vmem:[%s2900 + $0x40] sm:$0xff]
        %v2910 = vld [vmem:[%s2900 + $0x48] sm:$0xff]
        %v2911 = vld [vmem:[%s2900 + $0x50] sm:$0xff]
        %v2912 = vld [vmem:[%s2900 + $0x58] sm:$0xff]
        %v2913 = vld [vmem:[%s2900 + $0x60] sm:$0xff]
        %v2914 = vld [vmem:[%s2900 + $0x68] sm:$0xff]
        %v2915 = vld [vmem:[%s2900 + $0x70] sm:$0xff]
        %v2916 = vld [vmem:[%s2900 + $0x78] sm:$0xff]
        %v2917 = vld [vmem:[%s2900 + $0x80] sm:$0xff]
        %v2918 = vld [vmem:[%s2900 + $0x88] sm:$0xff]
        %v2919 = vld [vmem:[%s2900 + $0x90] sm:$0xff]
        %v2920 = vld [vmem:[%s2900 + $0x98] sm:$0xff]
        %v2921 = vld [vmem:[%s2900 + $0xa0] sm:$0xff]
        %v2922 = vld [vmem:[%s2900 + $0xa8] sm:$0xff]
        %v2923 = vld [vmem:[%s2900 + $0xb0] sm:$0xff]
        %v2924 = vld [vmem:[%s2900 + $0xb8] sm:$0xff]
        %v2925 = vld [vmem:[%s2900 + $0xc0] sm:$0xff]
        %v2926 = vld [vmem:[%s2900 + $0xc8] sm:$0xff]
        %v2927 = vld [vmem:[%s2900 + $0xd0] sm:$0xff]
        %v2928 = vld [vmem:[%s2900 + $0xd8] sm:$0xff]
        %v2929 = vld [vmem:[%s2900 + $0xe0] sm:$0xff]
        %v2930 = vld [vmem:[%s2900 + $0xe8] sm:$0xff]
        %v2931 = vld [vmem:[%s2900 + $0xf0] sm:$0xff]
        %v2932 = vld [vmem:[%s2900 + $0xf8] sm:$0xff]
        %v2933 = vunpack.c.l.b16 %v2847
        %v2934 = vunpack.c.h.b16 %v2847
        %v2935 = vunpack.c.l.b16 %v2850
        %v2936 = vunpack.c.h.b16 %v2850
        %v2937 = vunpack.c.l.b16 %v2854
        %v2938 = vunpack.c.h.b16 %v2854
        %v2939 = vunpack.c.l.b16 %v2857
        %v2940 = vunpack.c.h.b16 %v2857
        %v2941 = vunpack.c.l.b16 %v2861
        %v2942 = vunpack.c.h.b16 %v2861
        %v2943 = vunpack.c.l.b16 %v2864
        %v2944 = vunpack.c.h.b16 %v2864
        %v2945 = vunpack.c.l.b16 %v2868
        %v2946 = vunpack.c.h.b16 %v2868
        %v2947 = vunpack.c.l.b16 %v2871
        %v2948 = vunpack.c.h.b16 %v2871
        %v2949 = vunpack.c.l.b16 %v2875
        %v2950 = vunpack.c.h.b16 %v2875
        %v2951 = vunpack.c.l.b16 %v2878
        %v2952 = vunpack.c.h.b16 %v2878
        %v2953 = vunpack.c.l.b16 %v2882
        %v2954 = vunpack.c.h.b16 %v2882
        %v2955 = vunpack.c.l.b16 %v2885
        %v2956 = vunpack.c.h.b16 %v2885
        %v2957 = vunpack.c.l.b16 %v2889
        %v2958 = vunpack.c.h.b16 %v2889
        %v2959 = vunpack.c.l.b16 %v2892
        %v2960 = vunpack.c.h.b16 %v2892
        %v2961 = vunpack.c.l.b16 %v2896
        %v2962 = vunpack.c.h.b16 %v2896
        %v2963 = vunpack.c.l.b16 %v2899
        %v2964 = vunpack.c.h.b16 %v2899
        %v2965 = vpack.c.b16 %v2935, %v2933
        %v2966 = vpack.c.b16 %v2936, %v2934
        %v2967 = vpack.c.b16 %v2939, %v2937
        %v2968 = vpack.c.b16 %v2940, %v2938
        %v2969 = vpack.c.b16 %v2943, %v2941
        %v2970 = vpack.c.b16 %v2944, %v2942
        %v2971 = vpack.c.b16 %v2947, %v2945
        %v2972 = vpack.c.b16 %v2948, %v2946
        %v2973 = vpack.c.b16 %v2951, %v2949
        %v2974 = vpack.c.b16 %v2952, %v2950
        %v2975 = vpack.c.b16 %v2955, %v2953
        %v2976 = vpack.c.b16 %v2956, %v2954
        %v2977 = vpack.c.b16 %v2959, %v2957
        %v2978 = vpack.c.b16 %v2960, %v2958
        %v2979 = vpack.c.b16 %v2963, %v2961
        %v2980 = vpack.c.b16 %v2964, %v2962
        %v3029 = vunpack.c.l.b16 %v2901
        %v3030 = vunpack.c.h.b16 %v2901
        %v3031 = vunpack.c.l.b16 %v2902
        %v3032 = vunpack.c.h.b16 %v2902
        %v3033 = vunpack.c.l.b16 %v2903
        %v3034 = vunpack.c.h.b16 %v2903
        %v3035 = vunpack.c.l.b16 %v2904
        %v3036 = vunpack.c.h.b16 %v2904
        %v3037 = vunpack.c.l.b16 %v2905
        %v3038 = vunpack.c.h.b16 %v2905
        %v3039 = vunpack.c.l.b16 %v2906
        %v3040 = vunpack.c.h.b16 %v2906
        %v3041 = vunpack.c.l.b16 %v2907
        %v3042 = vunpack.c.h.b16 %v2907
        %v3043 = vunpack.c.l.b16 %v2908
        %v3044 = vunpack.c.h.b16 %v2908
        %v3045 = vunpack.c.l.b16 %v2909
        %v3046 = vunpack.c.h.b16 %v2909
        %v3047 = vunpack.c.l.b16 %v2910
        %v3048 = vunpack.c.h.b16 %v2910
        %v3049 = vunpack.c.l.b16 %v2911
        %v3050 = vunpack.c.h.b16 %v2911
        %v3051 = vunpack.c.l.b16 %v2912
        %v3052 = vunpack.c.h.b16 %v2912
        %v3053 = vunpack.c.l.b16 %v2913
        %v3054 = vunpack.c.h.b16 %v2913
        %v3055 = vunpack.c.l.b16 %v2914
        %v3056 = vunpack.c.h.b16 %v2914
        %v3057 = vunpack.c.l.b16 %v2915
        %v3058 = vunpack.c.h.b16 %v2915
        %v3059 = vunpack.c.l.b16 %v2916
        %v3060 = vunpack.c.h.b16 %v2916
        %v3061 = vunpack.c.l.b16 %v2917
        %v3062 = vunpack.c.h.b16 %v2917
        %v3063 = vunpack.c.l.b16 %v2918
        %v3064 = vunpack.c.h.b16 %v2918
        %v3065 = vunpack.c.l.b16 %v2919
        %v3066 = vunpack.c.h.b16 %v2919
        %v3067 = vunpack.c.l.b16 %v2920
        %v3068 = vunpack.c.h.b16 %v2920
        %v3069 = vunpack.c.l.b16 %v2921
        %v3070 = vunpack.c.h.b16 %v2921
        %v3071 = vunpack.c.l.b16 %v2922
        %v3072 = vunpack.c.h.b16 %v2922
        %v3073 = vunpack.c.l.b16 %v2923
        %v3074 = vunpack.c.h.b16 %v2923
        %v3075 = vunpack.c.l.b16 %v2924
        %v3076 = vunpack.c.h.b16 %v2924
        %v3077 = vunpack.c.l.b16 %v2925
        %v3078 = vunpack.c.h.b16 %v2925
        %v3079 = vunpack.c.l.b16 %v2926
        %v3080 = vunpack.c.h.b16 %v2926
        %v3081 = vunpack.c.l.b16 %v2927
        %v3082 = vunpack.c.h.b16 %v2927
        %v3083 = vunpack.c.l.b16 %v2928
        %v3084 = vunpack.c.h.b16 %v2928
        %v3085 = vunpack.c.l.b16 %v2929
        %v3086 = vunpack.c.h.b16 %v2929
        %v3087 = vunpack.c.l.b16 %v2930
        %v3088 = vunpack.c.h.b16 %v2930
        %v3089 = vunpack.c.l.b16 %v2931
        %v3090 = vunpack.c.h.b16 %v2931
        %v3091 = vunpack.c.l.b16 %v2932
        %v3092 = vunpack.c.h.b16 %v2932
        %v3093 = vpack.c.b16 %v3031, %v3029
        %v3094 = vpack.c.b16 %v3032, %v3030
        %v3095 = vpack.c.b16 %v3035, %v3033
        %v3096 = vpack.c.b16 %v3036, %v3034
        %v3097 = vpack.c.b16 %v3039, %v3037
        %v3098 = vpack.c.b16 %v3040, %v3038
        %v3099 = vpack.c.b16 %v3043, %v3041
        %v3100 = vpack.c.b16 %v3044, %v3042
        %v3101 = vpack.c.b16 %v3047, %v3045
        %v3102 = vpack.c.b16 %v3048, %v3046
        %v3103 = vpack.c.b16 %v3051, %v3049
        %v3104 = vpack.c.b16 %v3052, %v3050
        %v3105 = vpack.c.b16 %v3055, %v3053
        %v3106 = vpack.c.b16 %v3056, %v3054
        %v3107 = vpack.c.b16 %v3059, %v3057
        %v3108 = vpack.c.b16 %v3060, %v3058
        %v3109 = vpack.c.b16 %v3063, %v3061
        %v3110 = vpack.c.b16 %v3064, %v3062
        %v3111 = vpack.c.b16 %v3067, %v3065
        %v3112 = vpack.c.b16 %v3068, %v3066
        %v3113 = vpack.c.b16 %v3071, %v3069
        %v3114 = vpack.c.b16 %v3072, %v3070
        %v3115 = vpack.c.b16 %v3075, %v3073
        %v3116 = vpack.c.b16 %v3076, %v3074
        %v3117 = vpack.c.b16 %v3079, %v3077
        %v3118 = vpack.c.b16 %v3080, %v3078
        %v3119 = vpack.c.b16 %v3083, %v3081
        %v3120 = vpack.c.b16 %v3084, %v3082
        %v3121 = vpack.c.b16 %v3087, %v3085
        %v3122 = vpack.c.b16 %v3088, %v3086
        %v3123 = vpack.c.b16 %v3091, %v3089
        %v3124 = vpack.c.b16 %v3092, %v3090
        %3157 = vmatprep.subr.bf16.mxu0 %v3094
        %3158 = vmatpush1.bf16.msra.mxu0 %v3093
        %3159 = vmatprep.subr.bf16.mxu0 %v3096
        %3160 = vmatpush1.bf16.msra.mxu0 %v3095
        %3161 = vmatprep.subr.bf16.mxu0 %v3098
        %3162 = vmatpush1.bf16.msra.mxu0 %v3097
        %3163 = vmatprep.subr.bf16.mxu0 %v3100
        %3164 = vmatpush1.bf16.msra.mxu0 %v3099
        %3165 = vmatprep.subr.bf16.mxu0 %v3102
        %3166 = vmatpush1.bf16.msra.mxu0 %v3101
        %3167 = vmatprep.subr.bf16.mxu0 %v3104
        %3168 = vmatpush1.bf16.msra.mxu0 %v3103
        %3169 = vmatprep.subr.bf16.mxu0 %v3106
        %3170 = vmatpush1.bf16.msra.mxu0 %v3105
        %3171 = vmatprep.subr.bf16.mxu0 %v3108
        %3172 = vmatpush1.bf16.msra.mxu0 %v3107
        %3173 = vmatprep.subr.bf16.mxu0 %v3110
        %3174 = vmatpush1.bf16.msra.mxu0 %v3109
        %3175 = vmatprep.subr.bf16.mxu0 %v3112
        %3176 = vmatpush1.bf16.msra.mxu0 %v3111
        %3177 = vmatprep.subr.bf16.mxu0 %v3114
        %3178 = vmatpush1.bf16.msra.mxu0 %v3113
        %3179 = vmatprep.subr.bf16.mxu0 %v3116
        %3180 = vmatpush1.bf16.msra.mxu0 %v3115
        %3181 = vmatprep.subr.bf16.mxu0 %v3118
        %3182 = vmatpush1.bf16.msra.mxu0 %v3117
        %3183 = vmatprep.subr.bf16.mxu0 %v3120
        %3184 = vmatpush1.bf16.msra.mxu0 %v3119
        %3185 = vmatprep.subr.bf16.mxu0 %v3122
        %3186 = vmatpush1.bf16.msra.mxu0 %v3121
        %3187 = vmatprep.subr.bf16.mxu0 %v3124
        %3188 = vmatpush1.bf16.msra.mxu0 %v3123
        %3189 = vmatprep.mubr.bf16.mxu0 %v2966
        %3190 = vmatmul.mubr.bf16.gmra.mrb[0].mxu0 %v2965
        %v3191 = vpop.f32.mrb[0].mxu0
        %v3192 = vadd.f32 0.0, %v3191
        %v3193 = vpop.f32.mrb[0].mxu0
        %v3194 = vadd.f32 0.0, %v3193
        %v3195 = vpop.f32.mrb[0].mxu0
        %v3196 = vadd.f32 0.0, %v3195
        %v3197 = vpop.f32.mrb[0].mxu0
        %v3198 = vadd.f32 0.0, %v3197
        %3199 = vmatprep.mubr.bf16.mxu0 %v2968
        %3200 = vmatmul.mubr.bf16.gmra.mrb[0].mxu0 %v2967
        %v3201 = vpop.f32.mrb[0].mxu0
        %v3202 = vadd.f32 0.0, %v3201
        %v3203 = vpop.f32.mrb[0].mxu0
        %v3204 = vadd.f32 0.0, %v3203
        %v3205 = vpop.f32.mrb[0].mxu0
        %v3206 = vadd.f32 0.0, %v3205
        %v3207 = vpop.f32.mrb[0].mxu0
        %v3208 = vadd.f32 0.0, %v3207
        %3209 = vmatprep.mubr.bf16.mxu0 %v2970
        %3210 = vmatmul.mubr.bf16.gmra.mrb[0].mxu0 %v2969
        %v3211 = vpop.f32.mrb[0].mxu0
        %v3212 = vadd.f32 0.0, %v3211
        %v3213 = vpop.f32.mrb[0].mxu0
        %v3214 = vadd.f32 0.0, %v3213
        %v3215 = vpop.f32.mrb[0].mxu0
        %v3216 = vadd.f32 0.0, %v3215
        %v3217 = vpop.f32.mrb[0].mxu0
        %v3218 = vadd.f32 0.0, %v3217
        %3219 = vmatprep.mubr.bf16.mxu0 %v2972
        %3220 = vmatmul.mubr.bf16.gmra.mrb[0].mxu0 %v2971
        %v3221 = vpop.f32.mrb[0].mxu0
        %v3222 = vadd.f32 0.0, %v3221
        %v3223 = vpop.f32.mrb[0].mxu0
        %v3224 = vadd.f32 0.0, %v3223
        %v3225 = vpop.f32.mrb[0].mxu0
        %v3226 = vadd.f32 0.0, %v3225
        %v3227 = vpop.f32.mrb[0].mxu0
        %v3228 = vadd.f32 0.0, %v3227
        %3229 = vmatprep.mubr.bf16.mxu0 %v2974
        %3230 = vmatmul.mubr.bf16.gmra.mrb[0].mxu0 %v2973
        %v3231 = vpop.f32.mrb[0].mxu0
        %v3232 = vadd.f32 0.0, %v3231
        %v3233 = vpop.f32.mrb[0].mxu0
        %v3234 = vadd.f32 0.0, %v3233
        %v3235 = vpop.f32.mrb[0].mxu0
        %v3236 = vadd.f32 0.0, %v3235
        %v3237 = vpop.f32.mrb[0].mxu0
        %v3238 = vadd.f32 0.0, %v3237
        %3239 = vmatprep.mubr.bf16.mxu0 %v2976
        %3240 = vmatmul.mubr.bf16.gmra.mrb[0].mxu0 %v2975
        %v3241 = vpop.f32.mrb[0].mxu0
        %v3242 = vadd.f32 0.0, %v3241
        %v3243 = vpop.f32.mrb[0].mxu0
        %v3244 = vadd.f32 0.0, %v3243
        %v3245 = vpop.f32.mrb[0].mxu0
        %v3246 = vadd.f32 0.0, %v3245
        %v3247 = vpop.f32.mrb[0].mxu0
        %v3248 = vadd.f32 0.0, %v3247
        %3249 = vmatprep.mubr.bf16.mxu0 %v2978
        %3250 = vmatmul.mubr.bf16.gmra.mrb[0].mxu0 %v2977
        %v3251 = vpop.f32.mrb[0].mxu0
        %v3252 = vadd.f32 0.0, %v3251
        %v3253 = vpop.f32.mrb[0].mxu0
        %v3254 = vadd.f32 0.0, %v3253
        %v3255 = vpop.f32.mrb[0].mxu0
        %v3256 = vadd.f32 0.0, %v3255
        %v3257 = vpop.f32.mrb[0].mxu0
        %v3258 = vadd.f32 0.0, %v3257
        %3259 = vmatprep.mubr.bf16.mxu0 %v2980
        %3260 = vmatmul.mubr.bf16.gmra.mrb[0].mxu0 %v2979
        %v3261 = vpop.f32.mrb[0].mxu0
        %v3262 = vadd.f32 0.0, %v3261
        %v3263 = vpop.f32.mrb[0].mxu0
        %v3264 = vadd.f32 0.0, %v3263
        %v3265 = vpop.f32.mrb[0].mxu0
        %v3266 = vadd.f32 0.0, %v3265
        %v3267 = vpop.f32.mrb[0].mxu0
        %v3268 = vadd.f32 0.0, %v3267
        %3269 = vdwg.mxu0
        %v3270 = vadd.f32 %v2780, %v3192
        %v3271 = vadd.f32 %v2781, %v3194
        %v3272 = vadd.f32 %v2782, %v3196
        %v3273 = vadd.f32 %v2783, %v3198
        %v3274 = vadd.f32 %v2784, %v3202
        %v3275 = vadd.f32 %v2785, %v3204
        %v3276 = vadd.f32 %v2786, %v3206
        %v3277 = vadd.f32 %v2787, %v3208
        %v3278 = vadd.f32 %v2788, %v3212
        %v3279 = vadd.f32 %v2789, %v3214
        %v3280 = vadd.f32 %v2790, %v3216
        %v3281 = vadd.f32 %v2791, %v3218
        %v3282 = vadd.f32 %v2792, %v3222
        %v3283 = vadd.f32 %v2793, %v3224
        %v3284 = vadd.f32 %v2794, %v3226
        %v3285 = vadd.f32 %v2795, %v3228
        %v3286 = vadd.f32 %v2796, %v3232
        %v3287 = vadd.f32 %v2797, %v3234
        %v3288 = vadd.f32 %v2798, %v3236
        %v3289 = vadd.f32 %v2799, %v3238
        %v3290 = vadd.f32 %v2800, %v3242
        %v3291 = vadd.f32 %v2801, %v3244
        %v3292 = vadd.f32 %v2802, %v3246
        %v3293 = vadd.f32 %v2803, %v3248
        %v3294 = vadd.f32 %v2804, %v3252
        %v3295 = vadd.f32 %v2805, %v3254
        %v3296 = vadd.f32 %v2806, %v3256
        %v3297 = vadd.f32 %v2807, %v3258
        %v3298 = vadd.f32 %v2808, %v3262
        %v3299 = vadd.f32 %v2809, %v3264
        %v3300 = vadd.f32 %v2810, %v3266
        %v3301 = vadd.f32 %v2811, %v3268
        %s3302 = sadd.s32 %s293, 2
        %s3303 = smul.u32 %s3302, 6
        %s3304 = smul.addr %s3303, 4
        %s3305 = scalar_lea.vmem %s291, %s3304
        %v3306 = vld [vmem:[%s3305] sm:$0xff]
        %v3307 = vld [vmem:[%s3305 + $0x8] sm:$0xff]
        %v3308 = vld [vmem:[%s3305 + $0x18] sm:$0xff]
        %v3309 = vld [vmem:[%s3305 + $0x20] sm:$0xff]
        %v3310 = vld [vmem:[%s3305 + $0x30] sm:$0xff]
        %v3311 = vld [vmem:[%s3305 + $0x38] sm:$0xff]
        %v3312 = vld [vmem:[%s3305 + $0x48] sm:$0xff]
        %v3313 = vld [vmem:[%s3305 + $0x50] sm:$0xff]
        %v3314 = vld [vmem:[%s3305 + $0x60] sm:$0xff]
        %v3315 = vld [vmem:[%s3305 + $0x68] sm:$0xff]
        %v3316 = vld [vmem:[%s3305 + $0x78] sm:$0xff]
        %v3317 = vld [vmem:[%s3305 + $0x80] sm:$0xff]
        %v3318 = vld [vmem:[%s3305 + $0x90] sm:$0xff]
        %v3319 = vld [vmem:[%s3305 + $0x98] sm:$0xff]
        %v3320 = vld [vmem:[%s3305 + $0xa8] sm:$0xff]
        %v3321 = vld [vmem:[%s3305 + $0xb0] sm:$0xff]
        %s3322 = scalar_lea.vmem [#allocation2], 1536
        %v3323 = vld [vmem:[%s3322] sm:$0xff]
        %v3324 = vld [vmem:[%s3322 + $0x8] sm:$0xff]
        %v3325 = vld [vmem:[%s3322 + $0x10] sm:$0xff]
        %v3326 = vld [vmem:[%s3322 + $0x18] sm:$0xff]
        %v3327 = vld [vmem:[%s3322 + $0x20] sm:$0xff]
        %v3328 = vld [vmem:[%s3322 + $0x28] sm:$0xff]
        %v3329 = vld [vmem:[%s3322 + $0x30] sm:$0xff]
        %v3330 = vld [vmem:[%s3322 + $0x38] sm:$0xff]
        %v3331 = vld [vmem:[%s3322 + $0x40] sm:$0xff]
        %v3332 = vld [vmem:[%s3322 + $0x48] sm:$0xff]
        %v3333 = vld [vmem:[%s3322 + $0x50] sm:$0xff]
        %v3334 = vld [vmem:[%s3322 + $0x58] sm:$0xff]
        %v3335 = vld [vmem:[%s3322 + $0x60] sm:$0xff]
        %v3336 = vld [vmem:[%s3322 + $0x68] sm:$0xff]
        %v3337 = vld [vmem:[%s3322 + $0x70] sm:$0xff]
        %v3338 = vld [vmem:[%s3322 + $0x78] sm:$0xff]
        %v3339 = vld [vmem:[%s3322 + $0x80] sm:$0xff]
        %v3340 = vld [vmem:[%s3322 + $0x88] sm:$0xff]
        %v3341 = vld [vmem:[%s3322 + $0x90] sm:$0xff]
        %v3342 = vld [vmem:[%s3322 + $0x98] sm:$0xff]
        %v3343 = vld [vmem:[%s3322 + $0xa0] sm:$0xff]
        %v3344 = vld [vmem:[%s3322 + $0xa8] sm:$0xff]
        %v3345 = vld [vmem:[%s3322 + $0xb0] sm:$0xff]
        %v3346 = vld [vmem:[%s3322 + $0xb8] sm:$0xff]
        %v3347 = vld [vmem:[%s3322 + $0xc0] sm:$0xff]
        %v3348 = vld [vmem:[%s3322 + $0xc8] sm:$0xff]
        %v3349 = vld [vmem:[%s3322 + $0xd0] sm:$0xff]
        %v3350 = vld [vmem:[%s3322 + $0xd8] sm:$0xff]
        %v3351 = vld [vmem:[%s3322 + $0xe0] sm:$0xff]
        %v3352 = vld [vmem:[%s3322 + $0xe8] sm:$0xff]
        %v3353 = vld [vmem:[%s3322 + $0xf0] sm:$0xff]
        %v3354 = vld [vmem:[%s3322 + $0xf8] sm:$0xff]
        %v3371 = vunpack.c.l.b16 %v3306
        %v3372 = vunpack.c.h.b16 %v3306
        %v3373 = vunpack.c.l.b16 %v3307
        %v3374 = vunpack.c.h.b16 %v3307
        %v3375 = vunpack.c.l.b16 %v3308
        %v3376 = vunpack.c.h.b16 %v3308
        %v3377 = vunpack.c.l.b16 %v3309
        %v3378 = vunpack.c.h.b16 %v3309
        %v3379 = vunpack.c.l.b16 %v3310
        %v3380 = vunpack.c.h.b16 %v3310
        %v3381 = vunpack.c.l.b16 %v3311
        %v3382 = vunpack.c.h.b16 %v3311
        %v3383 = vunpack.c.l.b16 %v3312
        %v3384 = vunpack.c.h.b16 %v3312
        %v3385 = vunpack.c.l.b16 %v3313
        %v3386 = vunpack.c.h.b16 %v3313
        %v3387 = vunpack.c.l.b16 %v3314
        %v3388 = vunpack.c.h.b16 %v3314
        %v3389 = vunpack.c.l.b16 %v3315
        %v3390 = vunpack.c.h.b16 %v3315
        %v3391 = vunpack.c.l.b16 %v3316
        %v3392 = vunpack.c.h.b16 %v3316
        %v3393 = vunpack.c.l.b16 %v3317
        %v3394 = vunpack.c.h.b16 %v3317
        %v3395 = vunpack.c.l.b16 %v3318
        %v3396 = vunpack.c.h.b16 %v3318
        %v3397 = vunpack.c.l.b16 %v3319
        %v3398 = vunpack.c.h.b16 %v3319
        %v3399 = vunpack.c.l.b16 %v3320
        %v3400 = vunpack.c.h.b16 %v3320
        %v3401 = vunpack.c.l.b16 %v3321
        %v3402 = vunpack.c.h.b16 %v3321
        %v3403 = vpack.c.b16 %v3373, %v3371
        %v3404 = vpack.c.b16 %v3374, %v3372
        %v3405 = vpack.c.b16 %v3377, %v3375
        %v3406 = vpack.c.b16 %v3378, %v3376
        %v3407 = vpack.c.b16 %v3381, %v3379
        %v3408 = vpack.c.b16 %v3382, %v3380
        %v3409 = vpack.c.b16 %v3385, %v3383
        %v3410 = vpack.c.b16 %v3386, %v3384
        %v3411 = vpack.c.b16 %v3389, %v3387
        %v3412 = vpack.c.b16 %v3390, %v3388
        %v3413 = vpack.c.b16 %v3393, %v3391
        %v3414 = vpack.c.b16 %v3394, %v3392
        %v3415 = vpack.c.b16 %v3397, %v3395
        %v3416 = vpack.c.b16 %v3398, %v3396
        %v3417 = vpack.c.b16 %v3401, %v3399
        %v3418 = vpack.c.b16 %v3402, %v3400
        %v3467 = vunpack.c.l.b16 %v3323
        %v3468 = vunpack.c.h.b16 %v3323
        %v3469 = vunpack.c.l.b16 %v3324
        %v3470 = vunpack.c.h.b16 %v3324
        %v3471 = vunpack.c.l.b16 %v3325
        %v3472 = vunpack.c.h.b16 %v3325
        %v3473 = vunpack.c.l.b16 %v3326
        %v3474 = vunpack.c.h.b16 %v3326
        %v3475 = vunpack.c.l.b16 %v3327
        %v3476 = vunpack.c.h.b16 %v3327
        %v3477 = vunpack.c.l.b16 %v3328
        %v3478 = vunpack.c.h.b16 %v3328
        %v3479 = vunpack.c.l.b16 %v3329
        %v3480 = vunpack.c.h.b16 %v3329
        %v3481 = vunpack.c.l.b16 %v3330
        %v3482 = vunpack.c.h.b16 %v3330
        %v3483 = vunpack.c.l.b16 %v3331
        %v3484 = vunpack.c.h.b16 %v3331
        %v3485 = vunpack.c.l.b16 %v3332
        %v3486 = vunpack.c.h.b16 %v3332
        %v3487 = vunpack.c.l.b16 %v3333
        %v3488 = vunpack.c.h.b16 %v3333
        %v3489 = vunpack.c.l.b16 %v3334
        %v3490 = vunpack.c.h.b16 %v3334
        %v3491 = vunpack.c.l.b16 %v3335
        %v3492 = vunpack.c.h.b16 %v3335
        %v3493 = vunpack.c.l.b16 %v3336
        %v3494 = vunpack.c.h.b16 %v3336
        %v3495 = vunpack.c.l.b16 %v3337
        %v3496 = vunpack.c.h.b16 %v3337
        %v3497 = vunpack.c.l.b16 %v3338
        %v3498 = vunpack.c.h.b16 %v3338
        %v3499 = vunpack.c.l.b16 %v3339
        %v3500 = vunpack.c.h.b16 %v3339
        %v3501 = vunpack.c.l.b16 %v3340
        %v3502 = vunpack.c.h.b16 %v3340
        %v3503 = vunpack.c.l.b16 %v3341
        %v3504 = vunpack.c.h.b16 %v3341
        %v3505 = vunpack.c.l.b16 %v3342
        %v3506 = vunpack.c.h.b16 %v3342
        %v3507 = vunpack.c.l.b16 %v3343
        %v3508 = vunpack.c.h.b16 %v3343
        %v3509 = vunpack.c.l.b16 %v3344
        %v3510 = vunpack.c.h.b16 %v3344
        %v3511 = vunpack.c.l.b16 %v3345
        %v3512 = vunpack.c.h.b16 %v3345
        %v3513 = vunpack.c.l.b16 %v3346
        %v3514 = vunpack.c.h.b16 %v3346
        %v3515 = vunpack.c.l.b16 %v3347
        %v3516 = vunpack.c.h.b16 %v3347
        %v3517 = vunpack.c.l.b16 %v3348
        %v3518 = vunpack.c.h.b16 %v3348
        %v3519 = vunpack.c.l.b16 %v3349
        %v3520 = vunpack.c.h.b16 %v3349
        %v3521 = vunpack.c.l.b16 %v3350
        %v3522 = vunpack.c.h.b16 %v3350
        %v3523 = vunpack.c.l.b16 %v3351
        %v3524 = vunpack.c.h.b16 %v3351
        %v3525 = vunpack.c.l.b16 %v3352
        %v3526 = vunpack.c.h.b16 %v3352
        %v3527 = vunpack.c.l.b16 %v3353
        %v3528 = vunpack.c.h.b16 %v3353
        %v3529 = vunpack.c.l.b16 %v3354
        %v3530 = vunpack.c.h.b16 %v3354
        %v3531 = vpack.c.b16 %v3469, %v3467
        %v3532 = vpack.c.b16 %v3470, %v3468
        %v3533 = vpack.c.b16 %v3473, %v3471
        %v3534 = vpack.c.b16 %v3474, %v3472
        %v3535 = vpack.c.b16 %v3477, %v3475
        %v3536 = vpack.c.b16 %v3478, %v3476
        %v3537 = vpack.c.b16 %v3481, %v3479
        %v3538 = vpack.c.b16 %v3482, %v3480
        %v3539 = vpack.c.b16 %v3485, %v3483
        %v3540 = vpack.c.b16 %v3486, %v3484
        %v3541 = vpack.c.b16 %v3489, %v3487
        %v3542 = vpack.c.b16 %v3490, %v3488
        %v3543 = vpack.c.b16 %v3493, %v3491
        %v3544 = vpack.c.b16 %v3494, %v3492
        %v3545 = vpack.c.b16 %v3497, %v3495
        %v3546 = vpack.c.b16 %v3498, %v3496
        %v3547 = vpack.c.b16 %v3501, %v3499
        %v3548 = vpack.c.b16 %v3502, %v3500
        %v3549 = vpack.c.b16 %v3505, %v3503
        %v3550 = vpack.c.b16 %v3506, %v3504
        %v3551 = vpack.c.b16 %v3509, %v3507
        %v3552 = vpack.c.b16 %v3510, %v3508
        %v3553 = vpack.c.b16 %v3513, %v3511
        %v3554 = vpack.c.b16 %v3514, %v3512
        %v3555 = vpack.c.b16 %v3517, %v3515
        %v3556 = vpack.c.b16 %v3518, %v3516
        %v3557 = vpack.c.b16 %v3521, %v3519
        %v3558 = vpack.c.b16 %v3522, %v3520
        %v3559 = vpack.c.b16 %v3525, %v3523
        %v3560 = vpack.c.b16 %v3526, %v3524
        %v3561 = vpack.c.b16 %v3529, %v3527
        %v3562 = vpack.c.b16 %v3530, %v3528
        %3595 = vmatprep.subr.bf16.mxu0 %v3532
        %3596 = vmatpush1.bf16.msra.mxu0 %v3531
        %3597 = vmatprep.subr.bf16.mxu0 %v3534
        %3598 = vmatpush1.bf16.msra.mxu0 %v3533
        %3599 = vmatprep.subr.bf16.mxu0 %v3536
        %3600 = vmatpush1.bf16.msra.mxu0 %v3535
        %3601 = vmatprep.subr.bf16.mxu0 %v3538
        %3602 = vmatpush1.bf16.msra.mxu0 %v3537
        %3603 = vmatprep.subr.bf16.mxu0 %v3540
        %3604 = vmatpush1.bf16.msra.mxu0 %v3539
        %3605 = vmatprep.subr.bf16.mxu0 %v3542
        %3606 = vmatpush1.bf16.msra.mxu0 %v3541
        %3607 = vmatprep.subr.bf16.mxu0 %v3544
        %3608 = vmatpush1.bf16.msra.mxu0 %v3543
        %3609 = vmatprep.subr.bf16.mxu0 %v3546
        %3610 = vmatpush1.bf16.msra.mxu0 %v3545
        %3611 = vmatprep.subr.bf16.mxu0 %v3548
        %3612 = vmatpush1.bf16.msra.mxu0 %v3547
        %3613 = vmatprep.subr.bf16.mxu0 %v3550
        %3614 = vmatpush1.bf16.msra.mxu0 %v3549
        %3615 = vmatprep.subr.bf16.mxu0 %v3552
        %3616 = vmatpush1.bf16.msra.mxu0 %v3551
        %3617 = vmatprep.subr.bf16.mxu0 %v3554
        %3618 = vmatpush1.bf16.msra.mxu0 %v3553
        %3619 = vmatprep.subr.bf16.mxu0 %v3556
        %3620 = vmatpush1.bf16.msra.mxu0 %v3555
        %3621 = vmatprep.subr.bf16.mxu0 %v3558
        %3622 = vmatpush1.bf16.msra.mxu0 %v3557
        %3623 = vmatprep.subr.bf16.mxu0 %v3560
        %3624 = vmatpush1.bf16.msra.mxu0 %v3559
        %3625 = vmatprep.subr.bf16.mxu0 %v3562
        %3626 = vmatpush1.bf16.msra.mxu0 %v3561
        %3627 = vmatprep.mubr.bf16.mxu0 %v3404
        %3628 = vmatmul.mubr.bf16.gmra.mrb[0].mxu0 %v3403
        %v3629 = vpop.f32.mrb[0].mxu0
        %v3630 = vadd.f32 0.0, %v3629
        %v3631 = vpop.f32.mrb[0].mxu0
        %v3632 = vadd.f32 0.0, %v3631
        %v3633 = vpop.f32.mrb[0].mxu0
        %v3634 = vadd.f32 0.0, %v3633
        %v3635 = vpop.f32.mrb[0].mxu0
        %v3636 = vadd.f32 0.0, %v3635
        %3637 = vmatprep.mubr.bf16.mxu0 %v3406
        %3638 = vmatmul.mubr.bf16.gmra.mrb[0].mxu0 %v3405
        %v3639 = vpop.f32.mrb[0].mxu0
        %v3640 = vadd.f32 0.0, %v3639
        %v3641 = vpop.f32.mrb[0].mxu0
        %v3642 = vadd.f32 0.0, %v3641
        %v3643 = vpop.f32.mrb[0].mxu0
        %v3644 = vadd.f32 0.0, %v3643
        %v3645 = vpop.f32.mrb[0].mxu0
        %v3646 = vadd.f32 0.0, %v3645
        %3647 = vmatprep.mubr.bf16.mxu0 %v3408
        %3648 = vmatmul.mubr.bf16.gmra.mrb[0].mxu0 %v3407
        %v3649 = vpop.f32.mrb[0].mxu0
        %v3650 = vadd.f32 0.0, %v3649
        %v3651 = vpop.f32.mrb[0].mxu0
        %v3652 = vadd.f32 0.0, %v3651
        %v3653 = vpop.f32.mrb[0].mxu0
        %v3654 = vadd.f32 0.0, %v3653
        %v3655 = vpop.f32.mrb[0].mxu0
        %v3656 = vadd.f32 0.0, %v3655
        %3657 = vmatprep.mubr.bf16.mxu0 %v3410
        %3658 = vmatmul.mubr.bf16.gmra.mrb[0].mxu0 %v3409
        %v3659 = vpop.f32.mrb[0].mxu0
        %v3660 = vadd.f32 0.0, %v3659
        %v3661 = vpop.f32.mrb[0].mxu0
        %v3662 = vadd.f32 0.0, %v3661
        %v3663 = vpop.f32.mrb[0].mxu0
        %v3664 = vadd.f32 0.0, %v3663
        %v3665 = vpop.f32.mrb[0].mxu0
        %v3666 = vadd.f32 0.0, %v3665
        %3667 = vmatprep.mubr.bf16.mxu0 %v3412
        %3668 = vmatmul.mubr.bf16.gmra.mrb[0].mxu0 %v3411
        %v3669 = vpop.f32.mrb[0].mxu0
        %v3670 = vadd.f32 0.0, %v3669
        %v3671 = vpop.f32.mrb[0].mxu0
        %v3672 = vadd.f32 0.0, %v3671
        %v3673 = vpop.f32.mrb[0].mxu0
        %v3674 = vadd.f32 0.0, %v3673
        %v3675 = vpop.f32.mrb[0].mxu0
        %v3676 = vadd.f32 0.0, %v3675
        %3677 = vmatprep.mubr.bf16.mxu0 %v3414
        %3678 = vmatmul.mubr.bf16.gmra.mrb[0].mxu0 %v3413
        %v3679 = vpop.f32.mrb[0].mxu0
        %v3680 = vadd.f32 0.0, %v3679
        %v3681 = vpop.f32.mrb[0].mxu0
        %v3682 = vadd.f32 0.0, %v3681
        %v3683 = vpop.f32.mrb[0].mxu0
        %v3684 = vadd.f32 0.0, %v3683
        %v3685 = vpop.f32.mrb[0].mxu0
        %v3686 = vadd.f32 0.0, %v3685
        %3687 = vmatprep.mubr.bf16.mxu0 %v3416
        %3688 = vmatmul.mubr.bf16.gmra.mrb[0].mxu0 %v3415
        %v3689 = vpop.f32.mrb[0].mxu0
        %v3690 = vadd.f32 0.0, %v3689
        %v3691 = vpop.f32.mrb[0].mxu0
        %v3692 = vadd.f32 0.0, %v3691
        %v3693 = vpop.f32.mrb[0].mxu0
        %v3694 = vadd.f32 0.0, %v3693
        %v3695 = vpop.f32.mrb[0].mxu0
        %v3696 = vadd.f32 0.0, %v3695
        %3697 = vmatprep.mubr.bf16.mxu0 %v3418
        %3698 = vmatmul.mubr.bf16.gmra.mrb[0].mxu0 %v3417
        %v3699 = vpop.f32.mrb[0].mxu0
        %v3700 = vadd.f32 0.0, %v3699
        %v3701 = vpop.f32.mrb[0].mxu0
        %v3702 = vadd.f32 0.0, %v3701
        %v3703 = vpop.f32.mrb[0].mxu0
        %v3704 = vadd.f32 0.0, %v3703
        %v3705 = vpop.f32.mrb[0].mxu0
        %v3706 = vadd.f32 0.0, %v3705
        %3707 = vdwg.mxu0
        %v3708 = vadd.f32 %v3270, %v3630
        %v3709 = vadd.f32 %v3271, %v3632
        %v3710 = vadd.f32 %v3272, %v3634
        %v3711 = vadd.f32 %v3273, %v3636
        %v3712 = vadd.f32 %v3274, %v3640
        %v3713 = vadd.f32 %v3275, %v3642
        %v3714 = vadd.f32 %v3276, %v3644
        %v3715 = vadd.f32 %v3277, %v3646
        %v3716 = vadd.f32 %v3278, %v3650
        %v3717 = vadd.f32 %v3279, %v3652
        %v3718 = vadd.f32 %v3280, %v3654
        %v3719 = vadd.f32 %v3281, %v3656
        %v3720 = vadd.f32 %v3282, %v3660
        %v3721 = vadd.f32 %v3283, %v3662
        %v3722 = vadd.f32 %v3284, %v3664
        %v3723 = vadd.f32 %v3285, %v3666
        %v3724 = vadd.f32 %v3286, %v3670
        %v3725 = vadd.f32 %v3287, %v3672
        %v3726 = vadd.f32 %v3288, %v3674
        %v3727 = vadd.f32 %v3289, %v3676
        %v3728 = vadd.f32 %v3290, %v3680
        %v3729 = vadd.f32 %v3291, %v3682
        %v3730 = vadd.f32 %v3292, %v3684
        %v3731 = vadd.f32 %v3293, %v3686
        %v3732 = vadd.f32 %v3294, %v3690
        %v3733 = vadd.f32 %v3295, %v3692
        %v3734 = vadd.f32 %v3296, %v3694
        %v3735 = vadd.f32 %v3297, %v3696
        %v3736 = vadd.f32 %v3298, %v3700
        %v3737 = vadd.f32 %v3299, %v3702
        %v3738 = vadd.f32 %v3300, %v3704
        %v3739 = vadd.f32 %v3301, %v3706
        %v3740 = vld [vmem:[%s3305] sm:$0xff]
        %v3741 = vld [vmem:[%s3305 + $0x8] sm:$0xff]
        %v3742 = vld [vmem:[%s3305 + $0x10] sm:$0x11]
        %v3743 = vld [vmem:[%s3305 + $0x18] sm:$0xff]
        %v3744 = vld [vmem:[%s3305 + $0x20] sm:$0xff]
        %v3745 = vld [vmem:[%s3305 + $0x28] sm:$0x11]
        %v3746 = vld [vmem:[%s3305 + $0x30] sm:$0xff]
        %v3747 = vld [vmem:[%s3305 + $0x38] sm:$0xff]
        %v3748 = vld [vmem:[%s3305 + $0x40] sm:$0x11]
        %v3749 = vld [vmem:[%s3305 + $0x48] sm:$0xff]
        %v3750 = vld [vmem:[%s3305 + $0x50] sm:$0xff]
        %v3751 = vld [vmem:[%s3305 + $0x58] sm:$0x11]
        %v3752 = vld [vmem:[%s3305 + $0x60] sm:$0xff]
        %v3753 = vld [vmem:[%s3305 + $0x68] sm:$0xff]
        %v3754 = vld [vmem:[%s3305 + $0x70] sm:$0x11]
        %v3755 = vld [vmem:[%s3305 + $0x78] sm:$0xff]
        %v3756 = vld [vmem:[%s3305 + $0x80] sm:$0xff]
        %v3757 = vld [vmem:[%s3305 + $0x88] sm:$0x11]
        %v3758 = vld [vmem:[%s3305 + $0x90] sm:$0xff]
        %v3759 = vld [vmem:[%s3305 + $0x98] sm:$0xff]
        %v3760 = vld [vmem:[%s3305 + $0xa0] sm:$0x11]
        %v3761 = vld [vmem:[%s3305 + $0xa8] sm:$0xff]
        %v3762 = vld [vmem:[%s3305 + $0xb0] sm:$0xff]
        %v3763 = vld [vmem:[%s3305 + $0xb8] sm:$0x11]
        %v3765 = vshrl.u32 %v3740, 16
        %v3767 = vrot.slane %v3765, 4
        %v3768 = vshll.u32 %v3740, 16
        %v3770 = vrot.slane %v3768, 5
        %v3771 = vor.u32 %v3767, %v3770
        %v3772 = vrot.slane %v3771, 4
        %v3774 = vshll.u32 %v3741, 16
        %v3776 = vrot.slane %v3774, 5
        %v3777 = vsel %vm355, %v3772, %v3776
        %v3778 = vshrl.u32 %v3741, 16
        %v3780 = vrot.slane %v3778, 4
        %v3781 = vor.u32 %v3780, %v3776
        %v3782 = vrot.slane %v3781, 4
        %v3784 = vshll.u32 %v3742, 16
        %v3786 = vrot.slane %v3784, 5
        %v3787 = vsel %vm355, %v3782, %v3786
        %v3789 = vshrl.u32 %v3743, 16
        %v3791 = vrot.slane %v3789, 4
        %v3792 = vshll.u32 %v3743, 16
        %v3794 = vrot.slane %v3792, 5
        %v3795 = vor.u32 %v3791, %v3794
        %v3796 = vrot.slane %v3795, 4
        %v3798 = vshll.u32 %v3744, 16
        %v3800 = vrot.slane %v3798, 5
        %v3801 = vsel %vm355, %v3796, %v3800
        %v3802 = vshrl.u32 %v3744, 16
        %v3804 = vrot.slane %v3802, 4
        %v3805 = vor.u32 %v3804, %v3800
        %v3806 = vrot.slane %v3805, 4
        %v3808 = vshll.u32 %v3745, 16
        %v3810 = vrot.slane %v3808, 5
        %v3811 = vsel %vm355, %v3806, %v3810
        %v3813 = vshrl.u32 %v3746, 16
        %v3815 = vrot.slane %v3813, 4
        %v3816 = vshll.u32 %v3746, 16
        %v3818 = vrot.slane %v3816, 5
        %v3819 = vor.u32 %v3815, %v3818
        %v3820 = vrot.slane %v3819, 4
        %v3822 = vshll.u32 %v3747, 16
        %v3824 = vrot.slane %v3822, 5
        %v3825 = vsel %vm355, %v3820, %v3824
        %v3826 = vshrl.u32 %v3747, 16
        %v3828 = vrot.slane %v3826, 4
        %v3829 = vor.u32 %v3828, %v3824
        %v3830 = vrot.slane %v3829, 4
        %v3832 = vshll.u32 %v3748, 16
        %v3834 = vrot.slane %v3832, 5
        %v3835 = vsel %vm355, %v3830, %v3834
        %v3837 = vshrl.u32 %v3749, 16
        %v3839 = vrot.slane %v3837, 4
        %v3840 = vshll.u32 %v3749, 16
        %v3842 = vrot.slane %v3840, 5
        %v3843 = vor.u32 %v3839, %v3842
        %v3844 = vrot.slane %v3843, 4
        %v3846 = vshll.u32 %v3750, 16
        %v3848 = vrot.slane %v3846, 5
        %v3849 = vsel %vm355, %v3844, %v3848
        %v3850 = vshrl.u32 %v3750, 16
        %v3852 = vrot.slane %v3850, 4
        %v3853 = vor.u32 %v3852, %v3848
        %v3854 = vrot.slane %v3853, 4
        %v3856 = vshll.u32 %v3751, 16
        %v3858 = vrot.slane %v3856, 5
        %v3859 = vsel %vm355, %v3854, %v3858
        %v3861 = vshrl.u32 %v3752, 16
        %v3863 = vrot.slane %v3861, 4
        %v3864 = vshll.u32 %v3752, 16
        %v3866 = vrot.slane %v3864, 5
        %v3867 = vor.u32 %v3863, %v3866
        %v3868 = vrot.slane %v3867, 4
        %v3870 = vshll.u32 %v3753, 16
        %v3872 = vrot.slane %v3870, 5
        %v3873 = vsel %vm355, %v3868, %v3872
        %v3874 = vshrl.u32 %v3753, 16
        %v3876 = vrot.slane %v3874, 4
        %v3877 = vor.u32 %v3876, %v3872
        %v3878 = vrot.slane %v3877, 4
        %v3880 = vshll.u32 %v3754, 16
        %v3882 = vrot.slane %v3880, 5
        %v3883 = vsel %vm355, %v3878, %v3882
        %v3885 = vshrl.u32 %v3755, 16
        %v3887 = vrot.slane %v3885, 4
        %v3888 = vshll.u32 %v3755, 16
        %v3890 = vrot.slane %v3888, 5
        %v3891 = vor.u32 %v3887, %v3890
        %v3892 = vrot.slane %v3891, 4
        %v3894 = vshll.u32 %v3756, 16
        %v3896 = vrot.slane %v3894, 5
        %v3897 = vsel %vm355, %v3892, %v3896
        %v3898 = vshrl.u32 %v3756, 16
        %v3900 = vrot.slane %v3898, 4
        %v3901 = vor.u32 %v3900, %v3896
        %v3902 = vrot.slane %v3901, 4
        %v3904 = vshll.u32 %v3757, 16
        %v3906 = vrot.slane %v3904, 5
        %v3907 = vsel %vm355, %v3902, %v3906
        %v3909 = vshrl.u32 %v3758, 16
        %v3911 = vrot.slane %v3909, 4
        %v3912 = vshll.u32 %v3758, 16
        %v3914 = vrot.slane %v3912, 5
        %v3915 = vor.u32 %v3911, %v3914
        %v3916 = vrot.slane %v3915, 4
        %v3918 = vshll.u32 %v3759, 16
        %v3920 = vrot.slane %v3918, 5
        %v3921 = vsel %vm355, %v3916, %v3920
        %v3922 = vshrl.u32 %v3759, 16
        %v3924 = vrot.slane %v3922, 4
        %v3925 = vor.u32 %v3924, %v3920
        %v3926 = vrot.slane %v3925, 4
        %v3928 = vshll.u32 %v3760, 16
        %v3930 = vrot.slane %v3928, 5
        %v3931 = vsel %vm355, %v3926, %v3930
        %v3933 = vshrl.u32 %v3761, 16
        %v3935 = vrot.slane %v3933, 4
        %v3936 = vshll.u32 %v3761, 16
        %v3938 = vrot.slane %v3936, 5
        %v3939 = vor.u32 %v3935, %v3938
        %v3940 = vrot.slane %v3939, 4
        %v3942 = vshll.u32 %v3762, 16
        %v3944 = vrot.slane %v3942, 5
        %v3945 = vsel %vm355, %v3940, %v3944
        %v3946 = vshrl.u32 %v3762, 16
        %v3948 = vrot.slane %v3946, 4
        %v3949 = vor.u32 %v3948, %v3944
        %v3950 = vrot.slane %v3949, 4
        %v3952 = vshll.u32 %v3763, 16
        %v3954 = vrot.slane %v3952, 5
        %v3955 = vsel %vm355, %v3950, %v3954
        %s3956 = scalar_lea.vmem [#allocation2], 1792
        %v3957 = vld [vmem:[%s3956] sm:$0xff]
        %v3958 = vld [vmem:[%s3956 + $0x8] sm:$0xff]
        %v3959 = vld [vmem:[%s3956 + $0x10] sm:$0xff]
        %v3960 = vld [vmem:[%s3956 + $0x18] sm:$0xff]
        %v3961 = vld [vmem:[%s3956 + $0x20] sm:$0xff]
        %v3962 = vld [vmem:[%s3956 + $0x28] sm:$0xff]
        %v3963 = vld [vmem:[%s3956 + $0x30] sm:$0xff]
        %v3964 = vld [vmem:[%s3956 + $0x38] sm:$0xff]
        %v3965 = vld [vmem:[%s3956 + $0x40] sm:$0xff]
        %v3966 = vld [vmem:[%s3956 + $0x48] sm:$0xff]
        %v3967 = vld [vmem:[%s3956 + $0x50] sm:$0xff]
        %v3968 = vld [vmem:[%s3956 + $0x58] sm:$0xff]
        %v3969 = vld [vmem:[%s3956 + $0x60] sm:$0xff]
        %v3970 = vld [vmem:[%s3956 + $0x68] sm:$0xff]
        %v3971 = vld [vmem:[%s3956 + $0x70] sm:$0xff]
        %v3972 = vld [vmem:[%s3956 + $0x78] sm:$0xff]
        %v3973 = vld [vmem:[%s3956 + $0x80] sm:$0xff]
        %v3974 = vld [vmem:[%s3956 + $0x88] sm:$0xff]
        %v3975 = vld [vmem:[%s3956 + $0x90] sm:$0xff]
        %v3976 = vld [vmem:[%s3956 + $0x98] sm:$0xff]
        %v3977 = vld [vmem:[%s3956 + $0xa0] sm:$0xff]
        %v3978 = vld [vmem:[%s3956 + $0xa8] sm:$0xff]
        %v3979 = vld [vmem:[%s3956 + $0xb0] sm:$0xff]
        %v3980 = vld [vmem:[%s3956 + $0xb8] sm:$0xff]
        %v3981 = vld [vmem:[%s3956 + $0xc0] sm:$0xff]
        %v3982 = vld [vmem:[%s3956 + $0xc8] sm:$0xff]
        %v3983 = vld [vmem:[%s3956 + $0xd0] sm:$0xff]
        %v3984 = vld [vmem:[%s3956 + $0xd8] sm:$0xff]
        %v3985 = vld [vmem:[%s3956 + $0xe0] sm:$0xff]
        %v3986 = vld [vmem:[%s3956 + $0xe8] sm:$0xff]
        %v3987 = vld [vmem:[%s3956 + $0xf0] sm:$0xff]
        %v3988 = vld [vmem:[%s3956 + $0xf8] sm:$0xff]
        %v3989 = vunpack.c.l.b16 %v3777
        %v3990 = vunpack.c.h.b16 %v3777
        %v3991 = vunpack.c.l.b16 %v3787
        %v3992 = vunpack.c.h.b16 %v3787
        %v3993 = vunpack.c.l.b16 %v3801
        %v3994 = vunpack.c.h.b16 %v3801
        %v3995 = vunpack.c.l.b16 %v3811
        %v3996 = vunpack.c.h.b16 %v3811
        %v3997 = vunpack.c.l.b16 %v3825
        %v3998 = vunpack.c.h.b16 %v3825
        %v3999 = vunpack.c.l.b16 %v3835
        %v4000 = vunpack.c.h.b16 %v3835
        %v4001 = vunpack.c.l.b16 %v3849
        %v4002 = vunpack.c.h.b16 %v3849
        %v4003 = vunpack.c.l.b16 %v3859
        %v4004 = vunpack.c.h.b16 %v3859
        %v4005 = vunpack.c.l.b16 %v3873
        %v4006 = vunpack.c.h.b16 %v3873
        %v4007 = vunpack.c.l.b16 %v3883
        %v4008 = vunpack.c.h.b16 %v3883
        %v4009 = vunpack.c.l.b16 %v3897
        %v4010 = vunpack.c.h.b16 %v3897
        %v4011 = vunpack.c.l.b16 %v3907
        %v4012 = vunpack.c.h.b16 %v3907
        %v4013 = vunpack.c.l.b16 %v3921
        %v4014 = vunpack.c.h.b16 %v3921
        %v4015 = vunpack.c.l.b16 %v3931
        %v4016 = vunpack.c.h.b16 %v3931
        %v4017 = vunpack.c.l.b16 %v3945
        %v4018 = vunpack.c.h.b16 %v3945
        %v4019 = vunpack.c.l.b16 %v3955
        %v4020 = vunpack.c.h.b16 %v3955
        %v4021 = vpack.c.b16 %v3991, %v3989
        %v4022 = vpack.c.b16 %v3992, %v3990
        %v4023 = vpack.c.b16 %v3995, %v3993
        %v4024 = vpack.c.b16 %v3996, %v3994
        %v4025 = vpack.c.b16 %v3999, %v3997
        %v4026 = vpack.c.b16 %v4000, %v3998
        %v4027 = vpack.c.b16 %v4003, %v4001
        %v4028 = vpack.c.b16 %v4004, %v4002
        %v4029 = vpack.c.b16 %v4007, %v4005
        %v4030 = vpack.c.b16 %v4008, %v4006
        %v4031 = vpack.c.b16 %v4011, %v4009
        %v4032 = vpack.c.b16 %v4012, %v4010
        %v4033 = vpack.c.b16 %v4015, %v4013
        %v4034 = vpack.c.b16 %v4016, %v4014
        %v4035 = vpack.c.b16 %v4019, %v4017
        %v4036 = vpack.c.b16 %v4020, %v4018
        %v4085 = vunpack.c.l.b16 %v3957
        %v4086 = vunpack.c.h.b16 %v3957
        %v4087 = vunpack.c.l.b16 %v3958
        %v4088 = vunpack.c.h.b16 %v3958
        %v4089 = vunpack.c.l.b16 %v3959
        %v4090 = vunpack.c.h.b16 %v3959
        %v4091 = vunpack.c.l.b16 %v3960
        %v4092 = vunpack.c.h.b16 %v3960
        %v4093 = vunpack.c.l.b16 %v3961
        %v4094 = vunpack.c.h.b16 %v3961
        %v4095 = vunpack.c.l.b16 %v3962
        %v4096 = vunpack.c.h.b16 %v3962
        %v4097 = vunpack.c.l.b16 %v3963
        %v4098 = vunpack.c.h.b16 %v3963
        %v4099 = vunpack.c.l.b16 %v3964
        %v4100 = vunpack.c.h.b16 %v3964
        %v4101 = vunpack.c.l.b16 %v3965
        %v4102 = vunpack.c.h.b16 %v3965
        %v4103 = vunpack.c.l.b16 %v3966
        %v4104 = vunpack.c.h.b16 %v3966
        %v4105 = vunpack.c.l.b16 %v3967
        %v4106 = vunpack.c.h.b16 %v3967
        %v4107 = vunpack.c.l.b16 %v3968
        %v4108 = vunpack.c.h.b16 %v3968
        %v4109 = vunpack.c.l.b16 %v3969
        %v4110 = vunpack.c.h.b16 %v3969
        %v4111 = vunpack.c.l.b16 %v3970
        %v4112 = vunpack.c.h.b16 %v3970
        %v4113 = vunpack.c.l.b16 %v3971
        %v4114 = vunpack.c.h.b16 %v3971
        %v4115 = vunpack.c.l.b16 %v3972
        %v4116 = vunpack.c.h.b16 %v3972
        %v4117 = vunpack.c.l.b16 %v3973
        %v4118 = vunpack.c.h.b16 %v3973
        %v4119 = vunpack.c.l.b16 %v3974
        %v4120 = vunpack.c.h.b16 %v3974
        %v4121 = vunpack.c.l.b16 %v3975
        %v4122 = vunpack.c.h.b16 %v3975
        %v4123 = vunpack.c.l.b16 %v3976
        %v4124 = vunpack.c.h.b16 %v3976
        %v4125 = vunpack.c.l.b16 %v3977
        %v4126 = vunpack.c.h.b16 %v3977
        %v4127 = vunpack.c.l.b16 %v3978
        %v4128 = vunpack.c.h.b16 %v3978
        %v4129 = vunpack.c.l.b16 %v3979
        %v4130 = vunpack.c.h.b16 %v3979
        %v4131 = vunpack.c.l.b16 %v3980
        %v4132 = vunpack.c.h.b16 %v3980
        %v4133 = vunpack.c.l.b16 %v3981
        %v4134 = vunpack.c.h.b16 %v3981
        %v4135 = vunpack.c.l.b16 %v3982
        %v4136 = vunpack.c.h.b16 %v3982
        %v4137 = vunpack.c.l.b16 %v3983
        %v4138 = vunpack.c.h.b16 %v3983
        %v4139 = vunpack.c.l.b16 %v3984
        %v4140 = vunpack.c.h.b16 %v3984
        %v4141 = vunpack.c.l.b16 %v3985
        %v4142 = vunpack.c.h.b16 %v3985
        %v4143 = vunpack.c.l.b16 %v3986
        %v4144 = vunpack.c.h.b16 %v3986
        %v4145 = vunpack.c.l.b16 %v3987
        %v4146 = vunpack.c.h.b16 %v3987
        %v4147 = vunpack.c.l.b16 %v3988
        %v4148 = vunpack.c.h.b16 %v3988
        %v4149 = vpack.c.b16 %v4087, %v4085
        %v4150 = vpack.c.b16 %v4088, %v4086
        %v4151 = vpack.c.b16 %v4091, %v4089
        %v4152 = vpack.c.b16 %v4092, %v4090
        %v4153 = vpack.c.b16 %v4095, %v4093
        %v4154 = vpack.c.b16 %v4096, %v4094
        %v4155 = vpack.c.b16 %v4099, %v4097
        %v4156 = vpack.c.b16 %v4100, %v4098
        %v4157 = vpack.c.b16 %v4103, %v4101
        %v4158 = vpack.c.b16 %v4104, %v4102
        %v4159 = vpack.c.b16 %v4107, %v4105
        %v4160 = vpack.c.b16 %v4108, %v4106
        %v4161 = vpack.c.b16 %v4111, %v4109
        %v4162 = vpack.c.b16 %v4112, %v4110
        %v4163 = vpack.c.b16 %v4115, %v4113
        %v4164 = vpack.c.b16 %v4116, %v4114
        %v4165 = vpack.c.b16 %v4119, %v4117
        %v4166 = vpack.c.b16 %v4120, %v4118
        %v4167 = vpack.c.b16 %v4123, %v4121
        %v4168 = vpack.c.b16 %v4124, %v4122
        %v4169 = vpack.c.b16 %v4127, %v4125
        %v4170 = vpack.c.b16 %v4128, %v4126
        %v4171 = vpack.c.b16 %v4131, %v4129
        %v4172 = vpack.c.b16 %v4132, %v4130
        %v4173 = vpack.c.b16 %v4135, %v4133
        %v4174 = vpack.c.b16 %v4136, %v4134
        %v4175 = vpack.c.b16 %v4139, %v4137
        %v4176 = vpack.c.b16 %v4140, %v4138
        %v4177 = vpack.c.b16 %v4143, %v4141
        %v4178 = vpack.c.b16 %v4144, %v4142
        %v4179 = vpack.c.b16 %v4147, %v4145
        %v4180 = vpack.c.b16 %v4148, %v4146
        %4213 = vmatprep.subr.bf16.mxu0 %v4150
        %4214 = vmatpush1.bf16.msra.mxu0 %v4149
        %4215 = vmatprep.subr.bf16.mxu0 %v4152
        %4216 = vmatpush1.bf16.msra.mxu0 %v4151
        %4217 = vmatprep.subr.bf16.mxu0 %v4154
        %4218 = vmatpush1.bf16.msra.mxu0 %v4153
        %4219 = vmatprep.subr.bf16.mxu0 %v4156
        %4220 = vmatpush1.bf16.msra.mxu0 %v4155
        %4221 = vmatprep.subr.bf16.mxu0 %v4158
        %4222 = vmatpush1.bf16.msra.mxu0 %v4157
        %4223 = vmatprep.subr.bf16.mxu0 %v4160
        %4224 = vmatpush1.bf16.msra.mxu0 %v4159
        %4225 = vmatprep.subr.bf16.mxu0 %v4162
        %4226 = vmatpush1.bf16.msra.mxu0 %v4161
        %4227 = vmatprep.subr.bf16.mxu0 %v4164
        %4228 = vmatpush1.bf16.msra.mxu0 %v4163
        %4229 = vmatprep.subr.bf16.mxu0 %v4166
        %4230 = vmatpush1.bf16.msra.mxu0 %v4165
        %4231 = vmatprep.subr.bf16.mxu0 %v4168
        %4232 = vmatpush1.bf16.msra.mxu0 %v4167
        %4233 = vmatprep.subr.bf16.mxu0 %v4170
        %4234 = vmatpush1.bf16.msra.mxu0 %v4169
        %4235 = vmatprep.subr.bf16.mxu0 %v4172
        %4236 = vmatpush1.bf16.msra.mxu0 %v4171
        %4237 = vmatprep.subr.bf16.mxu0 %v4174
        %4238 = vmatpush1.bf16.msra.mxu0 %v4173
        %4239 = vmatprep.subr.bf16.mxu0 %v4176
        %4240 = vmatpush1.bf16.msra.mxu0 %v4175
        %4241 = vmatprep.subr.bf16.mxu0 %v4178
        %4242 = vmatpush1.bf16.msra.mxu0 %v4177
        %4243 = vmatprep.subr.bf16.mxu0 %v4180
        %4244 = vmatpush1.bf16.msra.mxu0 %v4179
        %4245 = vmatprep.mubr.bf16.mxu0 %v4022
        %4246 = vmatmul.mubr.bf16.gmra.mrb[0].mxu0 %v4021
        %v4247 = vpop.f32.mrb[0].mxu0
        %v4248 = vadd.f32 0.0, %v4247
        %v4249 = vpop.f32.mrb[0].mxu0
        %v4250 = vadd.f32 0.0, %v4249
        %v4251 = vpop.f32.mrb[0].mxu0
        %v4252 = vadd.f32 0.0, %v4251
        %v4253 = vpop.f32.mrb[0].mxu0
        %v4254 = vadd.f32 0.0, %v4253
        %4255 = vmatprep.mubr.bf16.mxu0 %v4024
        %4256 = vmatmul.mubr.bf16.gmra.mrb[0].mxu0 %v4023
        %v4257 = vpop.f32.mrb[0].mxu0
        %v4258 = vadd.f32 0.0, %v4257
        %v4259 = vpop.f32.mrb[0].mxu0
        %v4260 = vadd.f32 0.0, %v4259
        %v4261 = vpop.f32.mrb[0].mxu0
        %v4262 = vadd.f32 0.0, %v4261
        %v4263 = vpop.f32.mrb[0].mxu0
        %v4264 = vadd.f32 0.0, %v4263
        %4265 = vmatprep.mubr.bf16.mxu0 %v4026
        %4266 = vmatmul.mubr.bf16.gmra.mrb[0].mxu0 %v4025
        %v4267 = vpop.f32.mrb[0].mxu0
        %v4268 = vadd.f32 0.0, %v4267
        %v4269 = vpop.f32.mrb[0].mxu0
        %v4270 = vadd.f32 0.0, %v4269
        %v4271 = vpop.f32.mrb[0].mxu0
        %v4272 = vadd.f32 0.0, %v4271
        %v4273 = vpop.f32.mrb[0].mxu0
        %v4274 = vadd.f32 0.0, %v4273
        %4275 = vmatprep.mubr.bf16.mxu0 %v4028
        %4276 = vmatmul.mubr.bf16.gmra.mrb[0].mxu0 %v4027
        %v4277 = vpop.f32.mrb[0].mxu0
        %v4278 = vadd.f32 0.0, %v4277
        %v4279 = vpop.f32.mrb[0].mxu0
        %v4280 = vadd.f32 0.0, %v4279
        %v4281 = vpop.f32.mrb[0].mxu0
        %v4282 = vadd.f32 0.0, %v4281
        %v4283 = vpop.f32.mrb[0].mxu0
        %v4284 = vadd.f32 0.0, %v4283
        %4285 = vmatprep.mubr.bf16.mxu0 %v4030
        %4286 = vmatmul.mubr.bf16.gmra.mrb[0].mxu0 %v4029
        %v4287 = vpop.f32.mrb[0].mxu0
        %v4288 = vadd.f32 0.0, %v4287
        %v4289 = vpop.f32.mrb[0].mxu0
        %v4290 = vadd.f32 0.0, %v4289
        %v4291 = vpop.f32.mrb[0].mxu0
        %v4292 = vadd.f32 0.0, %v4291
        %v4293 = vpop.f32.mrb[0].mxu0
        %v4294 = vadd.f32 0.0, %v4293
        %4295 = vmatprep.mubr.bf16.mxu0 %v4032
        %4296 = vmatmul.mubr.bf16.gmra.mrb[0].mxu0 %v4031
        %v4297 = vpop.f32.mrb[0].mxu0
        %v4298 = vadd.f32 0.0, %v4297
        %v4299 = vpop.f32.mrb[0].mxu0
        %v4300 = vadd.f32 0.0, %v4299
        %v4301 = vpop.f32.mrb[0].mxu0
        %v4302 = vadd.f32 0.0, %v4301
        %v4303 = vpop.f32.mrb[0].mxu0
        %v4304 = vadd.f32 0.0, %v4303
        %4305 = vmatprep.mubr.bf16.mxu0 %v4034
        %4306 = vmatmul.mubr.bf16.gmra.mrb[0].mxu0 %v4033
        %v4307 = vpop.f32.mrb[0].mxu0
        %v4308 = vadd.f32 0.0, %v4307
        %v4309 = vpop.f32.mrb[0].mxu0
        %v4310 = vadd.f32 0.0, %v4309
        %v4311 = vpop.f32.mrb[0].mxu0
        %v4312 = vadd.f32 0.0, %v4311
        %v4313 = vpop.f32.mrb[0].mxu0
        %v4314 = vadd.f32 0.0, %v4313
        %4315 = vmatprep.mubr.bf16.mxu0 %v4036
        %4316 = vmatmul.mubr.bf16.gmra.mrb[0].mxu0 %v4035
        %v4317 = vpop.f32.mrb[0].mxu0
        %v4318 = vadd.f32 0.0, %v4317
        %v4319 = vpop.f32.mrb[0].mxu0
        %v4320 = vadd.f32 0.0, %v4319
        %v4321 = vpop.f32.mrb[0].mxu0
        %v4322 = vadd.f32 0.0, %v4321
        %v4323 = vpop.f32.mrb[0].mxu0
        %v4324 = vadd.f32 0.0, %v4323
        %4325 = vdwg.mxu0
        %v4326 = vadd.f32 %v3708, %v4248
        %v4327 = vadd.f32 %v3709, %v4250
        %v4328 = vadd.f32 %v3710, %v4252
        %v4329 = vadd.f32 %v3711, %v4254
        %v4330 = vadd.f32 %v3712, %v4258
        %v4331 = vadd.f32 %v3713, %v4260
        %v4332 = vadd.f32 %v3714, %v4262
        %v4333 = vadd.f32 %v3715, %v4264
        %v4334 = vadd.f32 %v3716, %v4268
        %v4335 = vadd.f32 %v3717, %v4270
        %v4336 = vadd.f32 %v3718, %v4272
        %v4337 = vadd.f32 %v3719, %v4274
        %v4338 = vadd.f32 %v3720, %v4278
        %v4339 = vadd.f32 %v3721, %v4280
        %v4340 = vadd.f32 %v3722, %v4282
        %v4341 = vadd.f32 %v3723, %v4284
        %v4342 = vadd.f32 %v3724, %v4288
        %v4343 = vadd.f32 %v3725, %v4290
        %v4344 = vadd.f32 %v3726, %v4292
        %v4345 = vadd.f32 %v3727, %v4294
        %v4346 = vadd.f32 %v3728, %v4298
        %v4347 = vadd.f32 %v3729, %v4300
        %v4348 = vadd.f32 %v3730, %v4302
        %v4349 = vadd.f32 %v3731, %v4304
        %v4350 = vadd.f32 %v3732, %v4308
        %v4351 = vadd.f32 %v3733, %v4310
        %v4352 = vadd.f32 %v3734, %v4312
        %v4353 = vadd.f32 %v3735, %v4314
        %v4354 = vadd.f32 %v3736, %v4318
        %v4355 = vadd.f32 %v3737, %v4320
        %v4356 = vadd.f32 %v3738, %v4322
        %v4357 = vadd.f32 %v3739, %v4324
        %v4358 = vld [vmem:[%s3305] sm:$0xee]
        %v4359 = vld [vmem:[%s3305 + $0x18] sm:$0xee]
        %v4360 = vld [vmem:[%s3305 + $0x30] sm:$0xee]
        %v4361 = vld [vmem:[%s3305 + $0x48] sm:$0xee]
        %v4362 = vld [vmem:[%s3305 + $0x60] sm:$0xee]
        %v4363 = vld [vmem:[%s3305 + $0x78] sm:$0xee]
        %v4364 = vld [vmem:[%s3305 + $0x90] sm:$0xee]
        %v4365 = vld [vmem:[%s3305 + $0xa8] sm:$0xee]
        %v4390 = vrot.slane %v4358, 5
        %v4391 = vrot.slane %v4390, 4
        %v4392 = vrot.slane %v3741, 5
        %v4393 = vsel %vm1297, %v4391, %v4392
        %v4394 = vrot.slane %v4392, 4
        %v4395 = vrot.slane %v3742, 5
        %v4396 = vsel %vm1297, %v4394, %v4395
        %v4397 = vrot.slane %v4359, 5
        %v4398 = vrot.slane %v4397, 4
        %v4399 = vrot.slane %v3744, 5
        %v4400 = vsel %vm1297, %v4398, %v4399
        %v4401 = vrot.slane %v4399, 4
        %v4402 = vrot.slane %v3745, 5
        %v4403 = vsel %vm1297, %v4401, %v4402
        %v4404 = vrot.slane %v4360, 5
        %v4405 = vrot.slane %v4404, 4
        %v4406 = vrot.slane %v3747, 5
        %v4407 = vsel %vm1297, %v4405, %v4406
        %v4408 = vrot.slane %v4406, 4
        %v4409 = vrot.slane %v3748, 5
        %v4410 = vsel %vm1297, %v4408, %v4409
        %v4411 = vrot.slane %v4361, 5
        %v4412 = vrot.slane %v4411, 4
        %v4413 = vrot.slane %v3750, 5
        %v4414 = vsel %vm1297, %v4412, %v4413
        %v4415 = vrot.slane %v4413, 4
        %v4416 = vrot.slane %v3751, 5
        %v4417 = vsel %vm1297, %v4415, %v4416
        %v4418 = vrot.slane %v4362, 5
        %v4419 = vrot.slane %v4418, 4
        %v4420 = vrot.slane %v3753, 5
        %v4421 = vsel %vm1297, %v4419, %v4420
        %v4422 = vrot.slane %v4420, 4
        %v4423 = vrot.slane %v3754, 5
        %v4424 = vsel %vm1297, %v4422, %v4423
        %v4425 = vrot.slane %v4363, 5
        %v4426 = vrot.slane %v4425, 4
        %v4427 = vrot.slane %v3756, 5
        %v4428 = vsel %vm1297, %v4426, %v4427
        %v4429 = vrot.slane %v4427, 4
        %v4430 = vrot.slane %v3757, 5
        %v4431 = vsel %vm1297, %v4429, %v4430
        %v4432 = vrot.slane %v4364, 5
        %v4433 = vrot.slane %v4432, 4
        %v4434 = vrot.slane %v3759, 5
        %v4435 = vsel %vm1297, %v4433, %v4434
        %v4436 = vrot.slane %v4434, 4
        %v4437 = vrot.slane %v3760, 5
        %v4438 = vsel %vm1297, %v4436, %v4437
        %v4439 = vrot.slane %v4365, 5
        %v4440 = vrot.slane %v4439, 4
        %v4441 = vrot.slane %v3762, 5
        %v4442 = vsel %vm1297, %v4440, %v4441
        %v4443 = vrot.slane %v4441, 4
        %v4444 = vrot.slane %v3763, 5
        %v4445 = vsel %vm1297, %v4443, %v4444
        %s4446 = scalar_lea.vmem [#allocation2], 2048
        %v4447 = vld [vmem:[%s4446] sm:$0xff]
        %v4448 = vld [vmem:[%s4446 + $0x8] sm:$0xff]
        %v4449 = vld [vmem:[%s4446 + $0x10] sm:$0xff]
        %v4450 = vld [vmem:[%s4446 + $0x18] sm:$0xff]
        %v4451 = vld [vmem:[%s4446 + $0x20] sm:$0xff]
        %v4452 = vld [vmem:[%s4446 + $0x28] sm:$0xff]
        %v4453 = vld [vmem:[%s4446 + $0x30] sm:$0xff]
        %v4454 = vld [vmem:[%s4446 + $0x38] sm:$0xff]
        %v4455 = vld [vmem:[%s4446 + $0x40] sm:$0xff]
        %v4456 = vld [vmem:[%s4446 + $0x48] sm:$0xff]
        %v4457 = vld [vmem:[%s4446 + $0x50] sm:$0xff]
        %v4458 = vld [vmem:[%s4446 + $0x58] sm:$0xff]
        %v4459 = vld [vmem:[%s4446 + $0x60] sm:$0xff]
        %v4460 = vld [vmem:[%s4446 + $0x68] sm:$0xff]
        %v4461 = vld [vmem:[%s4446 + $0x70] sm:$0xff]
        %v4462 = vld [vmem:[%s4446 + $0x78] sm:$0xff]
        %v4463 = vld [vmem:[%s4446 + $0x80] sm:$0xff]
        %v4464 = vld [vmem:[%s4446 + $0x88] sm:$0xff]
        %v4465 = vld [vmem:[%s4446 + $0x90] sm:$0xff]
        %v4466 = vld [vmem:[%s4446 + $0x98] sm:$0xff]
        %v4467 = vld [vmem:[%s4446 + $0xa0] sm:$0xff]
        %v4468 = vld [vmem:[%s4446 + $0xa8] sm:$0xff]
        %v4469 = vld [vmem:[%s4446 + $0xb0] sm:$0xff]
        %v4470 = vld [vmem:[%s4446 + $0xb8] sm:$0xff]
        %v4471 = vld [vmem:[%s4446 + $0xc0] sm:$0xff]
        %v4472 = vld [vmem:[%s4446 + $0xc8] sm:$0xff]
        %v4473 = vld [vmem:[%s4446 + $0xd0] sm:$0xff]
        %v4474 = vld [vmem:[%s4446 + $0xd8] sm:$0xff]
        %v4475 = vld [vmem:[%s4446 + $0xe0] sm:$0xff]
        %v4476 = vld [vmem:[%s4446 + $0xe8] sm:$0xff]
        %v4477 = vld [vmem:[%s4446 + $0xf0] sm:$0xff]
        %v4478 = vld [vmem:[%s4446 + $0xf8] sm:$0xff]
        %v4479 = vunpack.c.l.b16 %v4393
        %v4480 = vunpack.c.h.b16 %v4393
        %v4481 = vunpack.c.l.b16 %v4396
        %v4482 = vunpack.c.h.b16 %v4396
        %v4483 = vunpack.c.l.b16 %v4400
        %v4484 = vunpack.c.h.b16 %v4400
        %v4485 = vunpack.c.l.b16 %v4403
        %v4486 = vunpack.c.h.b16 %v4403
        %v4487 = vunpack.c.l.b16 %v4407
        %v4488 = vunpack.c.h.b16 %v4407
        %v4489 = vunpack.c.l.b16 %v4410
        %v4490 = vunpack.c.h.b16 %v4410
        %v4491 = vunpack.c.l.b16 %v4414
        %v4492 = vunpack.c.h.b16 %v4414
        %v4493 = vunpack.c.l.b16 %v4417
        %v4494 = vunpack.c.h.b16 %v4417
        %v4495 = vunpack.c.l.b16 %v4421
        %v4496 = vunpack.c.h.b16 %v4421
        %v4497 = vunpack.c.l.b16 %v4424
        %v4498 = vunpack.c.h.b16 %v4424
        %v4499 = vunpack.c.l.b16 %v4428
        %v4500 = vunpack.c.h.b16 %v4428
        %v4501 = vunpack.c.l.b16 %v4431
        %v4502 = vunpack.c.h.b16 %v4431
        %v4503 = vunpack.c.l.b16 %v4435
        %v4504 = vunpack.c.h.b16 %v4435
        %v4505 = vunpack.c.l.b16 %v4438
        %v4506 = vunpack.c.h.b16 %v4438
        %v4507 = vunpack.c.l.b16 %v4442
        %v4508 = vunpack.c.h.b16 %v4442
        %v4509 = vunpack.c.l.b16 %v4445
        %v4510 = vunpack.c.h.b16 %v4445
        %v4511 = vpack.c.b16 %v4481, %v4479
        %v4512 = vpack.c.b16 %v4482, %v4480
        %v4513 = vpack.c.b16 %v4485, %v4483
        %v4514 = vpack.c.b16 %v4486, %v4484
        %v4515 = vpack.c.b16 %v4489, %v4487
        %v4516 = vpack.c.b16 %v4490, %v4488
        %v4517 = vpack.c.b16 %v4493, %v4491
        %v4518 = vpack.c.b16 %v4494, %v4492
        %v4519 = vpack.c.b16 %v4497, %v4495
        %v4520 = vpack.c.b16 %v4498, %v4496
        %v4521 = vpack.c.b16 %v4501, %v4499
        %v4522 = vpack.c.b16 %v4502, %v4500
        %v4523 = vpack.c.b16 %v4505, %v4503
        %v4524 = vpack.c.b16 %v4506, %v4504
        %v4525 = vpack.c.b16 %v4509, %v4507
        %v4526 = vpack.c.b16 %v4510, %v4508
        %v4575 = vunpack.c.l.b16 %v4447
        %v4576 = vunpack.c.h.b16 %v4447
        %v4577 = vunpack.c.l.b16 %v4448
        %v4578 = vunpack.c.h.b16 %v4448
        %v4579 = vunpack.c.l.b16 %v4449
        %v4580 = vunpack.c.h.b16 %v4449
        %v4581 = vunpack.c.l.b16 %v4450
        %v4582 = vunpack.c.h.b16 %v4450
        %v4583 = vunpack.c.l.b16 %v4451
        %v4584 = vunpack.c.h.b16 %v4451
        %v4585 = vunpack.c.l.b16 %v4452
        %v4586 = vunpack.c.h.b16 %v4452
        %v4587 = vunpack.c.l.b16 %v4453
        %v4588 = vunpack.c.h.b16 %v4453
        %v4589 = vunpack.c.l.b16 %v4454
        %v4590 = vunpack.c.h.b16 %v4454
        %v4591 = vunpack.c.l.b16 %v4455
        %v4592 = vunpack.c.h.b16 %v4455
        %v4593 = vunpack.c.l.b16 %v4456
        %v4594 = vunpack.c.h.b16 %v4456
        %v4595 = vunpack.c.l.b16 %v4457
        %v4596 = vunpack.c.h.b16 %v4457
        %v4597 = vunpack.c.l.b16 %v4458
        %v4598 = vunpack.c.h.b16 %v4458
        %v4599 = vunpack.c.l.b16 %v4459
        %v4600 = vunpack.c.h.b16 %v4459
        %v4601 = vunpack.c.l.b16 %v4460
        %v4602 = vunpack.c.h.b16 %v4460
        %v4603 = vunpack.c.l.b16 %v4461
        %v4604 = vunpack.c.h.b16 %v4461
        %v4605 = vunpack.c.l.b16 %v4462
        %v4606 = vunpack.c.h.b16 %v4462
        %v4607 = vunpack.c.l.b16 %v4463
        %v4608 = vunpack.c.h.b16 %v4463
        %v4609 = vunpack.c.l.b16 %v4464
        %v4610 = vunpack.c.h.b16 %v4464
        %v4611 = vunpack.c.l.b16 %v4465
        %v4612 = vunpack.c.h.b16 %v4465
        %v4613 = vunpack.c.l.b16 %v4466
        %v4614 = vunpack.c.h.b16 %v4466
        %v4615 = vunpack.c.l.b16 %v4467
        %v4616 = vunpack.c.h.b16 %v4467
        %v4617 = vunpack.c.l.b16 %v4468
        %v4618 = vunpack.c.h.b16 %v4468
        %v4619 = vunpack.c.l.b16 %v4469
        %v4620 = vunpack.c.h.b16 %v4469
        %v4621 = vunpack.c.l.b16 %v4470
        %v4622 = vunpack.c.h.b16 %v4470
        %v4623 = vunpack.c.l.b16 %v4471
        %v4624 = vunpack.c.h.b16 %v4471
        %v4625 = vunpack.c.l.b16 %v4472
        %v4626 = vunpack.c.h.b16 %v4472
        %v4627 = vunpack.c.l.b16 %v4473
        %v4628 = vunpack.c.h.b16 %v4473
        %v4629 = vunpack.c.l.b16 %v4474
        %v4630 = vunpack.c.h.b16 %v4474
        %v4631 = vunpack.c.l.b16 %v4475
        %v4632 = vunpack.c.h.b16 %v4475
        %v4633 = vunpack.c.l.b16 %v4476
        %v4634 = vunpack.c.h.b16 %v4476
        %v4635 = vunpack.c.l.b16 %v4477
        %v4636 = vunpack.c.h.b16 %v4477
        %v4637 = vunpack.c.l.b16 %v4478
        %v4638 = vunpack.c.h.b16 %v4478
        %v4639 = vpack.c.b16 %v4577, %v4575
        %v4640 = vpack.c.b16 %v4578, %v4576
        %v4641 = vpack.c.b16 %v4581, %v4579
        %v4642 = vpack.c.b16 %v4582, %v4580
        %v4643 = vpack.c.b16 %v4585, %v4583
        %v4644 = vpack.c.b16 %v4586, %v4584
        %v4645 = vpack.c.b16 %v4589, %v4587
        %v4646 = vpack.c.b16 %v4590, %v4588
        %v4647 = vpack.c.b16 %v4593, %v4591
        %v4648 = vpack.c.b16 %v4594, %v4592
        %v4649 = vpack.c.b16 %v4597, %v4595
        %v4650 = vpack.c.b16 %v4598, %v4596
        %v4651 = vpack.c.b16 %v4601, %v4599
        %v4652 = vpack.c.b16 %v4602, %v4600
        %v4653 = vpack.c.b16 %v4605, %v4603
        %v4654 = vpack.c.b16 %v4606, %v4604
        %v4655 = vpack.c.b16 %v4609, %v4607
        %v4656 = vpack.c.b16 %v4610, %v4608
        %v4657 = vpack.c.b16 %v4613, %v4611
        %v4658 = vpack.c.b16 %v4614, %v4612
        %v4659 = vpack.c.b16 %v4617, %v4615
        %v4660 = vpack.c.b16 %v4618, %v4616
        %v4661 = vpack.c.b16 %v4621, %v4619
        %v4662 = vpack.c.b16 %v4622, %v4620
        %v4663 = vpack.c.b16 %v4625, %v4623
        %v4664 = vpack.c.b16 %v4626, %v4624
        %v4665 = vpack.c.b16 %v4629, %v4627
        %v4666 = vpack.c.b16 %v4630, %v4628
        %v4667 = vpack.c.b16 %v4633, %v4631
        %v4668 = vpack.c.b16 %v4634, %v4632
        %v4669 = vpack.c.b16 %v4637, %v4635
        %v4670 = vpack.c.b16 %v4638, %v4636
        %4703 = vmatprep.subr.bf16.mxu0 %v4640
        %4704 = vmatpush1.bf16.msra.mxu0 %v4639
        %4705 = vmatprep.subr.bf16.mxu0 %v4642
        %4706 = vmatpush1.bf16.msra.mxu0 %v4641
        %4707 = vmatprep.subr.bf16.mxu0 %v4644
        %4708 = vmatpush1.bf16.msra.mxu0 %v4643
        %4709 = vmatprep.subr.bf16.mxu0 %v4646
        %4710 = vmatpush1.bf16.msra.mxu0 %v4645
        %4711 = vmatprep.subr.bf16.mxu0 %v4648
        %4712 = vmatpush1.bf16.msra.mxu0 %v4647
        %4713 = vmatprep.subr.bf16.mxu0 %v4650
        %4714 = vmatpush1.bf16.msra.mxu0 %v4649
        %4715 = vmatprep.subr.bf16.mxu0 %v4652
        %4716 = vmatpush1.bf16.msra.mxu0 %v4651
        %4717 = vmatprep.subr.bf16.mxu0 %v4654
        %4718 = vmatpush1.bf16.msra.mxu0 %v4653
        %4719 = vmatprep.subr.bf16.mxu0 %v4656
        %4720 = vmatpush1.bf16.msra.mxu0 %v4655
        %4721 = vmatprep.subr.bf16.mxu0 %v4658
        %4722 = vmatpush1.bf16.msra.mxu0 %v4657
        %4723 = vmatprep.subr.bf16.mxu0 %v4660
        %4724 = vmatpush1.bf16.msra.mxu0 %v4659
        %4725 = vmatprep.subr.bf16.mxu0 %v4662
        %4726 = vmatpush1.bf16.msra.mxu0 %v4661
        %4727 = vmatprep.subr.bf16.mxu0 %v4664
        %4728 = vmatpush1.bf16.msra.mxu0 %v4663
        %4729 = vmatprep.subr.bf16.mxu0 %v4666
        %4730 = vmatpush1.bf16.msra.mxu0 %v4665
        %4731 = vmatprep.subr.bf16.mxu0 %v4668
        %4732 = vmatpush1.bf16.msra.mxu0 %v4667
        %4733 = vmatprep.subr.bf16.mxu0 %v4670
        %4734 = vmatpush1.bf16.msra.mxu0 %v4669
        %4735 = vmatprep.mubr.bf16.mxu0 %v4512
        %4736 = vmatmul.mubr.bf16.gmra.mrb[0].mxu0 %v4511
        %v4737 = vpop.f32.mrb[0].mxu0
        %v4738 = vadd.f32 0.0, %v4737
        %v4739 = vpop.f32.mrb[0].mxu0
        %v4740 = vadd.f32 0.0, %v4739
        %v4741 = vpop.f32.mrb[0].mxu0
        %v4742 = vadd.f32 0.0, %v4741
        %v4743 = vpop.f32.mrb[0].mxu0
        %v4744 = vadd.f32 0.0, %v4743
        %4745 = vmatprep.mubr.bf16.mxu0 %v4514
        %4746 = vmatmul.mubr.bf16.gmra.mrb[0].mxu0 %v4513
        %v4747 = vpop.f32.mrb[0].mxu0
        %v4748 = vadd.f32 0.0, %v4747
        %v4749 = vpop.f32.mrb[0].mxu0
        %v4750 = vadd.f32 0.0, %v4749
        %v4751 = vpop.f32.mrb[0].mxu0
        %v4752 = vadd.f32 0.0, %v4751
        %v4753 = vpop.f32.mrb[0].mxu0
        %v4754 = vadd.f32 0.0, %v4753
        %4755 = vmatprep.mubr.bf16.mxu0 %v4516
        %4756 = vmatmul.mubr.bf16.gmra.mrb[0].mxu0 %v4515
        %v4757 = vpop.f32.mrb[0].mxu0
        %v4758 = vadd.f32 0.0, %v4757
        %v4759 = vpop.f32.mrb[0].mxu0
        %v4760 = vadd.f32 0.0, %v4759
        %v4761 = vpop.f32.mrb[0].mxu0
        %v4762 = vadd.f32 0.0, %v4761
        %v4763 = vpop.f32.mrb[0].mxu0
        %v4764 = vadd.f32 0.0, %v4763
        %4765 = vmatprep.mubr.bf16.mxu0 %v4518
        %4766 = vmatmul.mubr.bf16.gmra.mrb[0].mxu0 %v4517
        %v4767 = vpop.f32.mrb[0].mxu0
        %v4768 = vadd.f32 0.0, %v4767
        %v4769 = vpop.f32.mrb[0].mxu0
        %v4770 = vadd.f32 0.0, %v4769
        %v4771 = vpop.f32.mrb[0].mxu0
        %v4772 = vadd.f32 0.0, %v4771
        %v4773 = vpop.f32.mrb[0].mxu0
        %v4774 = vadd.f32 0.0, %v4773
        %4775 = vmatprep.mubr.bf16.mxu0 %v4520
        %4776 = vmatmul.mubr.bf16.gmra.mrb[0].mxu0 %v4519
        %v4777 = vpop.f32.mrb[0].mxu0
        %v4778 = vadd.f32 0.0, %v4777
        %v4779 = vpop.f32.mrb[0].mxu0
        %v4780 = vadd.f32 0.0, %v4779
        %v4781 = vpop.f32.mrb[0].mxu0
        %v4782 = vadd.f32 0.0, %v4781
        %v4783 = vpop.f32.mrb[0].mxu0
        %v4784 = vadd.f32 0.0, %v4783
        %4785 = vmatprep.mubr.bf16.mxu0 %v4522
        %4786 = vmatmul.mubr.bf16.gmra.mrb[0].mxu0 %v4521
        %v4787 = vpop.f32.mrb[0].mxu0
        %v4788 = vadd.f32 0.0, %v4787
        %v4789 = vpop.f32.mrb[0].mxu0
        %v4790 = vadd.f32 0.0, %v4789
        %v4791 = vpop.f32.mrb[0].mxu0
        %v4792 = vadd.f32 0.0, %v4791
        %v4793 = vpop.f32.mrb[0].mxu0
        %v4794 = vadd.f32 0.0, %v4793
        %4795 = vmatprep.mubr.bf16.mxu0 %v4524
        %4796 = vmatmul.mubr.bf16.gmra.mrb[0].mxu0 %v4523
        %v4797 = vpop.f32.mrb[0].mxu0
        %v4798 = vadd.f32 0.0, %v4797
        %v4799 = vpop.f32.mrb[0].mxu0
        %v4800 = vadd.f32 0.0, %v4799
        %v4801 = vpop.f32.mrb[0].mxu0
        %v4802 = vadd.f32 0.0, %v4801
        %v4803 = vpop.f32.mrb[0].mxu0
        %v4804 = vadd.f32 0.0, %v4803
        %4805 = vmatprep.mubr.bf16.mxu0 %v4526
        %4806 = vmatmul.mubr.bf16.gmra.mrb[0].mxu0 %v4525
        %v4807 = vpop.f32.mrb[0].mxu0
        %v4808 = vadd.f32 0.0, %v4807
        %v4809 = vpop.f32.mrb[0].mxu0
        %v4810 = vadd.f32 0.0, %v4809
        %v4811 = vpop.f32.mrb[0].mxu0
        %v4812 = vadd.f32 0.0, %v4811
        %v4813 = vpop.f32.mrb[0].mxu0
        %v4814 = vadd.f32 0.0, %v4813
        %4815 = vdwg.mxu0
        %v4816 = vadd.f32 %v4326, %v4738
        %v4817 = vadd.f32 %v4327, %v4740
        %v4818 = vadd.f32 %v4328, %v4742
        %v4819 = vadd.f32 %v4329, %v4744
        %v4820 = vadd.f32 %v4330, %v4748
        %v4821 = vadd.f32 %v4331, %v4750
        %v4822 = vadd.f32 %v4332, %v4752
        %v4823 = vadd.f32 %v4333, %v4754
        %v4824 = vadd.f32 %v4334, %v4758
        %v4825 = vadd.f32 %v4335, %v4760
        %v4826 = vadd.f32 %v4336, %v4762
        %v4827 = vadd.f32 %v4337, %v4764
        %v4828 = vadd.f32 %v4338, %v4768
        %v4829 = vadd.f32 %v4339, %v4770
        %v4830 = vadd.f32 %v4340, %v4772
        %v4831 = vadd.f32 %v4341, %v4774
        %v4832 = vadd.f32 %v4342, %v4778
        %v4833 = vadd.f32 %v4343, %v4780
        %v4834 = vadd.f32 %v4344, %v4782
        %v4835 = vadd.f32 %v4345, %v4784
        %v4836 = vadd.f32 %v4346, %v4788
        %v4837 = vadd.f32 %v4347, %v4790
        %v4838 = vadd.f32 %v4348, %v4792
        %v4839 = vadd.f32 %v4349, %v4794
        %v4840 = vadd.f32 %v4350, %v4798
        %v4841 = vadd.f32 %v4351, %v4800
        %v4842 = vadd.f32 %v4352, %v4802
        %v4843 = vadd.f32 %v4353, %v4804
        %v4844 = vadd.f32 %v4354, %v4808
        %v4845 = vadd.f32 %v4355, %v4810
        %v4846 = vadd.f32 %v4356, %v4812
        %v4847 = vadd.f32 %v4357, %v4814
        %v4848 = vld [vmem:[#allocation5] sm:$0x3]
        %v4850 = vlaneseq
        %v4851 = vshrl.u32 %v4850, 7
        %v4852 = vsub.s32 0, %v4851
        %v4853 = vrot.slane %v4848, %v4852
        %v4854 = vlaneseq
        %v4855 = vshrl.u32 %v4854, 7
        %v4856 = vsub.s32 1, %v4855
        %v4857 = vrot.slane %v4848, %v4856
        %v4860 = vadd.f32 %v4816, %v4853
        %v4861 = vadd.f32 %v4817, %v4857
        %v4862 = vadd.f32 %v4818, %v4853
        %v4863 = vadd.f32 %v4819, %v4857
        %v4864 = vadd.f32 %v4820, %v4853
        %v4865 = vadd.f32 %v4821, %v4857
        %v4866 = vadd.f32 %v4822, %v4853
        %v4867 = vadd.f32 %v4823, %v4857
        %v4868 = vadd.f32 %v4824, %v4853
        %v4869 = vadd.f32 %v4825, %v4857
        %v4870 = vadd.f32 %v4826, %v4853
        %v4871 = vadd.f32 %v4827, %v4857
        %v4872 = vadd.f32 %v4828, %v4853
        %v4873 = vadd.f32 %v4829, %v4857
        %v4874 = vadd.f32 %v4830, %v4853
        %v4875 = vadd.f32 %v4831, %v4857
        %v4876 = vadd.f32 %v4832, %v4853
        %v4877 = vadd.f32 %v4833, %v4857
        %v4878 = vadd.f32 %v4834, %v4853
        %v4879 = vadd.f32 %v4835, %v4857
        %v4880 = vadd.f32 %v4836, %v4853
        %v4881 = vadd.f32 %v4837, %v4857
        %v4882 = vadd.f32 %v4838, %v4853
        %v4883 = vadd.f32 %v4839, %v4857
        %v4884 = vadd.f32 %v4840, %v4853
        %v4885 = vadd.f32 %v4841, %v4857
        %v4886 = vadd.f32 %v4842, %v4853
        %v4887 = vadd.f32 %v4843, %v4857
        %v4888 = vadd.f32 %v4844, %v4853
        %v4889 = vadd.f32 %v4845, %v4857
        %v4890 = vadd.f32 %v4846, %v4853
        %v4891 = vadd.f32 %v4847, %v4857
        %v4892 = vmax.f32 %v4860, 0.0
        %v4893 = vmax.f32 %v4861, 0.0
        %v4894 = vmax.f32 %v4862, 0.0
        %v4895 = vmax.f32 %v4863, 0.0
        %v4896 = vmax.f32 %v4864, 0.0
        %v4897 = vmax.f32 %v4865, 0.0
        %v4898 = vmax.f32 %v4866, 0.0
        %v4899 = vmax.f32 %v4867, 0.0
        %v4900 = vmax.f32 %v4868, 0.0
        %v4901 = vmax.f32 %v4869, 0.0
        %v4902 = vmax.f32 %v4870, 0.0
        %v4903 = vmax.f32 %v4871, 0.0
        %v4904 = vmax.f32 %v4872, 0.0
        %v4905 = vmax.f32 %v4873, 0.0
        %v4906 = vmax.f32 %v4874, 0.0
        %v4907 = vmax.f32 %v4875, 0.0
        %v4908 = vmax.f32 %v4876, 0.0
        %v4909 = vmax.f32 %v4877, 0.0
        %v4910 = vmax.f32 %v4878, 0.0
        %v4911 = vmax.f32 %v4879, 0.0
        %v4912 = vmax.f32 %v4880, 0.0
        %v4913 = vmax.f32 %v4881, 0.0
        %v4914 = vmax.f32 %v4882, 0.0
        %v4915 = vmax.f32 %v4883, 0.0
        %v4916 = vmax.f32 %v4884, 0.0
        %v4917 = vmax.f32 %v4885, 0.0
        %v4918 = vmax.f32 %v4886, 0.0
        %v4919 = vmax.f32 %v4887, 0.0
        %v4920 = vmax.f32 %v4888, 0.0
        %v4921 = vmax.f32 %v4889, 0.0
        %v4922 = vmax.f32 %v4890, 0.0
        %v4923 = vmax.f32 %v4891, 0.0
        %v4924 = vpack.c.bf16 %v4894, %v4892
        %v4925 = vpack.c.bf16 %v4895, %v4893
        %v4926 = vpack.c.bf16 %v4898, %v4896
        %v4927 = vpack.c.bf16 %v4899, %v4897
        %v4928 = vpack.c.bf16 %v4902, %v4900
        %v4929 = vpack.c.bf16 %v4903, %v4901
        %v4930 = vpack.c.bf16 %v4906, %v4904
        %v4931 = vpack.c.bf16 %v4907, %v4905
        %v4932 = vpack.c.bf16 %v4910, %v4908
        %v4933 = vpack.c.bf16 %v4911, %v4909
        %v4934 = vpack.c.bf16 %v4914, %v4912
        %v4935 = vpack.c.bf16 %v4915, %v4913
        %v4936 = vpack.c.bf16 %v4918, %v4916
        %v4937 = vpack.c.bf16 %v4919, %v4917
        %v4938 = vpack.c.bf16 %v4922, %v4920
        %v4939 = vpack.c.bf16 %v4923, %v4921
        %v4940 = vld [vmem:[#allocation7] sm:$0xff]
        %v4941 = vld [vmem:[#allocation7 + $0x8] sm:$0xff]
        %v4942 = vld [vmem:[#allocation7 + $0x10] sm:$0xff]
        %v4943 = vld [vmem:[#allocation7 + $0x18] sm:$0xff]
        %v4944 = vld [vmem:[#allocation7 + $0x20] sm:$0xff]
        %v4945 = vld [vmem:[#allocation7 + $0x28] sm:$0xff]
        %v4946 = vld [vmem:[#allocation7 + $0x30] sm:$0xff]
        %v4947 = vld [vmem:[#allocation7 + $0x38] sm:$0xff]
        %v4948 = vld [vmem:[#allocation7 + $0x40] sm:$0xff]
        %v4949 = vld [vmem:[#allocation7 + $0x48] sm:$0xff]
        %v4950 = vld [vmem:[#allocation7 + $0x50] sm:$0xff]
        %v4951 = vld [vmem:[#allocation7 + $0x58] sm:$0xff]
        %v4952 = vld [vmem:[#allocation7 + $0x60] sm:$0xff]
        %v4953 = vld [vmem:[#allocation7 + $0x68] sm:$0xff]
        %v4954 = vld [vmem:[#allocation7 + $0x70] sm:$0xff]
        %v4955 = vld [vmem:[#allocation7 + $0x78] sm:$0xff]
        %v4956 = vld [vmem:[#allocation7 + $0x80] sm:$0xff]
        %v4957 = vld [vmem:[#allocation7 + $0x88] sm:$0xff]
        %v4958 = vld [vmem:[#allocation7 + $0x90] sm:$0xff]
        %v4959 = vld [vmem:[#allocation7 + $0x98] sm:$0xff]
        %v4960 = vld [vmem:[#allocation7 + $0xa0] sm:$0xff]
        %v4961 = vld [vmem:[#allocation7 + $0xa8] sm:$0xff]
        %v4962 = vld [vmem:[#allocation7 + $0xb0] sm:$0xff]
        %v4963 = vld [vmem:[#allocation7 + $0xb8] sm:$0xff]
        %v4964 = vld [vmem:[#allocation7 + $0xc0] sm:$0xff]
        %v4965 = vld [vmem:[#allocation7 + $0xc8] sm:$0xff]
        %v4966 = vld [vmem:[#allocation7 + $0xd0] sm:$0xff]
        %v4967 = vld [vmem:[#allocation7 + $0xd8] sm:$0xff]
        %v4968 = vld [vmem:[#allocation7 + $0xe0] sm:$0xff]
        %v4969 = vld [vmem:[#allocation7 + $0xe8] sm:$0xff]
        %v4970 = vld [vmem:[#allocation7 + $0xf0] sm:$0xff]
        %v4971 = vld [vmem:[#allocation7 + $0xf8] sm:$0xff]
        %v4972 = vld [vmem:[#allocation7 + $0x100] sm:$0xff]
        %v4973 = vld [vmem:[#allocation7 + $0x108] sm:$0xff]
        %v4974 = vld [vmem:[#allocation7 + $0x110] sm:$0xff]
        %v4975 = vld [vmem:[#allocation7 + $0x118] sm:$0xff]
        %v4976 = vld [vmem:[#allocation7 + $0x120] sm:$0xff]
        %v4977 = vld [vmem:[#allocation7 + $0x128] sm:$0xff]
        %v4978 = vld [vmem:[#allocation7 + $0x130] sm:$0xff]
        %v4979 = vld [vmem:[#allocation7 + $0x138] sm:$0xff]
        %v4980 = vld [vmem:[#allocation7 + $0x140] sm:$0xff]
        %v4981 = vld [vmem:[#allocation7 + $0x148] sm:$0xff]
        %v4982 = vld [vmem:[#allocation7 + $0x150] sm:$0xff]
        %v4983 = vld [vmem:[#allocation7 + $0x158] sm:$0xff]
        %v4984 = vld [vmem:[#allocation7 + $0x160] sm:$0xff]
        %v4985 = vld [vmem:[#allocation7 + $0x168] sm:$0xff]
        %v4986 = vld [vmem:[#allocation7 + $0x170] sm:$0xff]
        %v4987 = vld [vmem:[#allocation7 + $0x178] sm:$0xff]
        %v4988 = vld [vmem:[#allocation7 + $0x180] sm:$0xff]
        %v4989 = vld [vmem:[#allocation7 + $0x188] sm:$0xff]
        %v4990 = vld [vmem:[#allocation7 + $0x190] sm:$0xff]
        %v4991 = vld [vmem:[#allocation7 + $0x198] sm:$0xff]
        %v4992 = vld [vmem:[#allocation7 + $0x1a0] sm:$0xff]
        %v4993 = vld [vmem:[#allocation7 + $0x1a8] sm:$0xff]
        %v4994 = vld [vmem:[#allocation7 + $0x1b0] sm:$0xff]
        %v4995 = vld [vmem:[#allocation7 + $0x1b8] sm:$0xff]
        %v4996 = vld [vmem:[#allocation7 + $0x1c0] sm:$0xff]
        %v4997 = vld [vmem:[#allocation7 + $0x1c8] sm:$0xff]
        %v4998 = vld [vmem:[#allocation7 + $0x1d0] sm:$0xff]
        %v4999 = vld [vmem:[#allocation7 + $0x1d8] sm:$0xff]
        %v5000 = vld [vmem:[#allocation7 + $0x1e0] sm:$0xff]
        %v5001 = vld [vmem:[#allocation7 + $0x1e8] sm:$0xff]
        %v5002 = vld [vmem:[#allocation7 + $0x1f0] sm:$0xff]
        %v5003 = vld [vmem:[#allocation7 + $0x1f8] sm:$0xff]
        %v5004 = vld [vmem:[#allocation8] sm:$0xf]
        %v5006 = vlaneseq
        %v5007 = vshrl.u32 %v5006, 7
        %v5008 = vsub.s32 0, %v5007
        %v5009 = vrot.slane %v5004, %v5008
        %v5010 = vlaneseq
        %v5011 = vshrl.u32 %v5010, 7
        %v5012 = vsub.s32 1, %v5011
        %v5013 = vrot.slane %v5004, %v5012
        %v5014 = vlaneseq
        %v5015 = vshrl.u32 %v5014, 7
        %v5016 = vsub.s32 2, %v5015
        %v5017 = vrot.slane %v5004, %v5016
        %v5018 = vlaneseq
        %v5019 = vshrl.u32 %v5018, 7
        %v5020 = vsub.s32 3, %v5019
        %v5021 = vrot.slane %v5004, %v5020
        %v5090 = vunpack.c.l.b16 %v4940
        %v5091 = vunpack.c.h.b16 %v4940
        %v5092 = vunpack.c.l.b16 %v4941
        %v5093 = vunpack.c.h.b16 %v4941
        %v5094 = vunpack.c.l.b16 %v4942
        %v5095 = vunpack.c.h.b16 %v4942
        %v5096 = vunpack.c.l.b16 %v4943
        %v5097 = vunpack.c.h.b16 %v4943
        %v5098 = vunpack.c.l.b16 %v4944
        %v5099 = vunpack.c.h.b16 %v4944
        %v5100 = vunpack.c.l.b16 %v4945
        %v5101 = vunpack.c.h.b16 %v4945
        %v5102 = vunpack.c.l.b16 %v4946
        %v5103 = vunpack.c.h.b16 %v4946
        %v5104 = vunpack.c.l.b16 %v4947
        %v5105 = vunpack.c.h.b16 %v4947
        %v5106 = vunpack.c.l.b16 %v4948
        %v5107 = vunpack.c.h.b16 %v4948
        %v5108 = vunpack.c.l.b16 %v4949
        %v5109 = vunpack.c.h.b16 %v4949
        %v5110 = vunpack.c.l.b16 %v4950
        %v5111 = vunpack.c.h.b16 %v4950
        %v5112 = vunpack.c.l.b16 %v4951
        %v5113 = vunpack.c.h.b16 %v4951
        %v5114 = vunpack.c.l.b16 %v4952
        %v5115 = vunpack.c.h.b16 %v4952
        %v5116 = vunpack.c.l.b16 %v4953
        %v5117 = vunpack.c.h.b16 %v4953
        %v5118 = vunpack.c.l.b16 %v4954
        %v5119 = vunpack.c.h.b16 %v4954
        %v5120 = vunpack.c.l.b16 %v4955
        %v5121 = vunpack.c.h.b16 %v4955
        %v5122 = vunpack.c.l.b16 %v4956
        %v5123 = vunpack.c.h.b16 %v4956
        %v5124 = vunpack.c.l.b16 %v4957
        %v5125 = vunpack.c.h.b16 %v4957
        %v5126 = vunpack.c.l.b16 %v4958
        %v5127 = vunpack.c.h.b16 %v4958
        %v5128 = vunpack.c.l.b16 %v4959
        %v5129 = vunpack.c.h.b16 %v4959
        %v5130 = vunpack.c.l.b16 %v4960
        %v5131 = vunpack.c.h.b16 %v4960
        %v5132 = vunpack.c.l.b16 %v4961
        %v5133 = vunpack.c.h.b16 %v4961
        %v5134 = vunpack.c.l.b16 %v4962
        %v5135 = vunpack.c.h.b16 %v4962
        %v5136 = vunpack.c.l.b16 %v4963
        %v5137 = vunpack.c.h.b16 %v4963
        %v5138 = vunpack.c.l.b16 %v4964
        %v5139 = vunpack.c.h.b16 %v4964
        %v5140 = vunpack.c.l.b16 %v4965
        %v5141 = vunpack.c.h.b16 %v4965
        %v5142 = vunpack.c.l.b16 %v4966
        %v5143 = vunpack.c.h.b16 %v4966
        %v5144 = vunpack.c.l.b16 %v4967
        %v5145 = vunpack.c.h.b16 %v4967
        %v5146 = vunpack.c.l.b16 %v4968
        %v5147 = vunpack.c.h.b16 %v4968
        %v5148 = vunpack.c.l.b16 %v4969
        %v5149 = vunpack.c.h.b16 %v4969
        %v5150 = vunpack.c.l.b16 %v4970
        %v5151 = vunpack.c.h.b16 %v4970
        %v5152 = vunpack.c.l.b16 %v4971
        %v5153 = vunpack.c.h.b16 %v4971
        %v5154 = vunpack.c.l.b16 %v4972
        %v5155 = vunpack.c.h.b16 %v4972
        %v5156 = vunpack.c.l.b16 %v4973
        %v5157 = vunpack.c.h.b16 %v4973
        %v5158 = vunpack.c.l.b16 %v4974
        %v5159 = vunpack.c.h.b16 %v4974
        %v5160 = vunpack.c.l.b16 %v4975
        %v5161 = vunpack.c.h.b16 %v4975
        %v5162 = vunpack.c.l.b16 %v4976
        %v5163 = vunpack.c.h.b16 %v4976
        %v5164 = vunpack.c.l.b16 %v4977
        %v5165 = vunpack.c.h.b16 %v4977
        %v5166 = vunpack.c.l.b16 %v4978
        %v5167 = vunpack.c.h.b16 %v4978
        %v5168 = vunpack.c.l.b16 %v4979
        %v5169 = vunpack.c.h.b16 %v4979
        %v5170 = vunpack.c.l.b16 %v4980
        %v5171 = vunpack.c.h.b16 %v4980
        %v5172 = vunpack.c.l.b16 %v4981
        %v5173 = vunpack.c.h.b16 %v4981
        %v5174 = vunpack.c.l.b16 %v4982
        %v5175 = vunpack.c.h.b16 %v4982
        %v5176 = vunpack.c.l.b16 %v4983
        %v5177 = vunpack.c.h.b16 %v4983
        %v5178 = vunpack.c.l.b16 %v4984
        %v5179 = vunpack.c.h.b16 %v4984
        %v5180 = vunpack.c.l.b16 %v4985
        %v5181 = vunpack.c.h.b16 %v4985
        %v5182 = vunpack.c.l.b16 %v4986
        %v5183 = vunpack.c.h.b16 %v4986
        %v5184 = vunpack.c.l.b16 %v4987
        %v5185 = vunpack.c.h.b16 %v4987
        %v5186 = vunpack.c.l.b16 %v4988
        %v5187 = vunpack.c.h.b16 %v4988
        %v5188 = vunpack.c.l.b16 %v4989
        %v5189 = vunpack.c.h.b16 %v4989
        %v5190 = vunpack.c.l.b16 %v4990
        %v5191 = vunpack.c.h.b16 %v4990
        %v5192 = vunpack.c.l.b16 %v4991
        %v5193 = vunpack.c.h.b16 %v4991
        %v5194 = vunpack.c.l.b16 %v4992
        %v5195 = vunpack.c.h.b16 %v4992
        %v5196 = vunpack.c.l.b16 %v4993
        %v5197 = vunpack.c.h.b16 %v4993
        %v5198 = vunpack.c.l.b16 %v4994
        %v5199 = vunpack.c.h.b16 %v4994
        %v5200 = vunpack.c.l.b16 %v4995
        %v5201 = vunpack.c.h.b16 %v4995
        %v5202 = vunpack.c.l.b16 %v4996
        %v5203 = vunpack.c.h.b16 %v4996
        %v5204 = vunpack.c.l.b16 %v4997
        %v5205 = vunpack.c.h.b16 %v4997
        %v5206 = vunpack.c.l.b16 %v4998
        %v5207 = vunpack.c.h.b16 %v4998
        %v5208 = vunpack.c.l.b16 %v4999
        %v5209 = vunpack.c.h.b16 %v4999
        %v5210 = vunpack.c.l.b16 %v5000
        %v5211 = vunpack.c.h.b16 %v5000
        %v5212 = vunpack.c.l.b16 %v5001
        %v5213 = vunpack.c.h.b16 %v5001
        %v5214 = vunpack.c.l.b16 %v5002
        %v5215 = vunpack.c.h.b16 %v5002
        %v5216 = vunpack.c.l.b16 %v5003
        %v5217 = vunpack.c.h.b16 %v5003
        %v5218 = vpack.c.b16 %v5094, %v5090
        %v5219 = vpack.c.b16 %v5095, %v5091
        %v5220 = vpack.c.b16 %v5096, %v5092
        %v5221 = vpack.c.b16 %v5097, %v5093
        %v5222 = vpack.c.b16 %v5102, %v5098
        %v5223 = vpack.c.b16 %v5103, %v5099
        %v5224 = vpack.c.b16 %v5104, %v5100
        %v5225 = vpack.c.b16 %v5105, %v5101
        %v5226 = vpack.c.b16 %v5110, %v5106
        %v5227 = vpack.c.b16 %v5111, %v5107
        %v5228 = vpack.c.b16 %v5112, %v5108
        %v5229 = vpack.c.b16 %v5113, %v5109
        %v5230 = vpack.c.b16 %v5118, %v5114
        %v5231 = vpack.c.b16 %v5119, %v5115
        %v5232 = vpack.c.b16 %v5120, %v5116
        %v5233 = vpack.c.b16 %v5121, %v5117
        %v5234 = vpack.c.b16 %v5126, %v5122
        %v5235 = vpack.c.b16 %v5127, %v5123
        %v5236 = vpack.c.b16 %v5128, %v5124
        %v5237 = vpack.c.b16 %v5129, %v5125
        %v5238 = vpack.c.b16 %v5134, %v5130
        %v5239 = vpack.c.b16 %v5135, %v5131
        %v5240 = vpack.c.b16 %v5136, %v5132
        %v5241 = vpack.c.b16 %v5137, %v5133
        %v5242 = vpack.c.b16 %v5142, %v5138
        %v5243 = vpack.c.b16 %v5143, %v5139
        %v5244 = vpack.c.b16 %v5144, %v5140
        %v5245 = vpack.c.b16 %v5145, %v5141
        %v5246 = vpack.c.b16 %v5150, %v5146
        %v5247 = vpack.c.b16 %v5151, %v5147
        %v5248 = vpack.c.b16 %v5152, %v5148
        %v5249 = vpack.c.b16 %v5153, %v5149
        %v5250 = vpack.c.b16 %v5158, %v5154
        %v5251 = vpack.c.b16 %v5159, %v5155
        %v5252 = vpack.c.b16 %v5160, %v5156
        %v5253 = vpack.c.b16 %v5161, %v5157
        %v5254 = vpack.c.b16 %v5166, %v5162
        %v5255 = vpack.c.b16 %v5167, %v5163
        %v5256 = vpack.c.b16 %v5168, %v5164
        %v5257 = vpack.c.b16 %v5169, %v5165
        %v5258 = vpack.c.b16 %v5174, %v5170
        %v5259 = vpack.c.b16 %v5175, %v5171
        %v5260 = vpack.c.b16 %v5176, %v5172
        %v5261 = vpack.c.b16 %v5177, %v5173
        %v5262 = vpack.c.b16 %v5182, %v5178
        %v5263 = vpack.c.b16 %v5183, %v5179
        %v5264 = vpack.c.b16 %v5184, %v5180
        %v5265 = vpack.c.b16 %v5185, %v5181
        %v5266 = vpack.c.b16 %v5190, %v5186
        %v5267 = vpack.c.b16 %v5191, %v5187
        %v5268 = vpack.c.b16 %v5192, %v5188
        %v5269 = vpack.c.b16 %v5193, %v5189
        %v5270 = vpack.c.b16 %v5198, %v5194
        %v5271 = vpack.c.b16 %v5199, %v5195
        %v5272 = vpack.c.b16 %v5200, %v5196
        %v5273 = vpack.c.b16 %v5201, %v5197
        %v5274 = vpack.c.b16 %v5206, %v5202
        %v5275 = vpack.c.b16 %v5207, %v5203
        %v5276 = vpack.c.b16 %v5208, %v5204
        %v5277 = vpack.c.b16 %v5209, %v5205
        %v5278 = vpack.c.b16 %v5214, %v5210
        %v5279 = vpack.c.b16 %v5215, %v5211
        %v5280 = vpack.c.b16 %v5216, %v5212
        %v5281 = vpack.c.b16 %v5217, %v5213
        %5346 = vmatprep.subr.bf16.mxu0 %v5219
        %5347 = vmatpush1.bf16.msra.mxu0 %v5218
        %5348 = vmatprep.subr.bf16.mxu0 %v5223
        %5349 = vmatpush1.bf16.msra.mxu0 %v5222
        %5350 = vmatprep.subr.bf16.mxu0 %v5227
        %5351 = vmatpush1.bf16.msra.mxu0 %v5226
        %5352 = vmatprep.subr.bf16.mxu0 %v5231
        %5353 = vmatpush1.bf16.msra.mxu0 %v5230
        %5354 = vmatprep.subr.bf16.mxu0 %v5235
        %5355 = vmatpush1.bf16.msra.mxu0 %v5234
        %5356 = vmatprep.subr.bf16.mxu0 %v5239
        %5357 = vmatpush1.bf16.msra.mxu0 %v5238
        %5358 = vmatprep.subr.bf16.mxu0 %v5243
        %5359 = vmatpush1.bf16.msra.mxu0 %v5242
        %5360 = vmatprep.subr.bf16.mxu0 %v5247
        %5361 = vmatpush1.bf16.msra.mxu0 %v5246
        %5362 = vmatprep.subr.bf16.mxu0 %v5251
        %5363 = vmatpush1.bf16.msra.mxu0 %v5250
        %5364 = vmatprep.subr.bf16.mxu0 %v5255
        %5365 = vmatpush1.bf16.msra.mxu0 %v5254
        %5366 = vmatprep.subr.bf16.mxu0 %v5259
        %5367 = vmatpush1.bf16.msra.mxu0 %v5258
        %5368 = vmatprep.subr.bf16.mxu0 %v5263
        %5369 = vmatpush1.bf16.msra.mxu0 %v5262
        %5370 = vmatprep.subr.bf16.mxu0 %v5267
        %5371 = vmatpush1.bf16.msra.mxu0 %v5266
        %5372 = vmatprep.subr.bf16.mxu0 %v5271
        %5373 = vmatpush1.bf16.msra.mxu0 %v5270
        %5374 = vmatprep.subr.bf16.mxu0 %v5275
        %5375 = vmatpush1.bf16.msra.mxu0 %v5274
        %5376 = vmatprep.subr.bf16.mxu0 %v5279
        %5377 = vmatpush1.bf16.msra.mxu0 %v5278
        %5378 = vmatprep.mubr.bf16.mxu0 %v4925
        %5379 = vmatmul.mubr.bf16.gmra.mrb[0].mxu0 %v4924
        %v5380 = vpop.f32.mrb[0].mxu0
        %v5381 = vadd.f32 %v5009, %v5380
        %v5382 = vpop.f32.mrb[0].mxu0
        %v5383 = vadd.f32 %v5013, %v5382
        %v5384 = vpop.f32.mrb[0].mxu0
        %v5385 = vadd.f32 %v5009, %v5384
        %v5386 = vpop.f32.mrb[0].mxu0
        %v5387 = vadd.f32 %v5013, %v5386
        %5388 = vmatprep.mubr.bf16.mxu0 %v4927
        %5389 = vmatmul.mubr.bf16.gmra.mrb[0].mxu0 %v4926
        %v5390 = vpop.f32.mrb[0].mxu0
        %v5391 = vadd.f32 %v5009, %v5390
        %v5392 = vpop.f32.mrb[0].mxu0
        %v5393 = vadd.f32 %v5013, %v5392
        %v5394 = vpop.f32.mrb[0].mxu0
        %v5395 = vadd.f32 %v5009, %v5394
        %v5396 = vpop.f32.mrb[0].mxu0
        %v5397 = vadd.f32 %v5013, %v5396
        %5398 = vmatprep.mubr.bf16.mxu0 %v4929
        %5399 = vmatmul.mubr.bf16.gmra.mrb[0].mxu0 %v4928
        %v5400 = vpop.f32.mrb[0].mxu0
        %v5401 = vadd.f32 %v5009, %v5400
        %v5402 = vpop.f32.mrb[0].mxu0
        %v5403 = vadd.f32 %v5013, %v5402
        %v5404 = vpop.f32.mrb[0].mxu0
        %v5405 = vadd.f32 %v5009, %v5404
        %v5406 = vpop.f32.mrb[0].mxu0
        %v5407 = vadd.f32 %v5013, %v5406
        %5408 = vmatprep.mubr.bf16.mxu0 %v4931
        %5409 = vmatmul.mubr.bf16.gmra.mrb[0].mxu0 %v4930
        %v5410 = vpop.f32.mrb[0].mxu0
        %v5411 = vadd.f32 %v5009, %v5410
        %v5412 = vpop.f32.mrb[0].mxu0
        %v5413 = vadd.f32 %v5013, %v5412
        %v5414 = vpop.f32.mrb[0].mxu0
        %v5415 = vadd.f32 %v5009, %v5414
        %v5416 = vpop.f32.mrb[0].mxu0
        %v5417 = vadd.f32 %v5013, %v5416
        %5418 = vmatprep.mubr.bf16.mxu0 %v4933
        %5419 = vmatmul.mubr.bf16.gmra.mrb[0].mxu0 %v4932
        %v5420 = vpop.f32.mrb[0].mxu0
        %v5421 = vadd.f32 %v5009, %v5420
        %v5422 = vpop.f32.mrb[0].mxu0
        %v5423 = vadd.f32 %v5013, %v5422
        %v5424 = vpop.f32.mrb[0].mxu0
        %v5425 = vadd.f32 %v5009, %v5424
        %v5426 = vpop.f32.mrb[0].mxu0
        %v5427 = vadd.f32 %v5013, %v5426
        %5428 = vmatprep.mubr.bf16.mxu0 %v4935
        %5429 = vmatmul.mubr.bf16.gmra.mrb[0].mxu0 %v4934
        %v5430 = vpop.f32.mrb[0].mxu0
        %v5431 = vadd.f32 %v5009, %v5430
        %v5432 = vpop.f32.mrb[0].mxu0
        %v5433 = vadd.f32 %v5013, %v5432
        %v5434 = vpop.f32.mrb[0].mxu0
        %v5435 = vadd.f32 %v5009, %v5434
        %v5436 = vpop.f32.mrb[0].mxu0
        %v5437 = vadd.f32 %v5013, %v5436
        %5438 = vmatprep.mubr.bf16.mxu0 %v4937
        %5439 = vmatmul.mubr.bf16.gmra.mrb[0].mxu0 %v4936
        %v5440 = vpop.f32.mrb[0].mxu0
        %v5441 = vadd.f32 %v5009, %v5440
        %v5442 = vpop.f32.mrb[0].mxu0
        %v5443 = vadd.f32 %v5013, %v5442
        %v5444 = vpop.f32.mrb[0].mxu0
        %v5445 = vadd.f32 %v5009, %v5444
        %v5446 = vpop.f32.mrb[0].mxu0
        %v5447 = vadd.f32 %v5013, %v5446
        %5448 = vmatprep.mubr.bf16.mxu0 %v4939
        %5449 = vmatmul.mubr.bf16.gmra.mrb[0].mxu0 %v4938
        %v5450 = vpop.f32.mrb[0].mxu0
        %v5451 = vadd.f32 %v5009, %v5450
        %v5452 = vpop.f32.mrb[0].mxu0
        %v5453 = vadd.f32 %v5013, %v5452
        %v5454 = vpop.f32.mrb[0].mxu0
        %v5455 = vadd.f32 %v5009, %v5454
        %v5456 = vpop.f32.mrb[0].mxu0
        %v5457 = vadd.f32 %v5013, %v5456
        %5458 = vdwg.mxu0
        %5459 = vmatprep.subr.bf16.mxu0 %v5221
        %5460 = vmatpush1.bf16.msra.mxu0 %v5220
        %5461 = vmatprep.subr.bf16.mxu0 %v5225
        %5462 = vmatpush1.bf16.msra.mxu0 %v5224
        %5463 = vmatprep.subr.bf16.mxu0 %v5229
        %5464 = vmatpush1.bf16.msra.mxu0 %v5228
        %5465 = vmatprep.subr.bf16.mxu0 %v5233
        %5466 = vmatpush1.bf16.msra.mxu0 %v5232
        %5467 = vmatprep.subr.bf16.mxu0 %v5237
        %5468 = vmatpush1.bf16.msra.mxu0 %v5236
        %5469 = vmatprep.subr.bf16.mxu0 %v5241
        %5470 = vmatpush1.bf16.msra.mxu0 %v5240
        %5471 = vmatprep.subr.bf16.mxu0 %v5245
        %5472 = vmatpush1.bf16.msra.mxu0 %v5244
        %5473 = vmatprep.subr.bf16.mxu0 %v5249
        %5474 = vmatpush1.bf16.msra.mxu0 %v5248
        %5475 = vmatprep.subr.bf16.mxu0 %v5253
        %5476 = vmatpush1.bf16.msra.mxu0 %v5252
        %5477 = vmatprep.subr.bf16.mxu0 %v5257
        %5478 = vmatpush1.bf16.msra.mxu0 %v5256
        %5479 = vmatprep.subr.bf16.mxu0 %v5261
        %5480 = vmatpush1.bf16.msra.mxu0 %v5260
        %5481 = vmatprep.subr.bf16.mxu0 %v5265
        %5482 = vmatpush1.bf16.msra.mxu0 %v5264
        %5483 = vmatprep.subr.bf16.mxu0 %v5269
        %5484 = vmatpush1.bf16.msra.mxu0 %v5268
        %5485 = vmatprep.subr.bf16.mxu0 %v5273
        %5486 = vmatpush1.bf16.msra.mxu0 %v5272
        %5487 = vmatprep.subr.bf16.mxu0 %v5277
        %5488 = vmatpush1.bf16.msra.mxu0 %v5276
        %5489 = vmatprep.subr.bf16.mxu0 %v5281
        %5490 = vmatpush1.bf16.msra.mxu0 %v5280
        %5491 = vmatprep.mubr.bf16.mxu0 %v4925
        %5492 = vmatmul.mubr.bf16.gmra.mrb[0].mxu0 %v4924
        %v5493 = vpop.f32.mrb[0].mxu0
        %v5494 = vadd.f32 %v5017, %v5493
        %v5495 = vpop.f32.mrb[0].mxu0
        %v5496 = vadd.f32 %v5021, %v5495
        %v5497 = vpop.f32.mrb[0].mxu0
        %v5498 = vadd.f32 %v5017, %v5497
        %v5499 = vpop.f32.mrb[0].mxu0
        %v5500 = vadd.f32 %v5021, %v5499
        %5501 = vmatprep.mubr.bf16.mxu0 %v4927
        %5502 = vmatmul.mubr.bf16.gmra.mrb[0].mxu0 %v4926
        %v5503 = vpop.f32.mrb[0].mxu0
        %v5504 = vadd.f32 %v5017, %v5503
        %v5505 = vpop.f32.mrb[0].mxu0
        %v5506 = vadd.f32 %v5021, %v5505
        %v5507 = vpop.f32.mrb[0].mxu0
        %v5508 = vadd.f32 %v5017, %v5507
        %v5509 = vpop.f32.mrb[0].mxu0
        %v5510 = vadd.f32 %v5021, %v5509
        %5511 = vmatprep.mubr.bf16.mxu0 %v4929
        %5512 = vmatmul.mubr.bf16.gmra.mrb[0].mxu0 %v4928
        %v5513 = vpop.f32.mrb[0].mxu0
        %v5514 = vadd.f32 %v5017, %v5513
        %v5515 = vpop.f32.mrb[0].mxu0
        %v5516 = vadd.f32 %v5021, %v5515
        %v5517 = vpop.f32.mrb[0].mxu0
        %v5518 = vadd.f32 %v5017, %v5517
        %v5519 = vpop.f32.mrb[0].mxu0
        %v5520 = vadd.f32 %v5021, %v5519
        %5521 = vmatprep.mubr.bf16.mxu0 %v4931
        %5522 = vmatmul.mubr.bf16.gmra.mrb[0].mxu0 %v4930
        %v5523 = vpop.f32.mrb[0].mxu0
        %v5524 = vadd.f32 %v5017, %v5523
        %v5525 = vpop.f32.mrb[0].mxu0
        %v5526 = vadd.f32 %v5021, %v5525
        %v5527 = vpop.f32.mrb[0].mxu0
        %v5528 = vadd.f32 %v5017, %v5527
        %v5529 = vpop.f32.mrb[0].mxu0
        %v5530 = vadd.f32 %v5021, %v5529
        %5531 = vmatprep.mubr.bf16.mxu0 %v4933
        %5532 = vmatmul.mubr.bf16.gmra.mrb[0].mxu0 %v4932
        %v5533 = vpop.f32.mrb[0].mxu0
        %v5534 = vadd.f32 %v5017, %v5533
        %v5535 = vpop.f32.mrb[0].mxu0
        %v5536 = vadd.f32 %v5021, %v5535
        %v5537 = vpop.f32.mrb[0].mxu0
        %v5538 = vadd.f32 %v5017, %v5537
        %v5539 = vpop.f32.mrb[0].mxu0
        %v5540 = vadd.f32 %v5021, %v5539
        %5541 = vmatprep.mubr.bf16.mxu0 %v4935
        %5542 = vmatmul.mubr.bf16.gmra.mrb[0].mxu0 %v4934
        %v5543 = vpop.f32.mrb[0].mxu0
        %v5544 = vadd.f32 %v5017, %v5543
        %v5545 = vpop.f32.mrb[0].mxu0
        %v5546 = vadd.f32 %v5021, %v5545
        %v5547 = vpop.f32.mrb[0].mxu0
        %v5548 = vadd.f32 %v5017, %v5547
        %v5549 = vpop.f32.mrb[0].mxu0
        %v5550 = vadd.f32 %v5021, %v5549
        %5551 = vmatprep.mubr.bf16.mxu0 %v4937
        %5552 = vmatmul.mubr.bf16.gmra.mrb[0].mxu0 %v4936
        %v5553 = vpop.f32.mrb[0].mxu0
        %v5554 = vadd.f32 %v5017, %v5553
        %v5555 = vpop.f32.mrb[0].mxu0
        %v5556 = vadd.f32 %v5021, %v5555
        %v5557 = vpop.f32.mrb[0].mxu0
        %v5558 = vadd.f32 %v5017, %v5557
        %v5559 = vpop.f32.mrb[0].mxu0
        %v5560 = vadd.f32 %v5021, %v5559
        %5561 = vmatprep.mubr.bf16.mxu0 %v4939
        %5562 = vmatmul.mubr.bf16.gmra.mrb[0].mxu0 %v4938
        %v5563 = vpop.f32.mrb[0].mxu0
        %v5564 = vadd.f32 %v5017, %v5563
        %v5565 = vpop.f32.mrb[0].mxu0
        %v5566 = vadd.f32 %v5021, %v5565
        %v5567 = vpop.f32.mrb[0].mxu0
        %v5568 = vadd.f32 %v5017, %v5567
        %v5569 = vpop.f32.mrb[0].mxu0
        %v5570 = vadd.f32 %v5021, %v5569
        %5571 = vdwg.mxu0
        %v5572 = vpack.c.bf16 %v5385, %v5381
        %v5573 = vpack.c.bf16 %v5387, %v5383
        %v5574 = vpack.c.bf16 %v5498, %v5494
        %v5575 = vpack.c.bf16 %v5500, %v5496
        %v5576 = vpack.c.bf16 %v5395, %v5391
        %v5577 = vpack.c.bf16 %v5397, %v5393
        %v5578 = vpack.c.bf16 %v5508, %v5504
        %v5579 = vpack.c.bf16 %v5510, %v5506
        %v5580 = vpack.c.bf16 %v5405, %v5401
        %v5581 = vpack.c.bf16 %v5407, %v5403
        %v5582 = vpack.c.bf16 %v5518, %v5514
        %v5583 = vpack.c.bf16 %v5520, %v5516
        %v5584 = vpack.c.bf16 %v5415, %v5411
        %v5585 = vpack.c.bf16 %v5417, %v5413
        %v5586 = vpack.c.bf16 %v5528, %v5524
        %v5587 = vpack.c.bf16 %v5530, %v5526
        %v5588 = vpack.c.bf16 %v5425, %v5421
        %v5589 = vpack.c.bf16 %v5427, %v5423
        %v5590 = vpack.c.bf16 %v5538, %v5534
        %v5591 = vpack.c.bf16 %v5540, %v5536
        %v5592 = vpack.c.bf16 %v5435, %v5431
        %v5593 = vpack.c.bf16 %v5437, %v5433
        %v5594 = vpack.c.bf16 %v5548, %v5544
        %v5595 = vpack.c.bf16 %v5550, %v5546
        %v5596 = vpack.c.bf16 %v5445, %v5441
        %v5597 = vpack.c.bf16 %v5447, %v5443
        %v5598 = vpack.c.bf16 %v5558, %v5554
        %v5599 = vpack.c.bf16 %v5560, %v5556
        %v5600 = vpack.c.bf16 %v5455, %v5451
        %v5601 = vpack.c.bf16 %v5457, %v5453
        %v5602 = vpack.c.bf16 %v5568, %v5564
        %v5603 = vpack.c.bf16 %v5570, %v5566
        %v5636 = vunpack.c.l.b16 %v5572
        %v5637 = vunpack.c.l.b16 %v5573
        %v5638 = vunpack.c.l.b16 %v5574
        %v5639 = vunpack.c.l.b16 %v5575
        %v5640 = vunpack.c.h.b16 %v5572
        %v5641 = vunpack.c.h.b16 %v5573
        %v5642 = vunpack.c.h.b16 %v5574
        %v5643 = vunpack.c.h.b16 %v5575
        %v5644 = vunpack.c.l.b16 %v5576
        %v5645 = vunpack.c.l.b16 %v5577
        %v5646 = vunpack.c.l.b16 %v5578
        %v5647 = vunpack.c.l.b16 %v5579
        %v5648 = vunpack.c.h.b16 %v5576
        %v5649 = vunpack.c.h.b16 %v5577
        %v5650 = vunpack.c.h.b16 %v5578
        %v5651 = vunpack.c.h.b16 %v5579
        %v5652 = vunpack.c.l.b16 %v5580
        %v5653 = vunpack.c.l.b16 %v5581
        %v5654 = vunpack.c.l.b16 %v5582
        %v5655 = vunpack.c.l.b16 %v5583
        %v5656 = vunpack.c.h.b16 %v5580
        %v5657 = vunpack.c.h.b16 %v5581
        %v5658 = vunpack.c.h.b16 %v5582
        %v5659 = vunpack.c.h.b16 %v5583
        %v5660 = vunpack.c.l.b16 %v5584
        %v5661 = vunpack.c.l.b16 %v5585
        %v5662 = vunpack.c.l.b16 %v5586
        %v5663 = vunpack.c.l.b16 %v5587
        %v5664 = vunpack.c.h.b16 %v5584
        %v5665 = vunpack.c.h.b16 %v5585
        %v5666 = vunpack.c.h.b16 %v5586
        %v5667 = vunpack.c.h.b16 %v5587
        %v5668 = vunpack.c.l.b16 %v5588
        %v5669 = vunpack.c.l.b16 %v5589
        %v5670 = vunpack.c.l.b16 %v5590
        %v5671 = vunpack.c.l.b16 %v5591
        %v5672 = vunpack.c.h.b16 %v5588
        %v5673 = vunpack.c.h.b16 %v5589
        %v5674 = vunpack.c.h.b16 %v5590
        %v5675 = vunpack.c.h.b16 %v5591
        %v5676 = vunpack.c.l.b16 %v5592
        %v5677 = vunpack.c.l.b16 %v5593
        %v5678 = vunpack.c.l.b16 %v5594
        %v5679 = vunpack.c.l.b16 %v5595
        %v5680 = vunpack.c.h.b16 %v5592
        %v5681 = vunpack.c.h.b16 %v5593
        %v5682 = vunpack.c.h.b16 %v5594
        %v5683 = vunpack.c.h.b16 %v5595
        %v5684 = vunpack.c.l.b16 %v5596
        %v5685 = vunpack.c.l.b16 %v5597
        %v5686 = vunpack.c.l.b16 %v5598
        %v5687 = vunpack.c.l.b16 %v5599
        %v5688 = vunpack.c.h.b16 %v5596
        %v5689 = vunpack.c.h.b16 %v5597
        %v5690 = vunpack.c.h.b16 %v5598
        %v5691 = vunpack.c.h.b16 %v5599
        %v5692 = vunpack.c.l.b16 %v5600
        %v5693 = vunpack.c.l.b16 %v5601
        %v5694 = vunpack.c.l.b16 %v5602
        %v5695 = vunpack.c.l.b16 %v5603
        %v5696 = vunpack.c.h.b16 %v5600
        %v5697 = vunpack.c.h.b16 %v5601
        %v5698 = vunpack.c.h.b16 %v5602
        %v5699 = vunpack.c.h.b16 %v5603
        %v5700 = vpack.c.b16 %v5637, %v5636
        %v5701 = vpack.c.b16 %v5639, %v5638
        %v5702 = vpack.c.b16 %v5641, %v5640
        %v5703 = vpack.c.b16 %v5643, %v5642
        %v5704 = vpack.c.b16 %v5645, %v5644
        %v5705 = vpack.c.b16 %v5647, %v5646
        %v5706 = vpack.c.b16 %v5649, %v5648
        %v5707 = vpack.c.b16 %v5651, %v5650
        %v5708 = vpack.c.b16 %v5653, %v5652
        %v5709 = vpack.c.b16 %v5655, %v5654
        %v5710 = vpack.c.b16 %v5657, %v5656
        %v5711 = vpack.c.b16 %v5659, %v5658
        %v5712 = vpack.c.b16 %v5661, %v5660
        %v5713 = vpack.c.b16 %v5663, %v5662
        %v5714 = vpack.c.b16 %v5665, %v5664
        %v5715 = vpack.c.b16 %v5667, %v5666
        %v5716 = vpack.c.b16 %v5669, %v5668
        %v5717 = vpack.c.b16 %v5671, %v5670
        %v5718 = vpack.c.b16 %v5673, %v5672
        %v5719 = vpack.c.b16 %v5675, %v5674
        %v5720 = vpack.c.b16 %v5677, %v5676
        %v5721 = vpack.c.b16 %v5679, %v5678
        %v5722 = vpack.c.b16 %v5681, %v5680
        %v5723 = vpack.c.b16 %v5683, %v5682
        %v5724 = vpack.c.b16 %v5685, %v5684
        %v5725 = vpack.c.b16 %v5687, %v5686
        %v5726 = vpack.c.b16 %v5689, %v5688
        %v5727 = vpack.c.b16 %v5691, %v5690
        %v5728 = vpack.c.b16 %v5693, %v5692
        %v5729 = vpack.c.b16 %v5695, %v5694
        %v5730 = vpack.c.b16 %v5697, %v5696
        %v5731 = vpack.c.b16 %v5699, %v5698
        %5764 = vst [vmem:[%s286] sm:$0xff] %v5700
        %5765 = vst [vmem:[%s286 + $0x8] sm:$0xff] %v5701
        %5766 = vst [vmem:[%s286 + $0x10] sm:$0xff] %v5702
        %5767 = vst [vmem:[%s286 + $0x18] sm:$0xff] %v5703
        %5768 = vst [vmem:[%s286 + $0x20] sm:$0xff] %v5704
        %5769 = vst [vmem:[%s286 + $0x28] sm:$0xff] %v5705
        %5770 = vst [vmem:[%s286 + $0x30] sm:$0xff] %v5706
        %5771 = vst [vmem:[%s286 + $0x38] sm:$0xff] %v5707
        %5772 = vst [vmem:[%s286 + $0x40] sm:$0xff] %v5708
        %5773 = vst [vmem:[%s286 + $0x48] sm:$0xff] %v5709
        %5774 = vst [vmem:[%s286 + $0x50] sm:$0xff] %v5710
        %5775 = vst [vmem:[%s286 + $0x58] sm:$0xff] %v5711
        %5776 = vst [vmem:[%s286 + $0x60] sm:$0xff] %v5712
        %5777 = vst [vmem:[%s286 + $0x68] sm:$0xff] %v5713
        %5778 = vst [vmem:[%s286 + $0x70] sm:$0xff] %v5714
        %5779 = vst [vmem:[%s286 + $0x78] sm:$0xff] %v5715
        %5780 = vst [vmem:[%s286 + $0x80] sm:$0xff] %v5716
        %5781 = vst [vmem:[%s286 + $0x88] sm:$0xff] %v5717
        %5782 = vst [vmem:[%s286 + $0x90] sm:$0xff] %v5718
        %5783 = vst [vmem:[%s286 + $0x98] sm:$0xff] %v5719
        %5784 = vst [vmem:[%s286 + $0xa0] sm:$0xff] %v5720
        %5785 = vst [vmem:[%s286 + $0xa8] sm:$0xff] %v5721
        %5786 = vst [vmem:[%s286 + $0xb0] sm:$0xff] %v5722
        %5787 = vst [vmem:[%s286 + $0xb8] sm:$0xff] %v5723
        %5788 = vst [vmem:[%s286 + $0xc0] sm:$0xff] %v5724
        %5789 = vst [vmem:[%s286 + $0xc8] sm:$0xff] %v5725
        %5790 = vst [vmem:[%s286 + $0xd0] sm:$0xff] %v5726
        %5791 = vst [vmem:[%s286 + $0xd8] sm:$0xff] %v5727
        %5792 = vst [vmem:[%s286 + $0xe0] sm:$0xff] %v5728
        %5793 = vst [vmem:[%s286 + $0xe8] sm:$0xff] %v5729
        %5794 = vst [vmem:[%s286 + $0xf0] sm:$0xff] %v5730
        %5795 = vst [vmem:[%s286 + $0xf8] sm:$0xff] %v5731
        %s5796 = sand.u32 %s154, 1
        %s5797 = scalar_lea.sflag [#allocation4], %s5796
        %s5798 = sand.u32 %s154, 1
        %s5799 = smul.addr %s5798, 256
        %s5800 = scalar_lea.vmem [#allocation10], %s5799
        // Predicated region
        $region57: #{tpu_custom_call.1} parent=39 // pred_check
          %p5801 = pneg %p164
        $region58: #{tpu_custom_call.1} parent=39 // pred_check_branch
          %5803 = sbr.rel (%p5801) target = $region60
        $region59: #{tpu_custom_call.1} parent=39 // pred_region
          %s5804 = smul.u32 16, %s27
          %s5806 = ssub.s32 4096, 4096
          %5807 = vsyncadd %s5797, %s5806
          %s5808 = smul.addr %s5804, 4
          %s5809 = smul.addr %s26, 128
          %s5810 = sadd.s32 %s5808, %s5809
          %s5811 = smul.addr %s5810, 64
          %s5812 = scalar_lea.hbm %s5, %s5811
          %s5813 = sshll.u32 %s5800, 4
          %s5814 = int_to_ptr.vmem [resolvable:$true] %s5813
          %5819 = dma.vmem_to_hbm [thread:$0]  %s5814, 4096, %s5812, %s5797, 256, 256, 16
        $region60: #{tpu_custom_call.1} parent=39 // pred_fallthru
          _
      $region40: #{tpu_custom_call.1} parent=5 // pred_fallthru
        _
      %p5820 = scmp.le.s32.totalorder 2, %s17
      // Predicated region
      $region61: #{tpu_custom_call.1} parent=5 // pred_check
        %p5821 = pneg %p5820
      $region62: #{tpu_custom_call.1} parent=5 // pred_check_branch
        %5823 = sbr.rel (%p5821) target = $region64
      $region63: #{tpu_custom_call.1} parent=5 // pred_region
        %s5824 = ssub.s32 %s17, 2
        // Predicated region
        $region65: #{tpu_custom_call.1} parent=63 // pred_check
          %p5825 = pneg %p170
        $region66: #{tpu_custom_call.1} parent=63 // pred_check_branch
          %5827 = sbr.rel (%p5825) target = $region68
        $region67: #{tpu_custom_call.1} parent=63 // pred_region
          %s5828 = sand.u32 %s155, 1
          %s5829 = scalar_lea.sflag [#allocation4], %s5828
          %s5830 = sand.u32 %s155, 1
          %s5831 = smul.addr %s5830, 256
          %s5832 = scalar_lea.vmem [#allocation10], %s5831
          %5833 = dma.done %s5829, 4096
        $region68: #{tpu_custom_call.1} parent=63 // pred_fallthru
          _
      $region64: #{tpu_custom_call.1} parent=5 // pred_fallthru
        _
    $region6: #{tpu_custom_call.1} parent=1 // loop_footer
      %s21 = sadd.s32 1, %s17
    $region7: #{tpu_custom_call.1} parent=1 // loop_footer_branch
      %16 = sbr.rel target = $region3
    $region8: #{tpu_custom_call.1} parent=1 // loop_exit
      _
    %5834 = vsyncpa [#allocation3], 1
    %s5835 = scalar_lea.sflag [#allocation3], 1
    %5836 = vsyncpa %s5835, 1
    %5837 = vsyncpa [#allocation6], 1
    %5838 = vsyncpa [#allocation9], 1
    %5839 = vsyncpa [#allocation4], 1
    %s5840 = scalar_lea.sflag [#allocation4], 1
    %5841 = vsyncpa %s5840, 1

</llo_original>
